<compile_context>
chip_gen: v6e
topology: v6e:2x2x1
jax: 0.10.0
libtpu: 0.0.40
codegen_flags: <defaults>
</compile_context>

<pallas_src>
import functools

import jax
import jax.numpy as jnp
from jax.experimental import pallas as pl
from jax.experimental.pallas import tpu as pltpu

BN_EPS = 1e-5
LANE = 128
VMEM_LIMIT = 32 * 1024 * 1024   # safe on v7x (64 MiB phys); v5e/v6e could raise.


def _round_up(x, m):
    return (x + m - 1) // m * m


def _pick_tile_h(h, w, n):
    """Whole output rows per tile: tile_h | H, tile_h*W <= ~512, >=2 grid tiles."""
    target = max(1, 512 // max(w, 1))
    best = 1
    for t in range(1, h + 1):
        if h % t == 0 and t <= target:
            best = t
    if n == 1 and best == h and h > 1:   # keep >=2 parallel tiles for megacore
        for t in range(h - 1, 0, -1):
            if h % t == 0:
                best = t
                break
    return best


# ----------------------------------------------------------------------------
# Conv3x3 (pad=1) as ONE MXU matmul per row tile, with
#   * optional fused prologue: previous layer's BatchNorm scale/shift + ReLU,
#   * epilogue: per-tile BatchNorm partials (sum, mean-shifted sum-of-squares).
# The 9-tap im2col operand is assembled in VMEM from a (tile_h + 2)-row halo.
# ----------------------------------------------------------------------------
def _make_conv_kernel(tile_h, w_out, fuse_bn):
    m_rows = tile_h * w_out
    inv_m = 1.0 / m_rows

    def kernel(*refs):
        if fuse_bn:
            (prev_ref, cur_ref, next_ref, scale_ref, shift_ref, w_ref,
             pre_ref, sum_ref, m2_ref) = refs
        else:
            prev_ref, cur_ref, next_ref, w_ref, pre_ref, sum_ref, m2_ref = refs

        i = pl.program_id(1)
        last = pl.num_programs(1) - 1

        def prologue(a):
            # Fused BN(scale/shift) + ReLU of the *previous* layer, f32 math.
            if fuse_bn:
                y = a.astype(jnp.float32) * scale_ref[...] + shift_ref[...]
                return jnp.maximum(y, 0.0).astype(jnp.bfloat16)
            return a

        prev = prologue(prev_ref[...])       # (1,      W, C)
        cur = prologue(cur_ref[...])         # (tile_h, W, C)
        nxt = prologue(next_ref[...])        # (1,      W, C)

        # Out-of-image halo rows are zero (conv zero padding, post-activation).
        prev = jnp.where(i > 0, prev, jnp.zeros_like(prev))
        nxt = jnp.where(i < last, nxt, jnp.zeros_like(nxt))

        # Zero-padded (tile_h + 2, W + 2, C) slab assembled in VMEM.
        slab = jnp.concatenate([prev, cur, nxt], axis=0)
        c = slab.shape[-1]
        zcol = jnp.zeros((tile_h + 2, 1, c), slab.dtype)
        slab = jnp.concatenate([zcol, slab, zcol], axis=1)

        # im2col in VMEM: 9 taps folded into K -> a single MXU matmul.
        taps = [slab[ky:ky + tile_h, kx:kx + w_out, :]
                for ky in range(3) for kx in range(3)]
        op = jnp.concatenate(taps, axis=-1).reshape(m_rows, 9 * c)

        acc = jnp.dot(op, w_ref[...], preferred_element_type=jnp.float32)

        # bf16 pre-BN activations: halves activation HBM traffic; BN stats below
        # are taken from the f32 accumulator so the normalization is unchanged.
        pre_ref[...] = acc.astype(jnp.bfloat16)[None]

        # Per-tile BatchNorm partials (single pass over the f32 accumulator).
        s = jnp.sum(acc, axis=0, keepdims=True)          # (1, Cout_pad)
        d = acc - s * inv_m                              # mean-shifted
        m2 = jnp.sum(d * d, axis=0, keepdims=True)       # (1, Cout_pad)
        sum_ref[...] = s[None]
        m2_ref[...] = m2[None]

    return kernel


def _conv_layer(x_nhwc, w_flat, scale, shift, cout_pad, fuse_bn):
    """One 3x3 conv (optionally fused with the previous layer's BN/ReLU)."""
    n, h, w, c = x_nhwc.shape
    k_dim = 9 * c
    assert w_flat.shape == (k_dim, cout_pad)

    tile_h = _pick_tile_h(h, w, n)
    nh_t = h // tile_h
    m_rows = tile_h * w
    n_tiles = n * nh_t

    in_specs = [
        # one-row halo above the tile (clamped; zeroed in-kernel at the border)
        pl.BlockSpec((pl.Squeezed(), 1, w, c),
                     lambda b, i: (b, jnp.maximum(i * tile_h - 1, 0), 0, 0)),
        # the tile itself (tile_h whole output rows)
        pl.BlockSpec((pl.Squeezed(), tile_h, w, c),
                     lambda b, i: (b, i, 0, 0)),
        # one-row halo below the tile
        pl.BlockSpec((pl.Squeezed(), 1, w, c),
                     lambda b, i: (b, jnp.minimum((i + 1) * tile_h, h - 1), 0, 0)),
    ]
    args = [x_nhwc, x_nhwc, x_nhwc]
    if fuse_bn:
        in_specs += [pl.BlockSpec((1, 1, c), lambda b, i: (0, 0, 0)),
                     pl.BlockSpec((1, 1, c), lambda b, i: (0, 0, 0))]
        args += [scale, shift]
    in_specs.append(pl.BlockSpec((k_dim, cout_pad), lambda b, i: (0, 0)))
    args.append(w_flat)

    out_shape = (
        jax.ShapeDtypeStruct((n_tiles, m_rows, cout_pad), jnp.bfloat16),
        jax.ShapeDtypeStruct((n_tiles, 1, cout_pad), jnp.float32),
        jax.ShapeDtypeStruct((n_tiles, 1, cout_pad), jnp.float32),
    )
    out_specs = (
        pl.BlockSpec((1, m_rows, cout_pad), lambda b, i: (b * nh_t + i, 0, 0)),
        pl.BlockSpec((1, 1, cout_pad), lambda b, i: (b * nh_t + i, 0, 0)),
        pl.BlockSpec((1, 1, cout_pad), lambda b, i: (b * nh_t + i, 0, 0)),
    )

    pre, tsum, tm2 = pl.pallas_call(
        _make_conv_kernel(tile_h, w, fuse_bn),
        out_shape=out_shape,
        grid=(n, nh_t),
        in_specs=in_specs,
        out_specs=out_specs,
        compiler_params=pltpu.CompilerParams(
            dimension_semantics=("parallel", "parallel"),
            vmem_limit_bytes=VMEM_LIMIT),
    )(*args)
    return pre, tsum, tm2, m_rows


# ----------------------------------------------------------------------------
# Standalone BN(scale/shift) + ReLU -- only needed for the LAST layer.
# ----------------------------------------------------------------------------
def _bn_relu_kernel(x_ref, scale_ref, shift_ref, o_ref):
    y = x_ref[...].astype(jnp.float32) * scale_ref[...] + shift_ref[...]
    o_ref[...] = jnp.maximum(y, 0.0)


def _bn_relu_apply(pre, scale, shift):
    n_tiles, m_rows, c = pre.shape
    return pl.pallas_call(
        _bn_relu_kernel,
        out_shape=jax.ShapeDtypeStruct((n_tiles, m_rows, c), jnp.float32),
        grid=(n_tiles,),
        in_specs=[pl.BlockSpec((1, m_rows, c), lambda t: (t, 0, 0)),
                  pl.BlockSpec((1, 1, c), lambda t: (0, 0, 0)),
                  pl.BlockSpec((1, 1, c), lambda t: (0, 0, 0))],
        out_specs=pl.BlockSpec((1, m_rows, c), lambda t: (t, 0, 0)),
        compiler_params=pltpu.CompilerParams(
            dimension_semantics=("parallel",),
            vmem_limit_bytes=VMEM_LIMIT),
    )(pre, scale, shift)


# ----------------------------------------------------------------------------
# Training-mode BatchNorm: Chan-style merge of per-tile partial statistics.
# (Only forward normalization; running_mean/var updates are not needed here.)
# ----------------------------------------------------------------------------
def _bn_scale_shift(tsum, tm2, gamma, beta, tile_count, total_count):
    tile_sum = tsum[:, 0, :]                               # (T, C)
    mean = jnp.sum(tile_sum, axis=0) / total_count         # (C,)
    tile_mean = tile_sum / tile_count
    m2 = (jnp.sum(tm2[:, 0, :], axis=0)
          + tile_count * jnp.sum((tile_mean - mean[None, :]) ** 2, axis=0))
    var = jnp.maximum(m2 / total_count, 0.0)                # biased, like PyTorch
    inv_std = jax.lax.rsqrt(var + BN_EPS)
    scale = gamma * inv_std
    shift = beta - mean * scale
    return scale.reshape(1, 1, -1), shift.reshape(1, 1, -1)


# ----------------------------------------------------------------------------
# Glue: 2x2 max-pool (stride 2), NHWC.  Requires even H, W (checked).
# ----------------------------------------------------------------------------
def maxpool2x2_nhwc(x):
    n, h, w, c = x.shape
    assert h % 2 == 0 and w % 2 == 0, "MaxPool2d(2) needs even H, W"
    return x.reshape(n, h // 2, 2, w // 2, 2, c).max(axis=(2, 4))


# ----------------------------------------------------------------------------
# Parameter init (deterministic, mimics PyTorch default inits).
# Conv bias is omitted: it is exactly cancelled by training-mode BN mean
# subtraction, so dropping it keeps the forward semantics.
# ----------------------------------------------------------------------------
def _init_layer_params(key, cin_true, cin_arr, cout_true):
    cout_pad = _round_up(cout_true, LANE)
    k_w, k_g, k_b = jax.random.split(key, 3)
    fan_in = cin_true * 9
    bound = 1.0 / (fan_in ** 0.5)
    w_real = jax.random.uniform(k_w, (3, 3, cin_true, cout_true), jnp.float32,
                                -bound, bound)
    # Channel-padded weight (padded rows/cols are zero); taps folded into K
    # (tap-major, cin inner) to match the in-kernel operand layout.
    w_full = jnp.zeros((3, 3, cin_arr, cout_pad), jnp.float32)
    w_full = w_full.at[:, :, :cin_true, :cout_true].set(w_real)
    w_flat = w_full.reshape(9 * cin_arr, cout_pad).astype(jnp.bfloat16)
    # BN affine params (perturbed so the affine path is actually exercised).
    gamma = 1.0 + 0.05 * jax.random.normal(k_g, (cout_true,), jnp.float32)
    beta = 0.05 * jax.random.normal(k_b, (cout_true,), jnp.float32)
    gamma = jnp.pad(gamma, (0, cout_pad - cout_true))
    beta = jnp.pad(beta, (0, cout_pad - cout_true))
    return dict(w_flat=w_flat, gamma=gamma, beta=beta,
                cout_true=cout_true, cout_pad=cout_pad)


def make_down_block_params(key, in_channels, out_channels, nb_conv):
    keys = jax.random.split(key, nb_conv)
    params = [_init_layer_params(keys[0], in_channels, in_channels, out_channels)]
    for i in range(1, nb_conv):
        prev_pad = params[-1]["cout_pad"]
        params.append(_init_layer_params(keys[i], out_channels, prev_pad,
                                         out_channels))
    return params


# ----------------------------------------------------------------------------
# DownBlock forward
# ----------------------------------------------------------------------------
def down_block_forward(x_nchw, params):
    """x_nchw: [N, Cin, H, W] -> [N, Cout, H//2, W//2] (NCHW, like PyTorch)."""
    x = jnp.transpose(x_nchw, (0, 2, 3, 1))          # NCHW -> NHWC (XLA glue)
    x = maxpool2x2_nhwc(x)                           # TODO(synk): fuse into conv DMA
    n, h, w, _ = x.shape
    total = n * h * w

    cur = x.astype(jnp.bfloat16)                     # MXU operand dtype
    scale = shift = None
    pre = None
    for li, p in enumerate(params):
        fuse = li > 0                # fuse previous layer's BN+ReLU into the conv
        pre, tsum, tm2, tile_count = _conv_layer(
            cur, p["w_flat"], scale, shift, p["cout_pad"], fuse)
        scale, shift = _bn_scale_shift(tsum, tm2, p["gamma"], p["beta"],
                                       tile_count, total)
        cur = pre.reshape(n, h, w, p["cout_pad"])    # free reshape, bf16 in HBM

    y = _bn_relu_apply(pre, scale, shift)            # last layer's BN + ReLU, f32
    y = y.reshape(n, h, w, params[-1]["cout_pad"])[:, :, :, :params[-1]["cout_true"]]
    return jnp.transpose(y, (0, 3, 1, 2))            # NHWC -> NCHW


if __name__ == "__main__":
    # DownBlock(in_channels=4, out_channels=8, nb_Conv=2) on a small input.
    N, CIN, H, W = 2, 4, 16, 16
    COUT, NB_CONV = 8, 2

    key = jax.random.PRNGKey(0)
    k_x, k_p = jax.random.split(key)
    x = jax.random.normal(k_x, (N, CIN, H, W), jnp.float32)

    params = make_down_block_params(k_p, CIN, COUT, NB_CONV)

    fwd = jax.jit(functools.partial(down_block_forward, params=params))
    out = jax.block_until_ready(fwd(x))

    assert out.shape == (N, COUT, H // 2, W // 2), out.shape
    assert bool(jnp.all(out >= 0.0))   # ReLU output
    assert bool(jnp.all(jnp.isfinite(out)))
    print("KERNEL_OK")
</pallas_src>

<mosaic_0001>
module attributes {stable_mosaic.version = 11 : i64} {
  func.func @kernel(%arg0: i32, %arg1: i32, %arg2: memref<1x1x8x4xbf16, #tpu.memory_space<vmem>>, %arg3: memref<1x8x8x4xbf16, #tpu.memory_space<vmem>>, %arg4: memref<1x1x8x4xbf16, #tpu.memory_space<vmem>>, %arg5: memref<36x128xbf16, #tpu.memory_space<vmem>>, %arg6: memref<1x64x128xbf16, #tpu.memory_space<vmem>>, %arg7: memref<1x1x128xf32, #tpu.memory_space<vmem>>, %arg8: memref<1x1x128xf32, #tpu.memory_space<vmem>>) attributes {dimension_semantics = [#tpu.dimension_semantics<parallel>, #tpu.dimension_semantics<parallel>], iteration_bounds = array<i64: 2, 1>, scalar_prefetch = 0 : i64, scratch_operands = 0 : i64, tpu.core_type = #tpu.core_type<tc>, window_params = [{transform_indices = @transform_0, window_bounds = array<i64: 1, 1, 8, 4>}, {transform_indices = @transform_1, window_bounds = array<i64: 1, 8, 8, 4>}, {transform_indices = @transform_2, window_bounds = array<i64: 1, 1, 8, 4>}, {pipeline_mode = #tpu.pipeline_mode<synchronous>, transform_indices = @transform_3, window_bounds = array<i64: 36, 128>}, {transform_indices = @transform_4, window_bounds = array<i64: 1, 64, 128>}, {transform_indices = @transform_5, window_bounds = array<i64: 1, 1, 128>}, {transform_indices = @transform_6, window_bounds = array<i64: 1, 1, 128>}]} {
    %c0 = arith.constant 0 : index
    %c0_0 = arith.constant 0 : index
    %c0_1 = arith.constant 0 : index
    %c0_2 = arith.constant 0 : index
    %0 = vector.load %arg2[%c0, %c0_0, %c0_1, %c0_2] : memref<1x1x8x4xbf16, #tpu.memory_space<vmem>>, vector<1x1x8x4xbf16>
    %1 = vector.shape_cast %0 : vector<1x1x8x4xbf16> to vector<1x8x4xbf16>
    %c0_3 = arith.constant 0 : index
    %c0_4 = arith.constant 0 : index
    %c0_5 = arith.constant 0 : index
    %c0_6 = arith.constant 0 : index
    %2 = vector.load %arg3[%c0_3, %c0_4, %c0_5, %c0_6] : memref<1x8x8x4xbf16, #tpu.memory_space<vmem>>, vector<1x8x8x4xbf16>
    %3 = vector.shape_cast %2 : vector<1x8x8x4xbf16> to vector<8x8x4xbf16>
    %c0_7 = arith.constant 0 : index
    %c0_8 = arith.constant 0 : index
    %c0_9 = arith.constant 0 : index
    %c0_10 = arith.constant 0 : index
    %4 = vector.load %arg4[%c0_7, %c0_8, %c0_9, %c0_10] : memref<1x1x8x4xbf16, #tpu.memory_space<vmem>>, vector<1x1x8x4xbf16>
    %5 = vector.shape_cast %4 : vector<1x1x8x4xbf16> to vector<1x8x4xbf16>
    %c0_i32 = arith.constant 0 : i32
    %6 = arith.cmpi sgt, %arg1, %c0_i32 : i32
    %cst = arith.constant 0.000000e+00 : bf16
    %7 = vector.broadcast %cst : bf16 to vector<1x8x4xbf16>
    %8 = arith.select %6, %1, %7 : vector<1x8x4xbf16>
    %c0_i32_11 = arith.constant 0 : i32
    %9 = arith.cmpi slt, %arg1, %c0_i32_11 : i32
    %cst_12 = arith.constant 0.000000e+00 : bf16
    %10 = vector.broadcast %cst_12 : bf16 to vector<1x8x4xbf16>
    %11 = arith.select %9, %5, %10 : vector<1x8x4xbf16>
    %12 = tpu.concatenate %8, %3, %11 in 0 : vector<1x8x4xbf16>, vector<8x8x4xbf16>, vector<1x8x4xbf16> -> vector<10x8x4xbf16>
    %cst_13 = arith.constant 0.000000e+00 : bf16
    %13 = vector.broadcast %cst_13 : bf16 to vector<10x1x4xbf16>
    %14 = tpu.concatenate %13, %12, %13 in 1 : vector<10x1x4xbf16>, vector<10x8x4xbf16>, vector<10x1x4xbf16> -> vector<10x10x4xbf16>
    %15 = vector.extract_strided_slice %14 {offsets = [0, 0, 0], sizes = [8, 8, 4], strides = [1, 1, 1]} : vector<10x10x4xbf16> to vector<8x8x4xbf16>
    %16 = vector.extract_strided_slice %14 {offsets = [0, 1, 0], sizes = [8, 8, 4], strides = [1, 1, 1]} : vector<10x10x4xbf16> to vector<8x8x4xbf16>
    %17 = vector.extract_strided_slice %14 {offsets = [0, 2, 0], sizes = [8, 8, 4], strides = [1, 1, 1]} : vector<10x10x4xbf16> to vector<8x8x4xbf16>
    %18 = vector.extract_strided_slice %14 {offsets = [1, 0, 0], sizes = [8, 8, 4], strides = [1, 1, 1]} : vector<10x10x4xbf16> to vector<8x8x4xbf16>
    %19 = vector.extract_strided_slice %14 {offsets = [1, 1, 0], sizes = [8, 8, 4], strides = [1, 1, 1]} : vector<10x10x4xbf16> to vector<8x8x4xbf16>
    %20 = vector.extract_strided_slice %14 {offsets = [1, 2, 0], sizes = [8, 8, 4], strides = [1, 1, 1]} : vector<10x10x4xbf16> to vector<8x8x4xbf16>
    %21 = vector.extract_strided_slice %14 {offsets = [2, 0, 0], sizes = [8, 8, 4], strides = [1, 1, 1]} : vector<10x10x4xbf16> to vector<8x8x4xbf16>
    %22 = vector.extract_strided_slice %14 {offsets = [2, 1, 0], sizes = [8, 8, 4], strides = [1, 1, 1]} : vector<10x10x4xbf16> to vector<8x8x4xbf16>
    %23 = vector.extract_strided_slice %14 {offsets = [2, 2, 0], sizes = [8, 8, 4], strides = [1, 1, 1]} : vector<10x10x4xbf16> to vector<8x8x4xbf16>
    %24 = tpu.concatenate %15, %16, %17, %18, %19, %20, %21, %22, %23 in 2 : vector<8x8x4xbf16>, vector<8x8x4xbf16>, vector<8x8x4xbf16>, vector<8x8x4xbf16>, vector<8x8x4xbf16>, vector<8x8x4xbf16>, vector<8x8x4xbf16>, vector<8x8x4xbf16>, vector<8x8x4xbf16> -> vector<8x8x36xbf16>
    %25 = vector.shape_cast %24 : vector<8x8x36xbf16> to vector<64x36xbf16>
    %c0_14 = arith.constant 0 : index
    %c0_15 = arith.constant 0 : index
    %26 = vector.load %arg5[%c0_14, %c0_15] : memref<36x128xbf16, #tpu.memory_space<vmem>>, vector<36x128xbf16>
    %cst_16 = arith.constant dense<0.000000e+00> : vector<64x128xf32>
    %27 = tpu.matmul %25, %26, %cst_16 {dimension_numbers = #tpu.dot_dimension_numbers<[1], [0], [0], [1], [0, 0, 1, 1], [], []>} : vector<64x36xbf16>, vector<36x128xbf16>, vector<64x128xf32> -> vector<64x128xf32>
    %28 = arith.truncf %27 : vector<64x128xf32> to vector<64x128xbf16>
    %29 = vector.shape_cast %28 : vector<64x128xbf16> to vector<1x64x128xbf16>
    %c0_17 = arith.constant 0 : index
    %c0_18 = arith.constant 0 : index
    %c0_19 = arith.constant 0 : index
    %30 = vector.load %arg6[%c0_17, %c0_18, %c0_19] : memref<1x64x128xbf16, #tpu.memory_space<vmem>>, vector<1x64x128xbf16>
    tpu.vector_store %arg6[%c0_17, %c0_18, %c0_19], %29 {strides = array<i32>} : memref<1x64x128xbf16, #tpu.memory_space<vmem>>, vector<1x64x128xbf16>,
    %cst_20 = arith.constant dense<0.000000e+00> : vector<128xf32>
    %31 = vector.multi_reduction <add>, %27, %cst_20 [0] : vector<64x128xf32> to vector<128xf32>
    %32 = vector.shape_cast %31 : vector<128xf32> to vector<1x128xf32>
    %cst_21 = arith.constant 1.562500e-02 : f32
    %33 = vector.broadcast %cst_21 : f32 to vector<1x128xf32>
    %34 = arith.mulf %32, %33 : vector<1x128xf32>
    %35 = vector.broadcast %34 : vector<1x128xf32> to vector<64x128xf32>
    %36 = arith.subf %27, %35 : vector<64x128xf32>
    %37 = arith.mulf %36, %36 : vector<64x128xf32>
    %cst_22 = arith.constant dense<0.000000e+00> : vector<128xf32>
    %38 = vector.multi_reduction <add>, %37, %cst_22 [0] : vector<64x128xf32> to vector<128xf32>
    %39 = vector.shape_cast %38 : vector<128xf32> to vector<1x128xf32>
    %40 = vector.shape_cast %32 : vector<1x128xf32> to vector<1x1x128xf32>
    %c0_23 = arith.constant 0 : index
    %c0_24 = arith.constant 0 : index
    %c0_25 = arith.constant 0 : index
    %41 = vector.load %arg7[%c0_23, %c0_24, %c0_25] : memref<1x1x128xf32, #tpu.memory_space<vmem>>, vector<1x1x128xf32>
    tpu.vector_store %arg7[%c0_23, %c0_24, %c0_25], %40 {strides = array<i32>} : memref<1x1x128xf32, #tpu.memory_space<vmem>>, vector<1x1x128xf32>,
    %42 = vector.shape_cast %39 : vector<1x128xf32> to vector<1x1x128xf32>
    %c0_26 = arith.constant 0 : index
    %c0_27 = arith.constant 0 : index
    %c0_28 = arith.constant 0 : index
    %43 = vector.load %arg8[%c0_26, %c0_27, %c0_28] : memref<1x1x128xf32, #tpu.memory_space<vmem>>, vector<1x1x128xf32>
    tpu.vector_store %arg8[%c0_26, %c0_27, %c0_28], %42 {strides = array<i32>} : memref<1x1x128xf32, #tpu.memory_space<vmem>>, vector<1x1x128xf32>,
    return
  }
  func.func @transform_0(%arg0: i32, %arg1: i32) -> (i32, i32, i32, i32) {
    %c8_i32 = arith.constant 8 : i32
    %0 = arith.muli %arg1, %c8_i32 : i32
    %c1_i32 = arith.constant 1 : i32
    %1 = arith.subi %0, %c1_i32 : i32
    %c0_i32 = arith.constant 0 : i32
    %2 = arith.maxsi %1, %c0_i32 : i32
    %c0_i32_0 = arith.constant 0 : i32
    %c0_i32_1 = arith.constant 0 : i32
    %c0_i32_2 = arith.constant 0 : i32
    return %arg0, %2, %c0_i32_0, %c0_i32_1 : i32, i32, i32, i32
  }
  func.func @transform_1(%arg0: i32, %arg1: i32) -> (i32, i32, i32, i32) {
    %c0_i32 = arith.constant 0 : i32
    %c0_i32_0 = arith.constant 0 : i32
    %c0_i32_1 = arith.constant 0 : i32
    return %arg0, %arg1, %c0_i32, %c0_i32_0 : i32, i32, i32, i32
  }
  func.func @transform_2(%arg0: i32, %arg1: i32) -> (i32, i32, i32, i32) {
    %c1_i32 = arith.constant 1 : i32
    %0 = arith.addi %arg1, %c1_i32 : i32
    %c8_i32 = arith.constant 8 : i32
    %1 = arith.muli %0, %c8_i32 : i32
    %c7_i32 = arith.constant 7 : i32
    %2 = arith.minsi %1, %c7_i32 : i32
    %c0_i32 = arith.constant 0 : i32
    %c0_i32_0 = arith.constant 0 : i32
    %c0_i32_1 = arith.constant 0 : i32
    return %arg0, %2, %c0_i32, %c0_i32_0 : i32, i32, i32, i32
  }
  func.func @transform_3(%arg0: i32, %arg1: i32) -> (i32, i32) {
    %c0_i32 = arith.constant 0 : i32
    %c0_i32_0 = arith.constant 0 : i32
    %c0_i32_1 = arith.constant 0 : i32
    return %c0_i32, %c0_i32_0 : i32, i32
  }
  func.func @transform_4(%arg0: i32, %arg1: i32) -> (i32, i32, i32) {
    %c1_i32 = arith.constant 1 : i32
    %0 = arith.muli %arg0, %c1_i32 : i32
    %1 = arith.addi %0, %arg1 : i32
    %c0_i32 = arith.constant 0 : i32
    %c0_i32_0 = arith.constant 0 : i32
    %c0_i32_1 = arith.constant 0 : i32
    return %1, %c0_i32, %c0_i32_0 : i32, i32, i32
  }
  func.func @transform_5(%arg0: i32, %arg1: i32) -> (i32, i32, i32) {
    %c1_i32 = arith.constant 1 : i32
    %0 = arith.muli %arg0, %c1_i32 : i32
    %1 = arith.addi %0, %arg1 : i32
    %c0_i32 = arith.constant 0 : i32
    %c0_i32_0 = arith.constant 0 : i32
    %c0_i32_1 = arith.constant 0 : i32
    return %1, %c0_i32, %c0_i32_0 : i32, i32, i32
  }
  func.func @transform_6(%arg0: i32, %arg1: i32) -> (i32, i32, i32) {
    %c1_i32 = arith.constant 1 : i32
    %0 = arith.muli %arg0, %c1_i32 : i32
    %1 = arith.addi %0, %arg1 : i32
    %c0_i32 = arith.constant 0 : i32
    %c0_i32_0 = arith.constant 0 : i32
    %c0_i32_1 = arith.constant 0 : i32
    return %1, %c0_i32, %c0_i32_0 : i32, i32, i32
  }
}

module attributes {stable_mosaic.version = 11 : i64} {
  func.func @_bn_relu_kernel(%arg0: i32, %arg1: memref<1x64x128xbf16, #tpu.memory_space<vmem>>, %arg2: memref<1x1x128xf32, #tpu.memory_space<vmem>>, %arg3: memref<1x1x128xf32, #tpu.memory_space<vmem>>, %arg4: memref<1x64x128xf32, #tpu.memory_space<vmem>>) attributes {dimension_semantics = [#tpu.dimension_semantics<parallel>], iteration_bounds = array<i64: 2>, scalar_prefetch = 0 : i64, scratch_operands = 0 : i64, tpu.core_type = #tpu.core_type<tc>, window_params = [{transform_indices = @transform_0, window_bounds = array<i64: 1, 64, 128>}, {pipeline_mode = #tpu.pipeline_mode<synchronous>, transform_indices = @transform_1, window_bounds = array<i64: 1, 1, 128>}, {pipeline_mode = #tpu.pipeline_mode<synchronous>, transform_indices = @transform_2, window_bounds = array<i64: 1, 1, 128>}, {transform_indices = @transform_3, window_bounds = array<i64: 1, 64, 128>}]} {
    %c0 = arith.constant 0 : index
    %c0_0 = arith.constant 0 : index
    %c0_1 = arith.constant 0 : index
    %0 = vector.load %arg1[%c0, %c0_0, %c0_1] : memref<1x64x128xbf16, #tpu.memory_space<vmem>>, vector<1x64x128xbf16>
    %1 = arith.extf %0 : vector<1x64x128xbf16> to vector<1x64x128xf32>
    %c0_2 = arith.constant 0 : index
    %c0_3 = arith.constant 0 : index
    %c0_4 = arith.constant 0 : index
    %2 = vector.load %arg2[%c0_2, %c0_3, %c0_4] : memref<1x1x128xf32, #tpu.memory_space<vmem>>, vector<1x1x128xf32>
    %3 = vector.broadcast %2 : vector<1x1x128xf32> to vector<1x64x128xf32>
    %4 = arith.mulf %1, %3 : vector<1x64x128xf32>
    %c0_5 = arith.constant 0 : index
    %c0_6 = arith.constant 0 : index
    %c0_7 = arith.constant 0 : index
    %5 = vector.load %arg3[%c0_5, %c0_6, %c0_7] : memref<1x1x128xf32, #tpu.memory_space<vmem>>, vector<1x1x128xf32>
    %6 = vector.broadcast %5 : vector<1x1x128xf32> to vector<1x64x128xf32>
    %7 = arith.addf %4, %6 : vector<1x64x128xf32>
    %cst = arith.constant 0.000000e+00 : f32
    %8 = vector.broadcast %cst : f32 to vector<1x64x128xf32>
    %9 = arith.maximumf %7, %8 : vector<1x64x128xf32>
    %c0_8 = arith.constant 0 : index
    %c0_9 = arith.constant 0 : index
    %c0_10 = arith.constant 0 : index
    %10 = vector.load %arg4[%c0_8, %c0_9, %c0_10] : memref<1x64x128xf32, #tpu.memory_space<vmem>>, vector<1x64x128xf32>
    tpu.vector_store %arg4[%c0_8, %c0_9, %c0_10], %9 {strides = array<i32>} : memref<1x64x128xf32, #tpu.memory_space<vmem>>, vector<1x64x128xf32>,
    return
  }
  func.func @transform_0(%arg0: i32) -> (i32, i32, i32) {
    %c0_i32 = arith.constant 0 : i32
    %c0_i32_0 = arith.constant 0 : i32
    %c0_i32_1 = arith.constant 0 : i32
    return %arg0, %c0_i32, %c0_i32_0 : i32, i32, i32
  }
  func.func @transform_1(%arg0: i32) -> (i32, i32, i32) {
    %c0_i32 = arith.constant 0 : i32
    %c0_i32_0 = arith.constant 0 : i32
    %c0_i32_1 = arith.constant 0 : i32
    %c0_i32_2 = arith.constant 0 : i32
    return %c0_i32, %c0_i32_0, %c0_i32_1 : i32, i32, i32
  }
  func.func @transform_2(%arg0: i32) -> (i32, i32, i32) {
    %c0_i32 = arith.constant 0 : i32
    %c0_i32_0 = arith.constant 0 : i32
    %c0_i32_1 = arith.constant 0 : i32
    %c0_i32_2 = arith.constant 0 : i32
    return %c0_i32, %c0_i32_0, %c0_i32_1 : i32, i32, i32
  }
  func.func @transform_3(%arg0: i32) -> (i32, i32, i32) {
    %c0_i32 = arith.constant 0 : i32
    %c0_i32_0 = arith.constant 0 : i32
    %c0_i32_1 = arith.constant 0 : i32
    return %arg0, %c0_i32, %c0_i32_0 : i32, i32, i32
  }
}

module attributes {stable_mosaic.version = 11 : i64} {
  func.func @kernel(%arg0: i32, %arg1: i32, %arg2: memref<1x1x8x128xbf16, #tpu.memory_space<vmem>>, %arg3: memref<1x8x8x128xbf16, #tpu.memory_space<vmem>>, %arg4: memref<1x1x8x128xbf16, #tpu.memory_space<vmem>>, %arg5: memref<1x1x128xf32, #tpu.memory_space<vmem>>, %arg6: memref<1x1x128xf32, #tpu.memory_space<vmem>>, %arg7: memref<1152x128xbf16, #tpu.memory_space<vmem>>, %arg8: memref<1x64x128xbf16, #tpu.memory_space<vmem>>, %arg9: memref<1x1x128xf32, #tpu.memory_space<vmem>>, %arg10: memref<1x1x128xf32, #tpu.memory_space<vmem>>) attributes {dimension_semantics = [#tpu.dimension_semantics<parallel>, #tpu.dimension_semantics<parallel>], iteration_bounds = array<i64: 2, 1>, scalar_prefetch = 0 : i64, scratch_operands = 0 : i64, tpu.core_type = #tpu.core_type<tc>, window_params = [{transform_indices = @transform_0, window_bounds = array<i64: 1, 1, 8, 128>}, {transform_indices = @transform_1, window_bounds = array<i64: 1, 8, 8, 128>}, {transform_indices = @transform_2, window_bounds = array<i64: 1, 1, 8, 128>}, {pipeline_mode = #tpu.pipeline_mode<synchronous>, transform_indices = @transform_3, window_bounds = array<i64: 1, 1, 128>}, {pipeline_mode = #tpu.pipeline_mode<synchronous>, transform_indices = @transform_4, window_bounds = array<i64: 1, 1, 128>}, {pipeline_mode = #tpu.pipeline_mode<synchronous>, transform_indices = @transform_5, window_bounds = array<i64: 1152, 128>}, {transform_indices = @transform_6, window_bounds = array<i64: 1, 64, 128>}, {transform_indices = @transform_7, window_bounds = array<i64: 1, 1, 128>}, {transform_indices = @transform_8, window_bounds = array<i64: 1, 1, 128>}]} {
    %c0 = arith.constant 0 : index
    %c0_0 = arith.constant 0 : index
    %c0_1 = arith.constant 0 : index
    %c0_2 = arith.constant 0 : index
    %0 = vector.load %arg2[%c0, %c0_0, %c0_1, %c0_2] : memref<1x1x8x128xbf16, #tpu.memory_space<vmem>>, vector<1x1x8x128xbf16>
    %1 = vector.shape_cast %0 : vector<1x1x8x128xbf16> to vector<1x8x128xbf16>
    %2 = arith.extf %1 : vector<1x8x128xbf16> to vector<1x8x128xf32>
    %c0_3 = arith.constant 0 : index
    %c0_4 = arith.constant 0 : index
    %c0_5 = arith.constant 0 : index
    %3 = vector.load %arg5[%c0_3, %c0_4, %c0_5] : memref<1x1x128xf32, #tpu.memory_space<vmem>>, vector<1x1x128xf32>
    %4 = vector.broadcast %3 : vector<1x1x128xf32> to vector<1x8x128xf32>
    %5 = arith.mulf %2, %4 : vector<1x8x128xf32>
    %c0_6 = arith.constant 0 : index
    %c0_7 = arith.constant 0 : index
    %c0_8 = arith.constant 0 : index
    %6 = vector.load %arg6[%c0_6, %c0_7, %c0_8] : memref<1x1x128xf32, #tpu.memory_space<vmem>>, vector<1x1x128xf32>
    %7 = vector.broadcast %6 : vector<1x1x128xf32> to vector<1x8x128xf32>
    %8 = arith.addf %5, %7 : vector<1x8x128xf32>
    %cst = arith.constant 0.000000e+00 : f32
    %9 = vector.broadcast %cst : f32 to vector<1x8x128xf32>
    %10 = arith.maximumf %8, %9 : vector<1x8x128xf32>
    %11 = arith.truncf %10 : vector<1x8x128xf32> to vector<1x8x128xbf16>
    %c0_9 = arith.constant 0 : index
    %c0_10 = arith.constant 0 : index
    %c0_11 = arith.constant 0 : index
    %c0_12 = arith.constant 0 : index
    %12 = vector.load %arg3[%c0_9, %c0_10, %c0_11, %c0_12] : memref<1x8x8x128xbf16, #tpu.memory_space<vmem>>, vector<1x8x8x128xbf16>
    %13 = vector.shape_cast %12 : vector<1x8x8x128xbf16> to vector<8x8x128xbf16>
    %14 = arith.extf %13 : vector<8x8x128xbf16> to vector<8x8x128xf32>
    %c0_13 = arith.constant 0 : index
    %c0_14 = arith.constant 0 : index
    %c0_15 = arith.constant 0 : index
    %15 = vector.load %arg5[%c0_13, %c0_14, %c0_15] : memref<1x1x128xf32, #tpu.memory_space<vmem>>, vector<1x1x128xf32>
    %16 = vector.broadcast %15 : vector<1x1x128xf32> to vector<8x8x128xf32>
    %17 = arith.mulf %14, %16 : vector<8x8x128xf32>
    %c0_16 = arith.constant 0 : index
    %c0_17 = arith.constant 0 : index
    %c0_18 = arith.constant 0 : index
    %18 = vector.load %arg6[%c0_16, %c0_17, %c0_18] : memref<1x1x128xf32, #tpu.memory_space<vmem>>, vector<1x1x128xf32>
    %19 = vector.broadcast %18 : vector<1x1x128xf32> to vector<8x8x128xf32>
    %20 = arith.addf %17, %19 : vector<8x8x128xf32>
    %cst_19 = arith.constant 0.000000e+00 : f32
    %21 = vector.broadcast %cst_19 : f32 to vector<8x8x128xf32>
    %22 = arith.maximumf %20, %21 : vector<8x8x128xf32>
    %23 = arith.truncf %22 : vector<8x8x128xf32> to vector<8x8x128xbf16>
    %c0_20 = arith.constant 0 : index
    %c0_21 = arith.constant 0 : index
    %c0_22 = arith.constant 0 : index
    %c0_23 = arith.constant 0 : index
    %24 = vector.load %arg4[%c0_20, %c0_21, %c0_22, %c0_23] : memref<1x1x8x128xbf16, #tpu.memory_space<vmem>>, vector<1x1x8x128xbf16>
    %25 = vector.shape_cast %24 : vector<1x1x8x128xbf16> to vector<1x8x128xbf16>
    %26 = arith.extf %25 : vector<1x8x128xbf16> to vector<1x8x128xf32>
    %c0_24 = arith.constant 0 : index
    %c0_25 = arith.constant 0 : index
    %c0_26 = arith.constant 0 : index
    %27 = vector.load %arg5[%c0_24, %c0_25, %c0_26] : memref<1x1x128xf32, #tpu.memory_space<vmem>>, vector<1x1x128xf32>
    %28 = vector.broadcast %27 : vector<1x1x128xf32> to vector<1x8x128xf32>
    %29 = arith.mulf %26, %28 : vector<1x8x128xf32>
    %c0_27 = arith.constant 0 : index
    %c0_28 = arith.constant 0 : index
    %c0_29 = arith.constant 0 : index
    %30 = vector.load %arg6[%c0_27, %c0_28, %c0_29] : memref<1x1x128xf32, #tpu.memory_space<vmem>>, vector<1x1x128xf32>
    %31 = vector.broadcast %30 : vector<1x1x128xf32> to vector<1x8x128xf32>
    %32 = arith.addf %29, %31 : vector<1x8x128xf32>
    %cst_30 = arith.constant 0.000000e+00 : f32
    %33 = vector.broadcast %cst_30 : f32 to vector<1x8x128xf32>
    %34 = arith.maximumf %32, %33 : vector<1x8x128xf32>
    %35 = arith.truncf %34 : vector<1x8x128xf32> to vector<1x8x128xbf16>
    %c0_i32 = arith.constant 0 : i32
    %36 = arith.cmpi sgt, %arg1, %c0_i32 : i32
    %cst_31 = arith.constant 0.000000e+00 : bf16
    %37 = vector.broadcast %cst_31 : bf16 to vector<1x8x128xbf16>
    %38 = arith.select %36, %11, %37 : vector<1x8x128xbf16>
    %c0_i32_32 = arith.constant 0 : i32
    %39 = arith.cmpi slt, %arg1, %c0_i32_32 : i32
    %cst_33 = arith.constant 0.000000e+00 : bf16
    %40 = vector.broadcast %cst_33 : bf16 to vector<1x8x128xbf16>
    %41 = arith.select %39, %35, %40 : vector<1x8x128xbf16>
    %42 = tpu.concatenate %38, %23, %41 in 0 : vector<1x8x128xbf16>, vector<8x8x128xbf16>, vector<1x8x128xbf16> -> vector<10x8x128xbf16>
    %cst_34 = arith.constant 0.000000e+00 : bf16
    %43 = vector.broadcast %cst_34 : bf16 to vector<10x1x128xbf16>
    %44 = tpu.concatenate %43, %42, %43 in 1 : vector<10x1x128xbf16>, vector<10x8x128xbf16>, vector<10x1x128xbf16> -> vector<10x10x128xbf16>
    %45 = vector.extract_strided_slice %44 {offsets = [0, 0, 0], sizes = [8, 8, 128], strides = [1, 1, 1]} : vector<10x10x128xbf16> to vector<8x8x128xbf16>
    %46 = vector.extract_strided_slice %44 {offsets = [0, 1, 0], sizes = [8, 8, 128], strides = [1, 1, 1]} : vector<10x10x128xbf16> to vector<8x8x128xbf16>
    %47 = vector.extract_strided_slice %44 {offsets = [0, 2, 0], sizes = [8, 8, 128], strides = [1, 1, 1]} : vector<10x10x128xbf16> to vector<8x8x128xbf16>
    %48 = vector.extract_strided_slice %44 {offsets = [1, 0, 0], sizes = [8, 8, 128], strides = [1, 1, 1]} : vector<10x10x128xbf16> to vector<8x8x128xbf16>
    %49 = vector.extract_strided_slice %44 {offsets = [1, 1, 0], sizes = [8, 8, 128], strides = [1, 1, 1]} : vector<10x10x128xbf16> to vector<8x8x128xbf16>
    %50 = vector.extract_strided_slice %44 {offsets = [1, 2, 0], sizes = [8, 8, 128], strides = [1, 1, 1]} : vector<10x10x128xbf16> to vector<8x8x128xbf16>
    %51 = vector.extract_strided_slice %44 {offsets = [2, 0, 0], sizes = [8, 8, 128], strides = [1, 1, 1]} : vector<10x10x128xbf16> to vector<8x8x128xbf16>
    %52 = vector.extract_strided_slice %44 {offsets = [2, 1, 0], sizes = [8, 8, 128], strides = [1, 1, 1]} : vector<10x10x128xbf16> to vector<8x8x128xbf16>
    %53 = vector.extract_strided_slice %44 {offsets = [2, 2, 0], sizes = [8, 8, 128], strides = [1, 1, 1]} : vector<10x10x128xbf16> to vector<8x8x128xbf16>
    %54 = tpu.concatenate %45, %46, %47, %48, %49, %50, %51, %52, %53 in 2 : vector<8x8x128xbf16>, vector<8x8x128xbf16>, vector<8x8x128xbf16>, vector<8x8x128xbf16>, vector<8x8x128xbf16>, vector<8x8x128xbf16>, vector<8x8x128xbf16>, vector<8x8x128xbf16>, vector<8x8x128xbf16> -> vector<8x8x1152xbf16>
    %55 = vector.shape_cast %54 : vector<8x8x1152xbf16> to vector<64x1152xbf16>
    %c0_35 = arith.constant 0 : index
    %c0_36 = arith.constant 0 : index
    %56 = vector.load %arg7[%c0_35, %c0_36] : memref<1152x128xbf16, #tpu.memory_space<vmem>>, vector<1152x128xbf16>
    %cst_37 = arith.constant dense<0.000000e+00> : vector<64x128xf32>
    %57 = tpu.matmul %55, %56, %cst_37 {dimension_numbers = #tpu.dot_dimension_numbers<[1], [0], [0], [1], [0, 0, 1, 1], [], []>} : vector<64x1152xbf16>, vector<1152x128xbf16>, vector<64x128xf32> -> vector<64x128xf32>
    %58 = arith.truncf %57 : vector<64x128xf32> to vector<64x128xbf16>
    %59 = vector.shape_cast %58 : vector<64x128xbf16> to vector<1x64x128xbf16>
    %c0_38 = arith.constant 0 : index
    %c0_39 = arith.constant 0 : index
    %c0_40 = arith.constant 0 : index
    %60 = vector.load %arg8[%c0_38, %c0_39, %c0_40] : memref<1x64x128xbf16, #tpu.memory_space<vmem>>, vector<1x64x128xbf16>
    tpu.vector_store %arg8[%c0_38, %c0_39, %c0_40], %59 {strides = array<i32>} : memref<1x64x128xbf16, #tpu.memory_space<vmem>>, vector<1x64x128xbf16>,
    %cst_41 = arith.constant dense<0.000000e+00> : vector<128xf32>
    %61 = vector.multi_reduction <add>, %57, %cst_41 [0] : vector<64x128xf32> to vector<128xf32>
    %62 = vector.shape_cast %61 : vector<128xf32> to vector<1x128xf32>
    %cst_42 = arith.constant 1.562500e-02 : f32
    %63 = vector.broadcast %cst_42 : f32 to vector<1x128xf32>
    %64 = arith.mulf %62, %63 : vector<1x128xf32>
    %65 = vector.broadcast %64 : vector<1x128xf32> to vector<64x128xf32>
    %66 = arith.subf %57, %65 : vector<64x128xf32>
    %67 = arith.mulf %66, %66 : vector<64x128xf32>
    %cst_43 = arith.constant dense<0.000000e+00> : vector<128xf32>
    %68 = vector.multi_reduction <add>, %67, %cst_43 [0] : vector<64x128xf32> to vector<128xf32>
    %69 = vector.shape_cast %68 : vector<128xf32> to vector<1x128xf32>
    %70 = vector.shape_cast %62 : vector<1x128xf32> to vector<1x1x128xf32>
    %c0_44 = arith.constant 0 : index
    %c0_45 = arith.constant 0 : index
    %c0_46 = arith.constant 0 : index
    %71 = vector.load %arg9[%c0_44, %c0_45, %c0_46] : memref<1x1x128xf32, #tpu.memory_space<vmem>>, vector<1x1x128xf32>
    tpu.vector_store %arg9[%c0_44, %c0_45, %c0_46], %70 {strides = array<i32>} : memref<1x1x128xf32, #tpu.memory_space<vmem>>, vector<1x1x128xf32>,
    %72 = vector.shape_cast %69 : vector<1x128xf32> to vector<1x1x128xf32>
    %c0_47 = arith.constant 0 : index
    %c0_48 = arith.constant 0 : index
    %c0_49 = arith.constant 0 : index
    %73 = vector.load %arg10[%c0_47, %c0_48, %c0_49] : memref<1x1x128xf32, #tpu.memory_space<vmem>>, vector<1x1x128xf32>
    tpu.vector_store %arg10[%c0_47, %c0_48, %c0_49], %72 {strides = array<i32>} : memref<1x1x128xf32, #tpu.memory_space<vmem>>, vector<1x1x128xf32>,
    return
  }
  func.func @transform_0(%arg0: i32, %arg1: i32) -> (i32, i32, i32, i32) {
    %c8_i32 = arith.constant 8 : i32
    %0 = arith.muli %arg1, %c8_i32 : i32
    %c1_i32 = arith.constant 1 : i32
    %1 = arith.subi %0, %c1_i32 : i32
    %c0_i32 = arith.constant 0 : i32
    %2 = arith.maxsi %1, %c0_i32 : i32
    %c0_i32_0 = arith.constant 0 : i32
    %c0_i32_1 = arith.constant 0 : i32
    %c0_i32_2 = arith.constant 0 : i32
    return %arg0, %2, %c0_i32_0, %c0_i32_1 : i32, i32, i32, i32
  }
  func.func @transform_1(%arg0: i32, %arg1: i32) -> (i32, i32, i32, i32) {
    %c0_i32 = arith.constant 0 : i32
    %c0_i32_0 = arith.constant 0 : i32
    %c0_i32_1 = arith.constant 0 : i32
    return %arg0, %arg1, %c0_i32, %c0_i32_0 : i32, i32, i32, i32
  }
  func.func @transform_2(%arg0: i32, %arg1: i32) -> (i32, i32, i32, i32) {
    %c1_i32 = arith.constant 1 : i32
    %0 = arith.addi %arg1, %c1_i32 : i32
    %c8_i32 = arith.constant 8 : i32
    %1 = arith.muli %0, %c8_i32 : i32
    %c7_i32 = arith.constant 7 : i32
    %2 = arith.minsi %1, %c7_i32 : i32
    %c0_i32 = arith.constant 0 : i32
    %c0_i32_0 = arith.constant 0 : i32
    %c0_i32_1 = arith.constant 0 : i32
    return %arg0, %2, %c0_i32, %c0_i32_0 : i32, i32, i32, i32
  }
  func.func @transform_3(%arg0: i32, %arg1: i32) -> (i32, i32, i32) {
    %c0_i32 = arith.constant 0 : i32
    %c0_i32_0 = arith.constant 0 : i32
    %c0_i32_1 = arith.constant 0 : i32
    %c0_i32_2 = arith.constant 0 : i32
    return %c0_i32, %c0_i32_0, %c0_i32_1 : i32, i32, i32
  }
  func.func @transform_4(%arg0: i32, %arg1: i32) -> (i32, i32, i32) {
    %c0_i32 = arith.constant 0 : i32
    %c0_i32_0 = arith.constant 0 : i32
    %c0_i32_1 = arith.constant 0 : i32
    %c0_i32_2 = arith.constant 0 : i32
    return %c0_i32, %c0_i32_0, %c0_i32_1 : i32, i32, i32
  }
  func.func @transform_5(%arg0: i32, %arg1: i32) -> (i32, i32) {
    %c0_i32 = arith.constant 0 : i32
    %c0_i32_0 = arith.constant 0 : i32
    %c0_i32_1 = arith.constant 0 : i32
    return %c0_i32, %c0_i32_0 : i32, i32
  }
  func.func @transform_6(%arg0: i32, %arg1: i32) -> (i32, i32, i32) {
    %c1_i32 = arith.constant 1 : i32
    %0 = arith.muli %arg0, %c1_i32 : i32
    %1 = arith.addi %0, %arg1 : i32
    %c0_i32 = arith.constant 0 : i32
    %c0_i32_0 = arith.constant 0 : i32
    %c0_i32_1 = arith.constant 0 : i32
    return %1, %c0_i32, %c0_i32_0 : i32, i32, i32
  }
  func.func @transform_7(%arg0: i32, %arg1: i32) -> (i32, i32, i32) {
    %c1_i32 = arith.constant 1 : i32
    %0 = arith.muli %arg0, %c1_i32 : i32
    %1 = arith.addi %0, %arg1 : i32
    %c0_i32 = arith.constant 0 : i32
    %c0_i32_0 = arith.constant 0 : i32
    %c0_i32_1 = arith.constant 0 : i32
    return %1, %c0_i32, %c0_i32_0 : i32, i32, i32
  }
  func.func @transform_8(%arg0: i32, %arg1: i32) -> (i32, i32, i32) {
    %c1_i32 = arith.constant 1 : i32
    %0 = arith.muli %arg0, %c1_i32 : i32
    %1 = arith.addi %0, %arg1 : i32
    %c0_i32 = arith.constant 0 : i32
    %c0_i32_0 = arith.constant 0 : i32
    %c0_i32_1 = arith.constant 0 : i32
    return %1, %c0_i32, %c0_i32_0 : i32, i32, i32
  }
}

</mosaic_0001>

<llo_original>
// kernel: down_block_forward.5
$region0: #{down_block_forward.5}
  #allocation0 [shape = 'u32[]', space=smem, size = 0x4, offset = 0x4, fixed_abs, tag = 'smem constant byte address 0x4 - core index']
  #allocation1 [shape = 'u32[144,128]{1,0:T(1,128)}', space=vmem, size = 0x12000, scoped, tag = 'internal scratch']
  %s0 = inlined_call_operand.vmem [shape: bf16[2,64,128], index: 0, kind: input, shape index: {}]
  %s1 = inlined_call_operand.vmem [shape: f32[1,1,128], index: 1, kind: input, shape index: {}]
  %s2 = inlined_call_operand.vmem [shape: f32[1,1,128], index: 2, kind: input, shape index: {}]
  %s3 = inlined_call_operand.vmem [shape: f32[2,64,128], index: 3, kind: output, shape index: {}]
  %s4 = sld [smem:[#allocation0]]
  $region45: #{down_block_forward.5} parent=0
    _
  %s6 = ssub.s32 1, %s4
  %s7 = scalar_select 0, %s6, %s4
  loop: start=0, step=1, limit=4
  $region2: #{down_block_forward.5} parent=0 // loop_pre_header
    _
  $region3: #{down_block_forward.5} parent=0 // loop_header
    %s9 = sphi 0, %s13
    %p10 = scmp.ge.s32.totalorder %s9, 4
    %s19 = sphi 0, %s21
    %s22 = sphi 0, %s19
    %s23 = sphi 0, %s22
    %s39 = sphi 0, %s23
    %s43 = sphi 0, %s43
    %s45 = sphi 0, %s43
    %s46 = sphi 0, %s45
    %s60 = sphi 0, %s46
    %s64 = sphi 0, %s64
    %s66 = sphi 0, %s64
    %s67 = sphi 0, %s66
    %s81 = sphi 0, %s67
    %s87 = sphi 0, %s89
    %s90 = sphi 0, %s87
    %s91 = sphi 0, %s90
    %s107 = sphi 0, %s91
  $region4: #{down_block_forward.5} parent=0 // loop_header_branch
    %12 = sbr.rel (%p10) target = $region8
  $region5: #{down_block_forward.5} parent=0 // loop_body
    %s14 = ssub.s32 %s9, 1
    %s15 = ssub.s32 %s9, 2
    %s16 = sadd.s32 %s9, 1
    %s17 = ssub.s32 %s9, %s16
    %p18 = scmp.eq.s32.totalorder %s17, 0
    %s20 = sadd.s32 %s19, 1
    %s21 = scalar_select %p18, %s19, %s20
    %p24 = pneg %p18
    %p25 = scmp.eq.s32.totalorder %s9, 1
    %p26 = por %p24, %p25
    %p27 = scmp.ne.s32.totalorder %s19, %s22
    %p28 = scmp.eq.s32.totalorder %s9, 0
    %p29 = por %p27, %p28
    %p30 = scmp.ne.s32.totalorder %s19, %s22
    %p31 = scmp.eq.s32.totalorder %s14, 1
    %p32 = por %p30, %p31
    %p33 = scmp.ne.s32.totalorder %s22, %s23
    %p34 = scmp.eq.s32.totalorder %s14, 0
    %p35 = por %p33, %p34
    %p36 = scmp.ne.s32.totalorder %s22, %s23
    %p37 = scmp.eq.s32.totalorder %s15, 1
    %p38 = por %p36, %p37
    %p40 = scmp.ne.s32.totalorder %s23, %s39
    %p41 = scmp.eq.s32.totalorder %s15, 0
    %p42 = por %p40, %p41
    %s44 = sadd.s32 %s43, 1
    %p47 = scmp.eq.s32.totalorder %s9, 1
    %p48 = scmp.ne.s32.totalorder %s43, %s45
    %p49 = scmp.eq.s32.totalorder %s9, 0
    %p50 = por %p48, %p49
    %p51 = scmp.ne.s32.totalorder %s43, %s45
    %p52 = scmp.eq.s32.totalorder %s14, 1
    %p53 = por %p51, %p52
    %p54 = scmp.ne.s32.totalorder %s45, %s46
    %p55 = scmp.eq.s32.totalorder %s14, 0
    %p56 = por %p54, %p55
    %p57 = scmp.ne.s32.totalorder %s45, %s46
    %p58 = scmp.eq.s32.totalorder %s15, 1
    %p59 = por %p57, %p58
    %p61 = scmp.ne.s32.totalorder %s46, %s60
    %p62 = scmp.eq.s32.totalorder %s15, 0
    %p63 = por %p61, %p62
    %s65 = sadd.s32 %s64, 1
    %p68 = scmp.eq.s32.totalorder %s9, 1
    %p69 = scmp.ne.s32.totalorder %s64, %s66
    %p70 = scmp.eq.s32.totalorder %s9, 0
    %p71 = por %p69, %p70
    %p72 = scmp.ne.s32.totalorder %s64, %s66
    %p73 = scmp.eq.s32.totalorder %s14, 1
    %p74 = por %p72, %p73
    %p75 = scmp.ne.s32.totalorder %s66, %s67
    %p76 = scmp.eq.s32.totalorder %s14, 0
    %p77 = por %p75, %p76
    %p78 = scmp.ne.s32.totalorder %s66, %s67
    %p79 = scmp.eq.s32.totalorder %s15, 1
    %p80 = por %p78, %p79
    %p82 = scmp.ne.s32.totalorder %s67, %s81
    %p83 = scmp.eq.s32.totalorder %s15, 0
    %p84 = por %p82, %p83
    %s85 = ssub.s32 %s9, %s16
    %p86 = scmp.eq.s32.totalorder %s85, 0
    %s88 = sadd.s32 %s87, 1
    %s89 = scalar_select %p86, %s87, %s88
    %p92 = pneg %p86
    %p93 = scmp.eq.s32.totalorder %s9, 1
    %p94 = por %p92, %p93
    %p95 = scmp.ne.s32.totalorder %s87, %s90
    %p96 = scmp.eq.s32.totalorder %s9, 0
    %p97 = por %p95, %p96
    %p98 = scmp.ne.s32.totalorder %s87, %s90
    %p99 = scmp.eq.s32.totalorder %s14, 1
    %p100 = por %p98, %p99
    %p101 = scmp.ne.s32.totalorder %s90, %s91
    %p102 = scmp.eq.s32.totalorder %s14, 0
    %p103 = por %p101, %p102
    %p104 = scmp.ne.s32.totalorder %s90, %s91
    %p105 = scmp.eq.s32.totalorder %s15, 1
    %p106 = por %p104, %p105
    %p108 = scmp.ne.s32.totalorder %s91, %s107
    %p109 = scmp.eq.s32.totalorder %s15, 0
    %p110 = por %p108, %p109
    %p111 = scmp.le.s32.totalorder 1, %s9
    %p112 = scmp.lt.s32.totalorder %s9, 3
    %p113 = pnand %p111, %p112
    %p114 = pneg %p113
    // Predicated region
    $region9: #{down_block_forward.5} parent=5 // pred_check
      _
    $region10: #{down_block_forward.5} parent=5 // pred_check_branch
      %116 = sbr.rel (%p113) target = $region12
    $region11: #{down_block_forward.5} parent=5 // pred_region
      %s117 = ssub.s32 %s9, 1
      // Predicated region
      $region13: #{down_block_forward.5} parent=11 // pred_check
        %p118 = pneg %p56
      $region14: #{down_block_forward.5} parent=11 // pred_check_branch
        %120 = sbr.rel (%p118) target = $region16
      $region15: #{down_block_forward.5} parent=11 // pred_region
        _
      $region16: #{down_block_forward.5} parent=11 // pred_fallthru
        _
      // Predicated region
      $region17: #{down_block_forward.5} parent=11 // pred_check
        %p121 = pneg %p77
      $region18: #{down_block_forward.5} parent=11 // pred_check_branch
        %123 = sbr.rel (%p121) target = $region20
      $region19: #{down_block_forward.5} parent=11 // pred_region
        _
      $region20: #{down_block_forward.5} parent=11 // pred_fallthru
        _
    $region12: #{down_block_forward.5} parent=5 // pred_fallthru
      _
    %p124 = scmp.lt.s32.totalorder %s9, 2
    // Predicated region
    $region21: #{down_block_forward.5} parent=5 // pred_check
      %p125 = pneg %p124
    $region22: #{down_block_forward.5} parent=5 // pred_check_branch
      %127 = sbr.rel (%p125) target = $region24
    $region23: #{down_block_forward.5} parent=5 // pred_region
      // Predicated region
      $region25: #{down_block_forward.5} parent=23 // pred_check
        %p128 = pneg %p29
      $region26: #{down_block_forward.5} parent=23 // pred_check_branch
        %130 = sbr.rel (%p128) target = $region28
      $region27: #{down_block_forward.5} parent=23 // pred_region
        %p131 = scmp.lt.s32.totalorder %s9, 1
        %s132 = scalar_select %p131, %s9, 1
        %s133 = smul.addr %s132, 8
        %s134 = smul.addr %s133, 4
        %s135 = scalar_lea.vmem %s0, %s134
      $region28: #{down_block_forward.5} parent=23 // pred_fallthru
        _
    $region24: #{down_block_forward.5} parent=5 // pred_fallthru
      _
    %p136 = scmp.le.s32.totalorder 1, %s9
    %p137 = scmp.lt.s32.totalorder %s9, 3
    %p138 = pnand %p136, %p137
    %p139 = pneg %p138
    // Predicated region
    $region29: #{down_block_forward.5} parent=5 // pred_check
      _
    $region30: #{down_block_forward.5} parent=5 // pred_check_branch
      %141 = sbr.rel (%p138) target = $region32
    $region31: #{down_block_forward.5} parent=5 // pred_region
      %s142 = ssub.s32 %s9, 1
      %p143 = scmp.lt.s32.totalorder %s14, 1
      %s144 = scalar_select %p143, %s14, 1
      %s145 = smul.addr %s144, 8
      %s146 = smul.addr %s145, 4
      %s147 = scalar_lea.vmem %s0, %s146
      %p148 = pneg %p35
      %p149 = pneg %p32
      %p150 = pneg %p56
      %p151 = pneg %p53
      %p152 = pneg %p77
      %p153 = pneg %p74
      %p154 = pneg %p103
      %p155 = pneg %p100
      %p156 = scmp.lt.s32.totalorder %s14, 1
      %s157 = scalar_select %p156, %s14, 1
      %s158 = smul.addr %s157, 8
      %s159 = smul.addr %s158, 8
      %s160 = scalar_lea.vmem %s3, %s159
      %p161 = scmp.lt.s32.totalorder %s14, 1
      %s162 = scalar_select %p161, %s14, 1
      %s163 = smul.addr %s162, 8
      %s164 = smul.addr %s163, 4
      %s165 = scalar_lea.vmem %s0, %s164
      %p166 = scmp.lt.s32.totalorder %s14, 1
      %s167 = scalar_select %p166, %s14, 1
      %s168 = smul.addr %s167, 8
      %s169 = smul.addr %s168, 8
      %s170 = scalar_lea.vmem %s3, %s169
      %v171 = vld [vmem:[%s165] sm:$0xf]
      %v172 = vld [vmem:[%s165 + $0x4] sm:$0xf]
      %v173 = vld [vmem:[%s165 + $0x8] sm:$0xf]
      %v174 = vld [vmem:[%s165 + $0xc] sm:$0xf]
      %v175 = vld [vmem:[%s165 + $0x10] sm:$0xf]
      %v176 = vld [vmem:[%s165 + $0x14] sm:$0xf]
      %v177 = vld [vmem:[%s165 + $0x18] sm:$0xf]
      %v178 = vld [vmem:[%s165 + $0x1c] sm:$0xf]
      %v179 = vunpack.c.l.bf16 %v171
      %v180 = vunpack.c.l.bf16 %v172
      %v181 = vunpack.c.l.bf16 %v173
      %v182 = vunpack.c.l.bf16 %v174
      %v183 = vunpack.c.l.bf16 %v175
      %v184 = vunpack.c.l.bf16 %v176
      %v185 = vunpack.c.l.bf16 %v177
      %v186 = vunpack.c.l.bf16 %v178
      %v187 = vld [vmem:[%s1] sm:$0x1]
      %v189 = vlaneseq
      %v190 = vshrl.u32 %v189, 7
      %v191 = vsub.s32 0, %v190
      %v192 = vrot.slane %v187, %v191
      %v194 = vmul.f32 %v179, %v192
      %v195 = vmul.f32 %v180, %v192
      %v196 = vmul.f32 %v181, %v192
      %v197 = vmul.f32 %v182, %v192
      %v198 = vmul.f32 %v183, %v192
      %v199 = vmul.f32 %v184, %v192
      %v200 = vmul.f32 %v185, %v192
      %v201 = vmul.f32 %v186, %v192
      %v202 = vld [vmem:[%s2] sm:$0x1]
      %v204 = vlaneseq
      %v205 = vshrl.u32 %v204, 7
      %v206 = vsub.s32 0, %v205
      %v207 = vrot.slane %v202, %v206
      %v209 = vadd.f32 %v194, %v207
      %v210 = vadd.f32 %v195, %v207
      %v211 = vadd.f32 %v196, %v207
      %v212 = vadd.f32 %v197, %v207
      %v213 = vadd.f32 %v198, %v207
      %v214 = vadd.f32 %v199, %v207
      %v215 = vadd.f32 %v200, %v207
      %v216 = vadd.f32 %v201, %v207
      %v217 = vmax.f32 %v209, 0.0
      %v218 = vmax.f32 %v210, 0.0
      %v219 = vmax.f32 %v211, 0.0
      %v220 = vmax.f32 %v212, 0.0
      %v221 = vmax.f32 %v213, 0.0
      %v222 = vmax.f32 %v214, 0.0
      %v223 = vmax.f32 %v215, 0.0
      %v224 = vmax.f32 %v216, 0.0
      %225 = vst [vmem:[%s170] sm:$0xff] %v217
      %226 = vst [vmem:[%s170 + $0x8] sm:$0xff] %v218
      %227 = vst [vmem:[%s170 + $0x10] sm:$0xff] %v219
      %228 = vst [vmem:[%s170 + $0x18] sm:$0xff] %v220
      %229 = vst [vmem:[%s170 + $0x20] sm:$0xff] %v221
      %230 = vst [vmem:[%s170 + $0x28] sm:$0xff] %v222
      %231 = vst [vmem:[%s170 + $0x30] sm:$0xff] %v223
      %232 = vst [vmem:[%s170 + $0x38] sm:$0xff] %v224
      %p233 = scmp.lt.s32.totalorder %s14, 1
      %s234 = scalar_select %p233, %s14, 1
      %s235 = smul.addr %s234, 8
      %s236 = smul.addr %s235, 8
      %s237 = scalar_lea.vmem %s3, %s236
      // Predicated region
      $region33: #{down_block_forward.5} parent=31 // pred_check
        %p238 = pneg %p100
      $region34: #{down_block_forward.5} parent=31 // pred_check_branch
        %240 = sbr.rel (%p238) target = $region36
      $region35: #{down_block_forward.5} parent=31 // pred_region
        _
      $region36: #{down_block_forward.5} parent=31 // pred_fallthru
        _
    $region32: #{down_block_forward.5} parent=5 // pred_fallthru
      _
    %p241 = scmp.le.s32.totalorder 2, %s9
    // Predicated region
    $region37: #{down_block_forward.5} parent=5 // pred_check
      %p242 = pneg %p241
    $region38: #{down_block_forward.5} parent=5 // pred_check_branch
      %244 = sbr.rel (%p242) target = $region40
    $region39: #{down_block_forward.5} parent=5 // pred_region
      %s245 = ssub.s32 %s9, 2
      // Predicated region
      $region41: #{down_block_forward.5} parent=39 // pred_check
        %p246 = pneg %p106
      $region42: #{down_block_forward.5} parent=39 // pred_check_branch
        %248 = sbr.rel (%p246) target = $region44
      $region43: #{down_block_forward.5} parent=39 // pred_region
        %p249 = scmp.lt.s32.totalorder %s15, 1
        %s250 = scalar_select %p249, %s15, 1
        %s251 = smul.addr %s250, 8
        %s252 = smul.addr %s251, 8
        %s253 = scalar_lea.vmem %s3, %s252
      $region44: #{down_block_forward.5} parent=39 // pred_fallthru
        _
    $region40: #{down_block_forward.5} parent=5 // pred_fallthru
      _
  $region6: #{down_block_forward.5} parent=0 // loop_footer
    %s13 = sadd.s32 1, %s9
  $region7: #{down_block_forward.5} parent=0 // loop_footer_branch
    %8 = sbr.rel target = $region3
  $region8: #{down_block_forward.5} parent=0 // loop_exit
    _

// kernel: down_block_forward.3
$region0: #{down_block_forward.3}
  #allocation0 [shape = 'u32[]', space=smem, size = 0x4, offset = 0x4, fixed_abs, tag = 'smem constant byte address 0x4 - core index']
  #allocation1 [shape = 'u32[144,128]{1,0:T(1,128)}', space=vmem, size = 0x12000, scoped, tag = 'internal scratch']
  %s0 = inlined_call_operand.vmem [shape: bf16[2,8,8,4], index: 0, kind: input, shape index: {}, may-alias: {0,1,2}]
  %s1 = inlined_call_operand.vmem [shape: bf16[2,8,8,4], index: 1, kind: input, shape index: {}, may-alias: {0,1,2}]
  %s2 = inlined_call_operand.vmem [shape: bf16[2,8,8,4], index: 2, kind: input, shape index: {}, may-alias: {0,1,2}]
  %s3 = inlined_call_operand.vmem [shape: bf16[36,128], index: 3, kind: input, shape index: {}]
  %s4 = inlined_call_operand.vmem [shape: bf16[2,64,128], index: 4, kind: output, shape index: {0}]
  %s5 = inlined_call_operand.vmem [shape: f32[2,1,128], index: 5, kind: output, shape index: {1}]
  %s6 = inlined_call_operand.vmem [shape: f32[2,1,128], index: 6, kind: output, shape index: {2}]
  %7 = xla_tuple %s4, %s5, %s6
  %s8 = sld [smem:[#allocation0]]
  $region65: #{down_block_forward.3} parent=0
    _
  %s10 = ssub.s32 1, %s8
  %s11 = scalar_select 0, %s10, %s8
  loop: start=0, step=1, limit=4
  $region2: #{down_block_forward.3} parent=0 // loop_pre_header
    _
  $region3: #{down_block_forward.3} parent=0 // loop_header
    %s13 = sphi 0, %s17
    %p14 = scmp.ge.s32.totalorder %s13, 4
    %s20 = sphi 0, %s32
    %s21 = sphi 0, %s28
    %s22 = sphi 0, %s20
    %s23 = sphi 0, %s21
    %s24 = sphi 0, %s22
    %s25 = sphi 0, %s23
    %s45 = sphi 0, %s47
    %s48 = sphi 0, %s45
    %s49 = sphi 0, %s48
    %s65 = sphi 0, %s49
    %s73 = sphi 0, %s75
    %s76 = sphi 0, %s73
    %s77 = sphi 0, %s76
    %s93 = sphi 0, %s77
    %s109 = sphi 0, %s111
    %s112 = sphi 0, %s109
    %s113 = sphi 0, %s112
    %s129 = sphi 0, %s113
    %s133 = sphi 0, %s133
    %s135 = sphi 0, %s133
    %s136 = sphi 0, %s135
    %s150 = sphi 0, %s136
    %s158 = sphi 0, %s160
    %s161 = sphi 0, %s158
    %s162 = sphi 0, %s161
    %s178 = sphi 0, %s162
    %s186 = sphi 0, %s188
    %s189 = sphi 0, %s186
    %s190 = sphi 0, %s189
    %s206 = sphi 0, %s190
    %s214 = sphi 0, %s216
    %s217 = sphi 0, %s214
    %s218 = sphi 0, %s217
    %s234 = sphi 0, %s218
  $region4: #{down_block_forward.3} parent=0 // loop_header_branch
    %16 = sbr.rel (%p14) target = $region8
  $region5: #{down_block_forward.3} parent=0 // loop_body
    %s18 = ssub.s32 %s13, 1
    %s19 = ssub.s32 %s13, 2
    %s26 = sadd.s32 1, %s21
    %p27 = scmp.ge.s32.totalorder %s26, 1
    %s28 = scalar_select %p27, 0, %s26
    %s29 = sadd.s32 1, %s20
    %s30 = scalar_select %p27, %s29, %s20
    %p31 = scmp.ge.s32.totalorder %s30, 2
    %s32 = scalar_select %p31, 0, %s30
    %s33 = smul.u32 %s21, 8
    %s34 = ssub.s32 %s33, 1
    %p35 = scmp.gt.s32.totalorder %s34, 0
    %s36 = scalar_select %p35, %s34, 0
    %s37 = smul.u32 %s28, 8
    %s38 = ssub.s32 %s37, 1
    %p39 = scmp.gt.s32.totalorder %s38, 0
    %s40 = scalar_select %p39, %s38, 0
    %s41 = ssub.s32 %s20, %s32
    %s42 = ssub.s32 %s36, %s40
    %s43 = sor.u32 %s41, %s42
    %p44 = scmp.eq.s32.totalorder %s43, 0
    %s46 = sadd.s32 %s45, 1
    %s47 = scalar_select %p44, %s45, %s46
    %p50 = pneg %p44
    %p51 = scmp.eq.s32.totalorder %s13, 1
    %p52 = por %p50, %p51
    %p53 = scmp.ne.s32.totalorder %s45, %s48
    %p54 = scmp.eq.s32.totalorder %s13, 0
    %p55 = por %p53, %p54
    %p56 = scmp.ne.s32.totalorder %s45, %s48
    %p57 = scmp.eq.s32.totalorder %s18, 1
    %p58 = por %p56, %p57
    %p59 = scmp.ne.s32.totalorder %s48, %s49
    %p60 = scmp.eq.s32.totalorder %s18, 0
    %p61 = por %p59, %p60
    %p62 = scmp.ne.s32.totalorder %s48, %s49
    %p63 = scmp.eq.s32.totalorder %s19, 1
    %p64 = por %p62, %p63
    %p66 = scmp.ne.s32.totalorder %s49, %s65
    %p67 = scmp.eq.s32.totalorder %s19, 0
    %p68 = por %p66, %p67
    %s69 = ssub.s32 %s20, %s32
    %s70 = ssub.s32 %s21, %s28
    %s71 = sor.u32 %s69, %s70
    %p72 = scmp.eq.s32.totalorder %s71, 0
    %s74 = sadd.s32 %s73, 1
    %s75 = scalar_select %p72, %s73, %s74
    %p78 = pneg %p72
    %p79 = scmp.eq.s32.totalorder %s13, 1
    %p80 = por %p78, %p79
    %p81 = scmp.ne.s32.totalorder %s73, %s76
    %p82 = scmp.eq.s32.totalorder %s13, 0
    %p83 = por %p81, %p82
    %p84 = scmp.ne.s32.totalorder %s73, %s76
    %p85 = scmp.eq.s32.totalorder %s18, 1
    %p86 = por %p84, %p85
    %p87 = scmp.ne.s32.totalorder %s76, %s77
    %p88 = scmp.eq.s32.totalorder %s18, 0
    %p89 = por %p87, %p88
    %p90 = scmp.ne.s32.totalorder %s76, %s77
    %p91 = scmp.eq.s32.totalorder %s19, 1
    %p92 = por %p90, %p91
    %p94 = scmp.ne.s32.totalorder %s77, %s93
    %p95 = scmp.eq.s32.totalorder %s19, 0
    %p96 = por %p94, %p95
    %s97 = sadd.s32 %s21, 1
    %s98 = smul.u32 %s97, 8
    %p99 = scmp.lt.s32.totalorder %s98, 7
    %s100 = scalar_select %p99, %s98, 7
    %s101 = sadd.s32 %s28, 1
    %s102 = smul.u32 %s101, 8
    %p103 = scmp.lt.s32.totalorder %s102, 7
    %s104 = scalar_select %p103, %s102, 7
    %s105 = ssub.s32 %s20, %s32
    %s106 = ssub.s32 %s100, %s104
    %s107 = sor.u32 %s105, %s106
    %p108 = scmp.eq.s32.totalorder %s107, 0
    %s110 = sadd.s32 %s109, 1
    %s111 = scalar_select %p108, %s109, %s110
    %p114 = pneg %p108
    %p115 = scmp.eq.s32.totalorder %s13, 1
    %p116 = por %p114, %p115
    %p117 = scmp.ne.s32.totalorder %s109, %s112
    %p118 = scmp.eq.s32.totalorder %s13, 0
    %p119 = por %p117, %p118
    %p120 = scmp.ne.s32.totalorder %s109, %s112
    %p121 = scmp.eq.s32.totalorder %s18, 1
    %p122 = por %p120, %p121
    %p123 = scmp.ne.s32.totalorder %s112, %s113
    %p124 = scmp.eq.s32.totalorder %s18, 0
    %p125 = por %p123, %p124
    %p126 = scmp.ne.s32.totalorder %s112, %s113
    %p127 = scmp.eq.s32.totalorder %s19, 1
    %p128 = por %p126, %p127
    %p130 = scmp.ne.s32.totalorder %s113, %s129
    %p131 = scmp.eq.s32.totalorder %s19, 0
    %p132 = por %p130, %p131
    %s134 = sadd.s32 %s133, 1
    %p137 = scmp.eq.s32.totalorder %s13, 1
    %p138 = scmp.ne.s32.totalorder %s133, %s135
    %p139 = scmp.eq.s32.totalorder %s13, 0
    %p140 = por %p138, %p139
    %p141 = scmp.ne.s32.totalorder %s133, %s135
    %p142 = scmp.eq.s32.totalorder %s18, 1
    %p143 = por %p141, %p142
    %p144 = scmp.ne.s32.totalorder %s135, %s136
    %p145 = scmp.eq.s32.totalorder %s18, 0
    %p146 = por %p144, %p145
    %p147 = scmp.ne.s32.totalorder %s135, %s136
    %p148 = scmp.eq.s32.totalorder %s19, 1
    %p149 = por %p147, %p148
    %p151 = scmp.ne.s32.totalorder %s136, %s150
    %p152 = scmp.eq.s32.totalorder %s19, 0
    %p153 = por %p151, %p152
    %s154 = sadd.s32 %s20, %s21
    %s155 = sadd.s32 %s32, %s28
    %s156 = ssub.s32 %s154, %s155
    %p157 = scmp.eq.s32.totalorder %s156, 0
    %s159 = sadd.s32 %s158, 1
    %s160 = scalar_select %p157, %s158, %s159
    %p163 = pneg %p157
    %p164 = scmp.eq.s32.totalorder %s13, 1
    %p165 = por %p163, %p164
    %p166 = scmp.ne.s32.totalorder %s158, %s161
    %p167 = scmp.eq.s32.totalorder %s13, 0
    %p168 = por %p166, %p167
    %p169 = scmp.ne.s32.totalorder %s158, %s161
    %p170 = scmp.eq.s32.totalorder %s18, 1
    %p171 = por %p169, %p170
    %p172 = scmp.ne.s32.totalorder %s161, %s162
    %p173 = scmp.eq.s32.totalorder %s18, 0
    %p174 = por %p172, %p173
    %p175 = scmp.ne.s32.totalorder %s161, %s162
    %p176 = scmp.eq.s32.totalorder %s19, 1
    %p177 = por %p175, %p176
    %p179 = scmp.ne.s32.totalorder %s162, %s178
    %p180 = scmp.eq.s32.totalorder %s19, 0
    %p181 = por %p179, %p180
    %s182 = sadd.s32 %s20, %s21
    %s183 = sadd.s32 %s32, %s28
    %s184 = ssub.s32 %s182, %s183
    %p185 = scmp.eq.s32.totalorder %s184, 0
    %s187 = sadd.s32 %s186, 1
    %s188 = scalar_select %p185, %s186, %s187
    %p191 = pneg %p185
    %p192 = scmp.eq.s32.totalorder %s13, 1
    %p193 = por %p191, %p192
    %p194 = scmp.ne.s32.totalorder %s186, %s189
    %p195 = scmp.eq.s32.totalorder %s13, 0
    %p196 = por %p194, %p195
    %p197 = scmp.ne.s32.totalorder %s186, %s189
    %p198 = scmp.eq.s32.totalorder %s18, 1
    %p199 = por %p197, %p198
    %p200 = scmp.ne.s32.totalorder %s189, %s190
    %p201 = scmp.eq.s32.totalorder %s18, 0
    %p202 = por %p200, %p201
    %p203 = scmp.ne.s32.totalorder %s189, %s190
    %p204 = scmp.eq.s32.totalorder %s19, 1
    %p205 = por %p203, %p204
    %p207 = scmp.ne.s32.totalorder %s190, %s206
    %p208 = scmp.eq.s32.totalorder %s19, 0
    %p209 = por %p207, %p208
    %s210 = sadd.s32 %s20, %s21
    %s211 = sadd.s32 %s32, %s28
    %s212 = ssub.s32 %s210, %s211
    %p213 = scmp.eq.s32.totalorder %s212, 0
    %s215 = sadd.s32 %s214, 1
    %s216 = scalar_select %p213, %s214, %s215
    %p219 = pneg %p213
    %p220 = scmp.eq.s32.totalorder %s13, 1
    %p221 = por %p219, %p220
    %p222 = scmp.ne.s32.totalorder %s214, %s217
    %p223 = scmp.eq.s32.totalorder %s13, 0
    %p224 = por %p222, %p223
    %p225 = scmp.ne.s32.totalorder %s214, %s217
    %p226 = scmp.eq.s32.totalorder %s18, 1
    %p227 = por %p225, %p226
    %p228 = scmp.ne.s32.totalorder %s217, %s218
    %p229 = scmp.eq.s32.totalorder %s18, 0
    %p230 = por %p228, %p229
    %p231 = scmp.ne.s32.totalorder %s217, %s218
    %p232 = scmp.eq.s32.totalorder %s19, 1
    %p233 = por %p231, %p232
    %p235 = scmp.ne.s32.totalorder %s218, %s234
    %p236 = scmp.eq.s32.totalorder %s19, 0
    %p237 = por %p235, %p236
    %p238 = scmp.le.s32.totalorder 1, %s13
    %p239 = scmp.lt.s32.totalorder %s13, 3
    %p240 = pnand %p238, %p239
    %p241 = pneg %p240
    // Predicated region
    $region9: #{down_block_forward.3} parent=5 // pred_check
      _
    $region10: #{down_block_forward.3} parent=5 // pred_check_branch
      %243 = sbr.rel (%p240) target = $region12
    $region11: #{down_block_forward.3} parent=5 // pred_region
      %s244 = ssub.s32 %s13, 1
      // Predicated region
      $region13: #{down_block_forward.3} parent=11 // pred_check
        %p245 = pneg %p146
      $region14: #{down_block_forward.3} parent=11 // pred_check_branch
        %247 = sbr.rel (%p245) target = $region16
      $region15: #{down_block_forward.3} parent=11 // pred_region
        _
      $region16: #{down_block_forward.3} parent=11 // pred_fallthru
        _
    $region12: #{down_block_forward.3} parent=5 // pred_fallthru
      _
    %p248 = scmp.lt.s32.totalorder %s13, 2
    // Predicated region
    $region17: #{down_block_forward.3} parent=5 // pred_check
      %p249 = pneg %p248
    $region18: #{down_block_forward.3} parent=5 // pred_check_branch
      %251 = sbr.rel (%p249) target = $region20
    $region19: #{down_block_forward.3} parent=5 // pred_region
      // Predicated region
      $region21: #{down_block_forward.3} parent=19 // pred_check
        %p252 = pneg %p55
      $region22: #{down_block_forward.3} parent=19 // pred_check_branch
        %254 = sbr.rel (%p252) target = $region24
      $region23: #{down_block_forward.3} parent=19 // pred_region
        %s255 = smul.u32 %s21, 8
        %s256 = ssub.s32 %s255, 1
        %p257 = scmp.gt.s32.totalorder %s256, 0
        %s258 = scalar_select %p257, %s256, 0
        %p259 = scmp.lt.s32.totalorder %s20, 1
        %s260 = scalar_select %p259, %s20, 1
        %p261 = scmp.lt.s32.totalorder %s258, 7
        %s262 = scalar_select %p261, %s258, 7
        %s263 = smul.addr %s260, 8
        %s264 = sadd.s32 %s262, %s263
        %s265 = smul.addr %s264, 4
        %s266 = scalar_lea.vmem %s0, %s265
        %s267 = smul.u32 %s21, 8
        %s268 = ssub.s32 %s267, 1
        %p269 = scmp.gt.s32.totalorder %s268, 0
        %s270 = scalar_select %p269, %s268, 0
      $region24: #{down_block_forward.3} parent=19 // pred_fallthru
        _
      // Predicated region
      $region25: #{down_block_forward.3} parent=19 // pred_check
        %p271 = pneg %p83
      $region26: #{down_block_forward.3} parent=19 // pred_check_branch
        %273 = sbr.rel (%p271) target = $region28
      $region27: #{down_block_forward.3} parent=19 // pred_region
        %s274 = smul.u32 8, %s21
        %p275 = scmp.lt.s32.totalorder %s20, 1
        %s276 = scalar_select %p275, %s20, 1
        %p277 = scmp.lt.s32.totalorder %s274, 7
        %s278 = scalar_select %p277, %s274, 7
        %s279 = smul.addr %s276, 8
        %s280 = sadd.s32 %s278, %s279
        %s281 = smul.addr %s280, 4
        %s282 = scalar_lea.vmem %s1, %s281
        %s283 = smul.u32 8, %s21
      $region28: #{down_block_forward.3} parent=19 // pred_fallthru
        _
      // Predicated region
      $region29: #{down_block_forward.3} parent=19 // pred_check
        %p284 = pneg %p119
      $region30: #{down_block_forward.3} parent=19 // pred_check_branch
        %286 = sbr.rel (%p284) target = $region32
      $region31: #{down_block_forward.3} parent=19 // pred_region
        %s287 = sadd.s32 %s21, 1
        %s288 = smul.u32 %s287, 8
        %p289 = scmp.lt.s32.totalorder %s288, 7
        %s290 = scalar_select %p289, %s288, 7
        %p291 = scmp.lt.s32.totalorder %s20, 1
        %s292 = scalar_select %p291, %s20, 1
        %p293 = scmp.lt.s32.totalorder %s290, 7
        %s294 = scalar_select %p293, %s290, 7
        %s295 = smul.addr %s292, 8
        %s296 = sadd.s32 %s294, %s295
        %s297 = smul.addr %s296, 4
        %s298 = scalar_lea.vmem %s2, %s297
        %s299 = sadd.s32 %s21, 1
        %s300 = smul.u32 %s299, 8
        %p301 = scmp.lt.s32.totalorder %s300, 7
        %s302 = scalar_select %p301, %s300, 7
      $region32: #{down_block_forward.3} parent=19 // pred_fallthru
        _
    $region20: #{down_block_forward.3} parent=5 // pred_fallthru
      _
    %p303 = scmp.le.s32.totalorder 1, %s13
    %p304 = scmp.lt.s32.totalorder %s13, 3
    %p305 = pnand %p303, %p304
    %p306 = pneg %p305
    // Predicated region
    $region33: #{down_block_forward.3} parent=5 // pred_check
      _
    $region34: #{down_block_forward.3} parent=5 // pred_check_branch
      %308 = sbr.rel (%p305) target = $region36
    $region35: #{down_block_forward.3} parent=5 // pred_region
      %s309 = ssub.s32 %s13, 1
      %s310 = smul.u32 %s23, 8
      %s311 = ssub.s32 %s310, 1
      %p312 = scmp.gt.s32.totalorder %s311, 0
      %s313 = scalar_select %p312, %s311, 0
      %p314 = scmp.lt.s32.totalorder %s22, 1
      %s315 = scalar_select %p314, %s22, 1
      %p316 = scmp.lt.s32.totalorder %s313, 7
      %s317 = scalar_select %p316, %s313, 7
      %s318 = smul.addr %s315, 8
      %s319 = sadd.s32 %s317, %s318
      %s320 = smul.addr %s319, 4
      %s321 = scalar_lea.vmem %s0, %s320
      %p322 = pneg %p61
      %p323 = pneg %p58
      %s324 = smul.u32 8, %s23
      %p325 = scmp.lt.s32.totalorder %s22, 1
      %s326 = scalar_select %p325, %s22, 1
      %p327 = scmp.lt.s32.totalorder %s324, 7
      %s328 = scalar_select %p327, %s324, 7
      %s329 = smul.addr %s326, 8
      %s330 = sadd.s32 %s328, %s329
      %s331 = smul.addr %s330, 4
      %s332 = scalar_lea.vmem %s1, %s331
      %p333 = pneg %p89
      %p334 = pneg %p86
      %s335 = sadd.s32 %s23, 1
      %s336 = smul.u32 %s335, 8
      %p337 = scmp.lt.s32.totalorder %s336, 7
      %s338 = scalar_select %p337, %s336, 7
      %p339 = scmp.lt.s32.totalorder %s22, 1
      %s340 = scalar_select %p339, %s22, 1
      %p341 = scmp.lt.s32.totalorder %s338, 7
      %s342 = scalar_select %p341, %s338, 7
      %s343 = smul.addr %s340, 8
      %s344 = sadd.s32 %s342, %s343
      %s345 = smul.addr %s344, 4
      %s346 = scalar_lea.vmem %s2, %s345
      %p347 = pneg %p125
      %p348 = pneg %p122
      %p349 = pneg %p146
      %p350 = pneg %p143
      %p351 = pneg %p174
      %p352 = pneg %p171
      %s353 = sadd.s32 %s22, %s23
      %p354 = scmp.lt.s32.totalorder %s353, 1
      %s355 = scalar_select %p354, %s353, 1
      %s356 = smul.addr %s355, 8
      %s357 = smul.addr %s356, 4
      %s358 = scalar_lea.vmem %s4, %s357
      %p359 = pneg %p202
      %p360 = pneg %p199
      %s361 = sadd.s32 %s22, %s23
      %p362 = scmp.lt.s32.totalorder %s361, 1
      %s363 = scalar_select %p362, %s361, 1
      %s364 = scalar_lea.vmem %s5, %s363
      %p365 = pneg %p230
      %p366 = pneg %p227
      %s367 = sadd.s32 %s22, %s23
      %p368 = scmp.lt.s32.totalorder %s367, 1
      %s369 = scalar_select %p368, %s367, 1
      %s370 = scalar_lea.vmem %s6, %s369
      %s371 = smul.u32 %s23, 8
      %s372 = ssub.s32 %s371, 1
      %p373 = scmp.gt.s32.totalorder %s372, 0
      %s374 = scalar_select %p373, %s372, 0
      %p375 = scmp.lt.s32.totalorder %s22, 1
      %s376 = scalar_select %p375, %s22, 1
      %p377 = scmp.lt.s32.totalorder %s374, 7
      %s378 = scalar_select %p377, %s374, 7
      %s379 = smul.addr %s376, 8
      %s380 = sadd.s32 %s378, %s379
      %s381 = smul.addr %s380, 4
      %s382 = scalar_lea.vmem %s0, %s381
      %s383 = smul.u32 %s23, 8
      %s384 = ssub.s32 %s383, 1
      %p385 = scmp.gt.s32.totalorder %s384, 0
      %s386 = scalar_select %p385, %s384, 0
      %s387 = smul.u32 8, %s23
      %p388 = scmp.lt.s32.totalorder %s22, 1
      %s389 = scalar_select %p388, %s22, 1
      %p390 = scmp.lt.s32.totalorder %s387, 7
      %s391 = scalar_select %p390, %s387, 7
      %s392 = smul.addr %s389, 8
      %s393 = sadd.s32 %s391, %s392
      %s394 = smul.addr %s393, 4
      %s395 = scalar_lea.vmem %s1, %s394
      %s396 = smul.u32 8, %s23
      %s397 = sadd.s32 %s23, 1
      %s398 = smul.u32 %s397, 8
      %p399 = scmp.lt.s32.totalorder %s398, 7
      %s400 = scalar_select %p399, %s398, 7
      %p401 = scmp.lt.s32.totalorder %s22, 1
      %s402 = scalar_select %p401, %s22, 1
      %p403 = scmp.lt.s32.totalorder %s400, 7
      %s404 = scalar_select %p403, %s400, 7
      %s405 = smul.addr %s402, 8
      %s406 = sadd.s32 %s404, %s405
      %s407 = smul.addr %s406, 4
      %s408 = scalar_lea.vmem %s2, %s407
      %s409 = sadd.s32 %s23, 1
      %s410 = smul.u32 %s409, 8
      %p411 = scmp.lt.s32.totalorder %s410, 7
      %s412 = scalar_select %p411, %s410, 7
      %s413 = sadd.s32 %s22, %s23
      %p414 = scmp.lt.s32.totalorder %s413, 1
      %s415 = scalar_select %p414, %s413, 1
      %s416 = smul.addr %s415, 8
      %s417 = smul.addr %s416, 4
      %s418 = scalar_lea.vmem %s4, %s417
      %s419 = sadd.s32 %s22, %s23
      %s420 = sadd.s32 %s22, %s23
      %p421 = scmp.lt.s32.totalorder %s420, 1
      %s422 = scalar_select %p421, %s420, 1
      %s423 = scalar_lea.vmem %s5, %s422
      %s424 = sadd.s32 %s22, %s23
      %s425 = sadd.s32 %s22, %s23
      %p426 = scmp.lt.s32.totalorder %s425, 1
      %s427 = scalar_select %p426, %s425, 1
      %s428 = scalar_lea.vmem %s6, %s427
      %s429 = sadd.s32 %s22, %s23
      %v431 = vld [vmem:[%s382] sm:$0xf]
      %v432 = vld [vmem:[%s395] sm:$0xf]
      %v433 = vld [vmem:[%s395 + $0x4] sm:$0xf]
      %v434 = vld [vmem:[%s395 + $0x8] sm:$0xf]
      %v435 = vld [vmem:[%s395 + $0xc] sm:$0xf]
      %v436 = vld [vmem:[%s395 + $0x10] sm:$0xf]
      %v437 = vld [vmem:[%s395 + $0x14] sm:$0xf]
      %v438 = vld [vmem:[%s395 + $0x18] sm:$0xf]
      %v439 = vld [vmem:[%s395 + $0x1c] sm:$0xf]
      %v440 = vld [vmem:[%s408] sm:$0xf]
      %p441 = scmp.gt.s32.totalorder %s23, 0
      %s442 = scalar_select %p441, 1, 0
      %v443 = vstv %s442
      %vm444 = vcmp.eq.s32.totalorder %v443, 1
      %v445 = vsel %vm444, %v431, 0
      %p446 = scmp.lt.s32.totalorder %s23, 0
      %s447 = scalar_select %p446, 1, 0
      %v448 = vstv %s447
      %vm449 = vcmp.eq.s32.totalorder %v448, 1
      %v450 = vsel %vm449, %v440, 0
      %v461 = vunpack.c.l.b16 %v445
      %v462 = vunpack.c.l.b16 %v432
      %v463 = vunpack.c.l.b16 %v433
      %v464 = vunpack.c.l.b16 %v434
      %v465 = vunpack.c.l.b16 %v435
      %v466 = vunpack.c.l.b16 %v436
      %v467 = vunpack.c.l.b16 %v437
      %v468 = vunpack.c.l.b16 %v438
      %v469 = vunpack.c.l.b16 %v439
      %v470 = vunpack.c.l.b16 %v450
      %v471 = vpack.c.b16 %v461, %v461
      %v472 = vpack.c.b16 %v462, %v462
      %v473 = vpack.c.b16 %v463, %v463
      %v474 = vpack.c.b16 %v464, %v464
      %v475 = vpack.c.b16 %v465, %v465
      %v476 = vpack.c.b16 %v466, %v466
      %v477 = vpack.c.b16 %v467, %v467
      %v478 = vpack.c.b16 %v468, %v468
      %v479 = vpack.c.b16 %v469, %v469
      %v480 = vpack.c.b16 %v470, %v470
      %v482 = vshrl.u32 %v471, 16
      %v484 = vrot.slane %v482, 7
      %v485 = vshll.u32 %v471, 16
      %v487 = vor.u32 %v484, %v485
      %v489 = vshrl.u32 %v472, 16
      %v491 = vrot.slane %v489, 7
      %v492 = vshll.u32 %v472, 16
      %v494 = vor.u32 %v491, %v492
      %v496 = vshrl.u32 %v473, 16
      %v498 = vrot.slane %v496, 7
      %v499 = vshll.u32 %v473, 16
      %v501 = vor.u32 %v498, %v499
      %v503 = vshrl.u32 %v474, 16
      %v505 = vrot.slane %v503, 7
      %v506 = vshll.u32 %v474, 16
      %v508 = vor.u32 %v505, %v506
      %v510 = vshrl.u32 %v475, 16
      %v512 = vrot.slane %v510, 7
      %v513 = vshll.u32 %v475, 16
      %v515 = vor.u32 %v512, %v513
      %v517 = vshrl.u32 %v476, 16
      %v519 = vrot.slane %v517, 7
      %v520 = vshll.u32 %v476, 16
      %v522 = vor.u32 %v519, %v520
      %v524 = vshrl.u32 %v477, 16
      %v526 = vrot.slane %v524, 7
      %v527 = vshll.u32 %v477, 16
      %v529 = vor.u32 %v526, %v527
      %v531 = vshrl.u32 %v478, 16
      %v533 = vrot.slane %v531, 7
      %v534 = vshll.u32 %v478, 16
      %v536 = vor.u32 %v533, %v534
      %v538 = vshrl.u32 %v479, 16
      %v540 = vrot.slane %v538, 7
      %v541 = vshll.u32 %v479, 16
      %v543 = vor.u32 %v540, %v541
      %v545 = vshrl.u32 %v480, 16
      %v547 = vrot.slane %v545, 7
      %v548 = vshll.u32 %v480, 16
      %v550 = vor.u32 %v547, %v548
      %vm561 = vcmask 1040384
      %vm562 = vsmask.f32 256
      %vm563 = vmand %vm561, %vm562
      %v564 = vsel %vm563, 0, %v487
      %v565 = vsel %vm563, 0, %v494
      %v566 = vsel %vm563, 0, %v501
      %v567 = vsel %vm563, 0, %v508
      %v568 = vsel %vm563, 0, %v515
      %v569 = vsel %vm563, 0, %v522
      %v570 = vsel %vm563, 0, %v529
      %v571 = vsel %vm563, 0, %v536
      %v572 = vsel %vm563, 0, %v543
      %v573 = vsel %vm563, 0, %v550
      %vm574 = vcmask 1044480
      %vm575 = vsmask.f32 4352
      %vm576 = vmand %vm574, %vm575
      %v577 = vsel %vm576, %v564, 0
      %v578 = vsel %vm576, %v565, 0
      %v579 = vsel %vm576, %v566, 0
      %v580 = vsel %vm576, %v567, 0
      %v581 = vsel %vm576, %v568, 0
      %v582 = vsel %vm576, %v569, 0
      %v583 = vsel %vm576, %v570, 0
      %v584 = vsel %vm576, %v571, 0
      %v585 = vsel %vm576, %v572, 0
      %v586 = vsel %vm576, %v573, 0
      %v588 = vshrl.u32 %v577, 16
      %v590 = vshll.u32 %v577, 16
      %v592 = vrot.slane %v590, 1
      %v593 = vor.u32 %v588, %v592
      %v595 = vshrl.u32 %v578, 16
      %v597 = vshll.u32 %v578, 16
      %v599 = vrot.slane %v597, 1
      %v600 = vor.u32 %v595, %v599
      %v602 = vshrl.u32 %v579, 16
      %v604 = vshll.u32 %v579, 16
      %v606 = vrot.slane %v604, 1
      %v607 = vor.u32 %v602, %v606
      %v609 = vshrl.u32 %v580, 16
      %v611 = vshll.u32 %v580, 16
      %v613 = vrot.slane %v611, 1
      %v614 = vor.u32 %v609, %v613
      %v616 = vshrl.u32 %v581, 16
      %v618 = vshll.u32 %v581, 16
      %v620 = vrot.slane %v618, 1
      %v621 = vor.u32 %v616, %v620
      %v623 = vshrl.u32 %v582, 16
      %v625 = vshll.u32 %v582, 16
      %v627 = vrot.slane %v625, 1
      %v628 = vor.u32 %v623, %v627
      %v630 = vshrl.u32 %v583, 16
      %v632 = vshll.u32 %v583, 16
      %v634 = vrot.slane %v632, 1
      %v635 = vor.u32 %v630, %v634
      %v637 = vshrl.u32 %v584, 16
      %v639 = vshll.u32 %v584, 16
      %v641 = vrot.slane %v639, 1
      %v642 = vor.u32 %v637, %v641
      %643 = vrot.lane.b32.xlu0 %v593, 4
      %v644 = vpop.permute.xlu0 %643
      %645 = vrot.lane.b32.xlu0 %v600, 4
      %v646 = vpop.permute.xlu0 %645
      %647 = vrot.lane.b32.xlu0 %v607, 4
      %v648 = vpop.permute.xlu0 %647
      %649 = vrot.lane.b32.xlu0 %v614, 4
      %v650 = vpop.permute.xlu0 %649
      %651 = vrot.lane.b32.xlu0 %v621, 4
      %v652 = vpop.permute.xlu0 %651
      %653 = vrot.lane.b32.xlu0 %v628, 4
      %v654 = vpop.permute.xlu0 %653
      %655 = vrot.lane.b32.xlu0 %v635, 4
      %v656 = vpop.permute.xlu0 %655
      %657 = vrot.lane.b32.xlu0 %v642, 4
      %v658 = vpop.permute.xlu0 %657
      %v667 = vrot.slane %v577, 1
      %v668 = vrot.slane %v578, 1
      %v669 = vrot.slane %v579, 1
      %v670 = vrot.slane %v580, 1
      %v671 = vrot.slane %v581, 1
      %v672 = vrot.slane %v582, 1
      %v673 = vrot.slane %v583, 1
      %v674 = vrot.slane %v584, 1
      %675 = vrot.lane.b32.xlu0 %v667, 8
      %v676 = vpop.permute.xlu0 %675
      %677 = vrot.lane.b32.xlu0 %v668, 8
      %v678 = vpop.permute.xlu0 %677
      %679 = vrot.lane.b32.xlu0 %v669, 8
      %v680 = vpop.permute.xlu0 %679
      %681 = vrot.lane.b32.xlu0 %v670, 8
      %v682 = vpop.permute.xlu0 %681
      %683 = vrot.lane.b32.xlu0 %v671, 8
      %v684 = vpop.permute.xlu0 %683
      %685 = vrot.lane.b32.xlu0 %v672, 8
      %v686 = vpop.permute.xlu0 %685
      %687 = vrot.lane.b32.xlu0 %v673, 8
      %v688 = vpop.permute.xlu0 %687
      %689 = vrot.lane.b32.xlu0 %v674, 8
      %v690 = vpop.permute.xlu0 %689
      %692 = vrot.lane.b32.xlu0 %v578, 12
      %v693 = vpop.permute.xlu0 %692
      %694 = vrot.lane.b32.xlu0 %v579, 12
      %v695 = vpop.permute.xlu0 %694
      %696 = vrot.lane.b32.xlu0 %v580, 12
      %v697 = vpop.permute.xlu0 %696
      %698 = vrot.lane.b32.xlu0 %v581, 12
      %v699 = vpop.permute.xlu0 %698
      %700 = vrot.lane.b32.xlu0 %v582, 12
      %v701 = vpop.permute.xlu0 %700
      %702 = vrot.lane.b32.xlu0 %v583, 12
      %v703 = vpop.permute.xlu0 %702
      %704 = vrot.lane.b32.xlu0 %v584, 12
      %v705 = vpop.permute.xlu0 %704
      %706 = vrot.lane.b32.xlu0 %v585, 12
      %v707 = vpop.permute.xlu0 %706
      %v709 = vshrl.u32 %v585, 16
      %v711 = vshll.u32 %v585, 16
      %v713 = vrot.slane %v711, 1
      %v714 = vor.u32 %v709, %v713
      %715 = vrot.lane.b32.xlu0 %v600, 16
      %v716 = vpop.permute.xlu0 %715
      %717 = vrot.lane.b32.xlu0 %v607, 16
      %v718 = vpop.permute.xlu0 %717
      %719 = vrot.lane.b32.xlu0 %v614, 16
      %v720 = vpop.permute.xlu0 %719
      %721 = vrot.lane.b32.xlu0 %v621, 16
      %v722 = vpop.permute.xlu0 %721
      %723 = vrot.lane.b32.xlu0 %v628, 16
      %v724 = vpop.permute.xlu0 %723
      %725 = vrot.lane.b32.xlu0 %v635, 16
      %v726 = vpop.permute.xlu0 %725
      %727 = vrot.lane.b32.xlu0 %v642, 16
      %v728 = vpop.permute.xlu0 %727
      %729 = vrot.lane.b32.xlu0 %v714, 16
      %v730 = vpop.permute.xlu0 %729
      %v731 = vrot.slane %v585, 1
      %732 = vrot.lane.b32.xlu0 %v668, 20
      %v733 = vpop.permute.xlu0 %732
      %734 = vrot.lane.b32.xlu0 %v669, 20
      %v735 = vpop.permute.xlu0 %734
      %736 = vrot.lane.b32.xlu0 %v670, 20
      %v737 = vpop.permute.xlu0 %736
      %738 = vrot.lane.b32.xlu0 %v671, 20
      %v739 = vpop.permute.xlu0 %738
      %740 = vrot.lane.b32.xlu0 %v672, 20
      %v741 = vpop.permute.xlu0 %740
      %742 = vrot.lane.b32.xlu0 %v673, 20
      %v743 = vpop.permute.xlu0 %742
      %744 = vrot.lane.b32.xlu0 %v674, 20
      %v745 = vpop.permute.xlu0 %744
      %746 = vrot.lane.b32.xlu0 %v731, 20
      %v747 = vpop.permute.xlu0 %746
      %749 = vrot.lane.b32.xlu0 %v579, 24
      %v750 = vpop.permute.xlu0 %749
      %751 = vrot.lane.b32.xlu0 %v580, 24
      %v752 = vpop.permute.xlu0 %751
      %753 = vrot.lane.b32.xlu0 %v581, 24
      %v754 = vpop.permute.xlu0 %753
      %755 = vrot.lane.b32.xlu0 %v582, 24
      %v756 = vpop.permute.xlu0 %755
      %757 = vrot.lane.b32.xlu0 %v583, 24
      %v758 = vpop.permute.xlu0 %757
      %759 = vrot.lane.b32.xlu0 %v584, 24
      %v760 = vpop.permute.xlu0 %759
      %761 = vrot.lane.b32.xlu0 %v585, 24
      %v762 = vpop.permute.xlu0 %761
      %763 = vrot.lane.b32.xlu0 %v586, 24
      %v764 = vpop.permute.xlu0 %763
      %v766 = vshrl.u32 %v586, 16
      %v768 = vshll.u32 %v586, 16
      %v770 = vrot.slane %v768, 1
      %v771 = vor.u32 %v766, %v770
      %772 = vrot.lane.b32.xlu0 %v607, 28
      %v773 = vpop.permute.xlu0 %772
      %774 = vrot.lane.b32.xlu0 %v614, 28
      %v775 = vpop.permute.xlu0 %774
      %776 = vrot.lane.b32.xlu0 %v621, 28
      %v777 = vpop.permute.xlu0 %776
      %778 = vrot.lane.b32.xlu0 %v628, 28
      %v779 = vpop.permute.xlu0 %778
      %780 = vrot.lane.b32.xlu0 %v635, 28
      %v781 = vpop.permute.xlu0 %780
      %782 = vrot.lane.b32.xlu0 %v642, 28
      %v783 = vpop.permute.xlu0 %782
      %784 = vrot.lane.b32.xlu0 %v714, 28
      %v785 = vpop.permute.xlu0 %784
      %786 = vrot.lane.b32.xlu0 %v771, 28
      %v787 = vpop.permute.xlu0 %786
      %v788 = vrot.slane %v586, 1
      %789 = vrot.lane.b32.xlu0 %v669, 32
      %v790 = vpop.permute.xlu0 %789
      %791 = vrot.lane.b32.xlu0 %v670, 32
      %v792 = vpop.permute.xlu0 %791
      %793 = vrot.lane.b32.xlu0 %v671, 32
      %v794 = vpop.permute.xlu0 %793
      %795 = vrot.lane.b32.xlu0 %v672, 32
      %v796 = vpop.permute.xlu0 %795
      %797 = vrot.lane.b32.xlu0 %v673, 32
      %v798 = vpop.permute.xlu0 %797
      %799 = vrot.lane.b32.xlu0 %v674, 32
      %v800 = vpop.permute.xlu0 %799
      %801 = vrot.lane.b32.xlu0 %v731, 32
      %v802 = vpop.permute.xlu0 %801
      %803 = vrot.lane.b32.xlu0 %v788, 32
      %v804 = vpop.permute.xlu0 %803
      %vm805 = vcmask 31744
      %v807 = vsel %vm805, %v577, %v644
      %v809 = vsel %vm805, %v578, %v646
      %v811 = vsel %vm805, %v579, %v648
      %v813 = vsel %vm805, %v580, %v650
      %v815 = vsel %vm805, %v581, %v652
      %v817 = vsel %vm805, %v582, %v654
      %v819 = vsel %vm805, %v583, %v656
      %v821 = vsel %vm805, %v584, %v658
      %vm822 = vcmask 64512
      %v824 = vsel %vm822, %v807, %v676
      %v826 = vsel %vm822, %v809, %v678
      %v828 = vsel %vm822, %v811, %v680
      %v830 = vsel %vm822, %v813, %v682
      %v832 = vsel %vm822, %v815, %v684
      %v834 = vsel %vm822, %v817, %v686
      %v836 = vsel %vm822, %v819, %v688
      %v838 = vsel %vm822, %v821, %v690
      %vm839 = vcmask 97280
      %v841 = vsel %vm839, %v824, %v693
      %v843 = vsel %vm839, %v826, %v695
      %v845 = vsel %vm839, %v828, %v697
      %v847 = vsel %vm839, %v830, %v699
      %v849 = vsel %vm839, %v832, %v701
      %v851 = vsel %vm839, %v834, %v703
      %v853 = vsel %vm839, %v836, %v705
      %v855 = vsel %vm839, %v838, %v707
      %vm856 = vcmask 130048
      %v858 = vsel %vm856, %v841, %v716
      %v860 = vsel %vm856, %v843, %v718
      %v862 = vsel %vm856, %v845, %v720
      %v864 = vsel %vm856, %v847, %v722
      %v866 = vsel %vm856, %v849, %v724
      %v868 = vsel %vm856, %v851, %v726
      %v870 = vsel %vm856, %v853, %v728
      %v872 = vsel %vm856, %v855, %v730
      %vm873 = vcmask 162816
      %v875 = vsel %vm873, %v858, %v733
      %v877 = vsel %vm873, %v860, %v735
      %v879 = vsel %vm873, %v862, %v737
      %v881 = vsel %vm873, %v864, %v739
      %v883 = vsel %vm873, %v866, %v741
      %v885 = vsel %vm873, %v868, %v743
      %v887 = vsel %vm873, %v870, %v745
      %v889 = vsel %vm873, %v872, %v747
      %vm890 = vcmask 195584
      %v892 = vsel %vm890, %v875, %v750
      %v894 = vsel %vm890, %v877, %v752
      %v896 = vsel %vm890, %v879, %v754
      %v898 = vsel %vm890, %v881, %v756
      %v900 = vsel %vm890, %v883, %v758
      %v902 = vsel %vm890, %v885, %v760
      %v904 = vsel %vm890, %v887, %v762
      %v906 = vsel %vm890, %v889, %v764
      %vm907 = vcmask 228352
      %v909 = vsel %vm907, %v892, %v773
      %v911 = vsel %vm907, %v894, %v775
      %v913 = vsel %vm907, %v896, %v777
      %v915 = vsel %vm907, %v898, %v779
      %v917 = vsel %vm907, %v900, %v781
      %v919 = vsel %vm907, %v902, %v783
      %v921 = vsel %vm907, %v904, %v785
      %v923 = vsel %vm907, %v906, %v787
      %vm924 = vcmask 261120
      %v926 = vsel %vm924, %v909, %v790
      %v928 = vsel %vm924, %v911, %v792
      %v930 = vsel %vm924, %v913, %v794
      %v932 = vsel %vm924, %v915, %v796
      %v934 = vsel %vm924, %v917, %v798
      %v936 = vsel %vm924, %v919, %v800
      %v938 = vsel %vm924, %v921, %v802
      %v940 = vsel %vm924, %v923, %v804
      %v941 = vld [vmem:[%s3] sm:$0xf]
      %v942 = vld [vmem:[%s3 + $0x4] sm:$0xf]
      %v943 = vld [vmem:[%s3 + $0x8] sm:$0xf]
      %v944 = vld [vmem:[%s3 + $0xc] sm:$0xf]
      %v945 = vld [vmem:[%s3 + $0x10] sm:$0x3]
      %v954 = vunpack.c.l.b16 %v926
      %v955 = vunpack.c.l.b16 %v928
      %v956 = vunpack.c.l.b16 %v930
      %v957 = vunpack.c.l.b16 %v932
      %v958 = vunpack.c.l.b16 %v934
      %v959 = vunpack.c.l.b16 %v936
      %v960 = vunpack.c.l.b16 %v938
      %v961 = vunpack.c.l.b16 %v940
      %v962 = vpack.c.b16 %v955, %v954
      %v963 = vpack.c.b16 %v957, %v956
      %v964 = vpack.c.b16 %v959, %v958
      %v965 = vpack.c.b16 %v961, %v960
      %v971 = vunpack.c.l.b16 %v941
      %v972 = vunpack.c.l.b16 %v942
      %v973 = vunpack.c.l.b16 %v943
      %v974 = vunpack.c.l.b16 %v944
      %v975 = vunpack.c.l.b16 %v945
      %v976 = vpack.c.b16 %v972, %v971
      %v977 = vpack.c.b16 %v974, %v973
      %v978 = vpack.c.b16 %v975, %v975
      %vm981 = vcmask 293888
      %v983 = vsel %vm981, %v962, 0
      %v986 = vsel %vm981, %v963, 0
      %v989 = vsel %vm981, %v964, 0
      %v992 = vsel %vm981, %v965, 0
      %vm994 = vcmask 1041408
      %v996 = vsel %vm994, %v978, 0
      %998 = vmatprep.subr.bf16.mxu0 0
      %999 = vmatpush1.bf16.msra.mxu0 0
      %1000 = vmatprep.subr.bf16.mxu0 0
      %1001 = vmatpush1.bf16.msra.mxu0 0
      %1002 = vmatprep.subr.bf16.mxu0 0
      %1003 = vmatpush1.bf16.msra.mxu0 0
      %1004 = vmatprep.subr.bf16.mxu0 0
      %1005 = vmatpush1.bf16.msra.mxu0 0
      %1006 = vmatprep.subr.bf16.mxu0 0
      %1007 = vmatpush1.bf16.msra.mxu0 0
      %1008 = vmatprep.subr.bf16.mxu0 0
      %1009 = vmatpush1.bf16.msra.mxu0 %v996
      %1010 = vmatprep.subr.bf16.mxu0 0
      %1011 = vmatpush1.bf16.msra.mxu0 %v977
      %1012 = vmatprep.subr.bf16.mxu0 0
      %1013 = vmatpush1.bf16.msra.mxu0 %v976
      %1014 = vmatprep.subr.bf16.mxu0 0
      %1015 = vmatpush2.bf16.msra.mxu0 0
      %1016 = vmatprep.subr.bf16.mxu0 0
      %1017 = vmatpush2.bf16.msra.mxu0 0
      %1018 = vmatprep.subr.bf16.mxu0 0
      %1019 = vmatpush2.bf16.msra.mxu0 0
      %1020 = vmatprep.subr.bf16.mxu0 0
      %1021 = vmatpush2.bf16.msra.mxu0 0
      %1022 = vmatprep.subr.bf16.mxu0 0
      %1023 = vmatpush2.bf16.msra.mxu0 0
      %1024 = vmatprep.subr.bf16.mxu0 0
      %1025 = vmatpush2.bf16.msra.mxu0 0
      %1026 = vmatprep.subr.bf16.mxu0 0
      %1027 = vmatpush2.bf16.msra.mxu0 0
      %1028 = vmatprep.subr.bf16.mxu0 0
      %1029 = vmatpush2.bf16.msra.mxu0 0
      %1030 = vmatprep.mubr.bf16.mxu0 0
      %1031 = vmatmul.mubr.bf16.gmra.mxu0 %v983
      %v1032 = vpop.f32.mrf.mxu0
      %v1033 = vadd.f32 0.0, %v1032
      %v1034 = vpop.f32.mrf.mxu0
      %v1035 = vpop.f32.mrf.mxu0
      %v1036 = vadd.f32 0.0, %v1035
      %v1037 = vpop.f32.mrf.mxu0
      %1038 = vmatprep.mubr.bf16.mxu0 0
      %1039 = vmatmul.mubr.bf16.gmra.mxu0 %v986
      %v1040 = vpop.f32.mrf.mxu0
      %v1041 = vadd.f32 0.0, %v1040
      %v1042 = vpop.f32.mrf.mxu0
      %v1043 = vpop.f32.mrf.mxu0
      %v1044 = vadd.f32 0.0, %v1043
      %v1045 = vpop.f32.mrf.mxu0
      %1046 = vmatprep.mubr.bf16.mxu0 0
      %1047 = vmatmul.mubr.bf16.gmra.mxu0 %v989
      %v1048 = vpop.f32.mrf.mxu0
      %v1049 = vadd.f32 0.0, %v1048
      %v1050 = vpop.f32.mrf.mxu0
      %v1051 = vpop.f32.mrf.mxu0
      %v1052 = vadd.f32 0.0, %v1051
      %v1053 = vpop.f32.mrf.mxu0
      %1054 = vmatprep.mubr.bf16.mxu0 0
      %1055 = vmatmul.mubr.bf16.gmra.mxu0 %v992
      %v1056 = vpop.f32.mrf.mxu0
      %v1057 = vadd.f32 0.0, %v1056
      %v1058 = vpop.f32.mrf.mxu0
      %v1059 = vpop.f32.mrf.mxu0
      %v1060 = vadd.f32 0.0, %v1059
      %v1061 = vpop.f32.mrf.mxu0
      %1062 = vdwg.mxu0
      %v1063 = vpack.c.bf16 %v1036, %v1033
      %v1064 = vpack.c.bf16 %v1044, %v1041
      %v1065 = vpack.c.bf16 %v1052, %v1049
      %v1066 = vpack.c.bf16 %v1060, %v1057
      %v1071 = vunpack.c.l.b16 %v1063
      %v1072 = vunpack.c.h.b16 %v1063
      %v1073 = vunpack.c.l.b16 %v1064
      %v1074 = vunpack.c.h.b16 %v1064
      %v1075 = vunpack.c.l.b16 %v1065
      %v1076 = vunpack.c.h.b16 %v1065
      %v1077 = vunpack.c.l.b16 %v1066
      %v1078 = vunpack.c.h.b16 %v1066
      %v1079 = vpack.c.b16 %v1071, %v1071
      %v1080 = vpack.c.b16 %v1072, %v1072
      %v1081 = vpack.c.b16 %v1073, %v1073
      %v1082 = vpack.c.b16 %v1074, %v1074
      %v1083 = vpack.c.b16 %v1075, %v1075
      %v1084 = vpack.c.b16 %v1076, %v1076
      %v1085 = vpack.c.b16 %v1077, %v1077
      %v1086 = vpack.c.b16 %v1078, %v1078
      %1095 = vst [vmem:[%s418] sm:$0xf] %v1079
      %1096 = vst [vmem:[%s418 + $0x4] sm:$0xf] %v1080
      %1097 = vst [vmem:[%s418 + $0x8] sm:$0xf] %v1081
      %1098 = vst [vmem:[%s418 + $0xc] sm:$0xf] %v1082
      %1099 = vst [vmem:[%s418 + $0x10] sm:$0xf] %v1083
      %1100 = vst [vmem:[%s418 + $0x14] sm:$0xf] %v1084
      %1101 = vst [vmem:[%s418 + $0x18] sm:$0xf] %v1085
      %1102 = vst [vmem:[%s418 + $0x1c] sm:$0xf] %v1086
      %v1103 = vadd.f32 %v1033, %v1036
      %v1104 = vadd.f32 %v1103, %v1041
      %v1105 = vadd.f32 %v1104, %v1044
      %v1106 = vadd.f32 %v1105, %v1049
      %v1107 = vadd.f32 %v1106, %v1052
      %v1108 = vadd.f32 %v1107, %v1057
      %v1109 = vadd.f32 %v1108, %v1060
      %v1110 = vrot.slane %v1109, 4
      %v1111 = vadd.f32 %v1109, %v1110
      %v1112 = vrot.slane %v1111, 2
      %v1113 = vadd.f32 %v1111, %v1112
      %v1114 = vrot.slane %v1113, 1
      %v1115 = vadd.f32 %v1113, %v1114
      %v1116 = vmul.f32 %v1115, 0.015625
      %v1117 = vsub.f32 %v1033, %v1116
      %v1118 = vsub.f32 %v1036, %v1116
      %v1119 = vsub.f32 %v1041, %v1116
      %v1120 = vsub.f32 %v1044, %v1116
      %v1121 = vsub.f32 %v1049, %v1116
      %v1122 = vsub.f32 %v1052, %v1116
      %v1123 = vsub.f32 %v1057, %v1116
      %v1124 = vsub.f32 %v1060, %v1116
      %v1125 = vmul.f32 %v1117, %v1117
      %v1126 = vmul.f32 %v1118, %v1118
      %v1127 = vmul.f32 %v1119, %v1119
      %v1128 = vmul.f32 %v1120, %v1120
      %v1129 = vmul.f32 %v1121, %v1121
      %v1130 = vmul.f32 %v1122, %v1122
      %v1131 = vmul.f32 %v1123, %v1123
      %v1132 = vmul.f32 %v1124, %v1124
      %v1133 = vadd.f32 %v1125, %v1126
      %v1134 = vadd.f32 %v1133, %v1127
      %v1135 = vadd.f32 %v1134, %v1128
      %v1136 = vadd.f32 %v1135, %v1129
      %v1137 = vadd.f32 %v1136, %v1130
      %v1138 = vadd.f32 %v1137, %v1131
      %v1139 = vadd.f32 %v1138, %v1132
      %v1140 = vrot.slane %v1139, 4
      %v1141 = vadd.f32 %v1139, %v1140
      %v1142 = vrot.slane %v1141, 2
      %v1143 = vadd.f32 %v1141, %v1142
      %v1144 = vrot.slane %v1143, 1
      %v1145 = vadd.f32 %v1143, %v1144
      %1146 = vst [vmem:[%s423] sm:$0x1] %v1115
      %1147 = vst [vmem:[%s428] sm:$0x1] %v1145
      %s1148 = sadd.s32 %s22, %s23
      %p1149 = scmp.lt.s32.totalorder %s1148, 1
      %s1150 = scalar_select %p1149, %s1148, 1
      %s1151 = smul.addr %s1150, 8
      %s1152 = smul.addr %s1151, 4
      %s1153 = scalar_lea.vmem %s4, %s1152
      %s1154 = sadd.s32 %s22, %s23
      %p1155 = scmp.lt.s32.totalorder %s1154, 1
      %s1156 = scalar_select %p1155, %s1154, 1
      %s1157 = scalar_lea.vmem %s5, %s1156
      %s1158 = sadd.s32 %s22, %s23
      %p1159 = scmp.lt.s32.totalorder %s1158, 1
      %s1160 = scalar_select %p1159, %s1158, 1
      %s1161 = scalar_lea.vmem %s6, %s1160
      // Predicated region
      $region37: #{down_block_forward.3} parent=35 // pred_check
        %p1162 = pneg %p171
      $region38: #{down_block_forward.3} parent=35 // pred_check_branch
        %1164 = sbr.rel (%p1162) target = $region40
      $region39: #{down_block_forward.3} parent=35 // pred_region
        %s1165 = sadd.s32 %s22, %s23
      $region40: #{down_block_forward.3} parent=35 // pred_fallthru
        _
      // Predicated region
      $region41: #{down_block_forward.3} parent=35 // pred_check
        %p1166 = pneg %p199
      $region42: #{down_block_forward.3} parent=35 // pred_check_branch
        %1168 = sbr.rel (%p1166) target = $region44
      $region43: #{down_block_forward.3} parent=35 // pred_region
        %s1169 = sadd.s32 %s22, %s23
      $region44: #{down_block_forward.3} parent=35 // pred_fallthru
        _
      // Predicated region
      $region45: #{down_block_forward.3} parent=35 // pred_check
        %p1170 = pneg %p227
      $region46: #{down_block_forward.3} parent=35 // pred_check_branch
        %1172 = sbr.rel (%p1170) target = $region48
      $region47: #{down_block_forward.3} parent=35 // pred_region
        %s1173 = sadd.s32 %s22, %s23
      $region48: #{down_block_forward.3} parent=35 // pred_fallthru
        _
    $region36: #{down_block_forward.3} parent=5 // pred_fallthru
      _
    %p1174 = scmp.le.s32.totalorder 2, %s13
    // Predicated region
    $region49: #{down_block_forward.3} parent=5 // pred_check
      %p1175 = pneg %p1174
    $region50: #{down_block_forward.3} parent=5 // pred_check_branch
      %1177 = sbr.rel (%p1175) target = $region52
    $region51: #{down_block_forward.3} parent=5 // pred_region
      %s1178 = ssub.s32 %s13, 2
      // Predicated region
      $region53: #{down_block_forward.3} parent=51 // pred_check
        %p1179 = pneg %p177
      $region54: #{down_block_forward.3} parent=51 // pred_check_branch
        %1181 = sbr.rel (%p1179) target = $region56
      $region55: #{down_block_forward.3} parent=51 // pred_region
        %s1182 = sadd.s32 %s24, %s25
        %p1183 = scmp.lt.s32.totalorder %s1182, 1
        %s1184 = scalar_select %p1183, %s1182, 1
        %s1185 = smul.addr %s1184, 8
        %s1186 = smul.addr %s1185, 4
        %s1187 = scalar_lea.vmem %s4, %s1186
      $region56: #{down_block_forward.3} parent=51 // pred_fallthru
        _
      // Predicated region
      $region57: #{down_block_forward.3} parent=51 // pred_check
        %p1188 = pneg %p205
      $region58: #{down_block_forward.3} parent=51 // pred_check_branch
        %1190 = sbr.rel (%p1188) target = $region60
      $region59: #{down_block_forward.3} parent=51 // pred_region
        %s1191 = sadd.s32 %s24, %s25
        %p1192 = scmp.lt.s32.totalorder %s1191, 1
        %s1193 = scalar_select %p1192, %s1191, 1
        %s1194 = scalar_lea.vmem %s5, %s1193
      $region60: #{down_block_forward.3} parent=51 // pred_fallthru
        _
      // Predicated region
      $region61: #{down_block_forward.3} parent=51 // pred_check
        %p1195 = pneg %p233
      $region62: #{down_block_forward.3} parent=51 // pred_check_branch
        %1197 = sbr.rel (%p1195) target = $region64
      $region63: #{down_block_forward.3} parent=51 // pred_region
        %s1198 = sadd.s32 %s24, %s25
        %p1199 = scmp.lt.s32.totalorder %s1198, 1
        %s1200 = scalar_select %p1199, %s1198, 1
        %s1201 = scalar_lea.vmem %s6, %s1200
      $region64: #{down_block_forward.3} parent=51 // pred_fallthru
        _
    $region52: #{down_block_forward.3} parent=5 // pred_fallthru
      _
  $region6: #{down_block_forward.3} parent=0 // loop_footer
    %s17 = sadd.s32 1, %s13
  $region7: #{down_block_forward.3} parent=0 // loop_footer_branch
    %12 = sbr.rel target = $region3
  $region8: #{down_block_forward.3} parent=0 // loop_exit
    _

// kernel: down_block_forward.4
$region0: #{down_block_forward.4}
  #allocation0 [shape = 'u32[]', space=smem, size = 0x4, offset = 0x4, fixed_abs, tag = 'smem constant byte address 0x4 - core index']
  #allocation1 [shape = 'u32[144,128]{1,0:T(1,128)}', space=vmem, size = 0x12000, scoped, tag = 'internal scratch']
  %s0 = inlined_call_operand.vmem [shape: bf16[2,8,8,128], index: 0, kind: input, shape index: {}, may-alias: {0,1,2}]
  %s1 = inlined_call_operand.vmem [shape: bf16[2,8,8,128], index: 1, kind: input, shape index: {}, may-alias: {0,1,2}]
  %s2 = inlined_call_operand.vmem [shape: bf16[2,8,8,128], index: 2, kind: input, shape index: {}, may-alias: {0,1,2}]
  %s3 = inlined_call_operand.vmem [shape: f32[1,1,128], index: 3, kind: input, shape index: {}]
  %s4 = inlined_call_operand.vmem [shape: f32[1,1,128], index: 4, kind: input, shape index: {}]
  %s5 = inlined_call_operand.vmem [shape: bf16[1152,128], index: 5, kind: input, shape index: {}]
  %s6 = inlined_call_operand.vmem [shape: bf16[2,64,128], index: 6, kind: output, shape index: {0}]
  %s7 = inlined_call_operand.vmem [shape: f32[2,1,128], index: 7, kind: output, shape index: {1}]
  %s8 = inlined_call_operand.vmem [shape: f32[2,1,128], index: 8, kind: output, shape index: {2}]
  %9 = xla_tuple %s6, %s7, %s8
  %s10 = sld [smem:[#allocation0]]
  $region73: #{down_block_forward.4} parent=0
    _
  %s12 = ssub.s32 1, %s10
  %s13 = scalar_select 0, %s12, %s10
  loop: start=0, step=1, limit=4
  $region2: #{down_block_forward.4} parent=0 // loop_pre_header
    _
  $region3: #{down_block_forward.4} parent=0 // loop_header
    %s15 = sphi 0, %s19
    %p16 = scmp.ge.s32.totalorder %s15, 4
    %s22 = sphi 0, %s34
    %s23 = sphi 0, %s30
    %s24 = sphi 0, %s22
    %s25 = sphi 0, %s23
    %s26 = sphi 0, %s24
    %s27 = sphi 0, %s25
    %s47 = sphi 0, %s49
    %s50 = sphi 0, %s47
    %s51 = sphi 0, %s50
    %s67 = sphi 0, %s51
    %s75 = sphi 0, %s77
    %s78 = sphi 0, %s75
    %s79 = sphi 0, %s78
    %s95 = sphi 0, %s79
    %s111 = sphi 0, %s113
    %s114 = sphi 0, %s111
    %s115 = sphi 0, %s114
    %s131 = sphi 0, %s115
    %s135 = sphi 0, %s135
    %s137 = sphi 0, %s135
    %s138 = sphi 0, %s137
    %s152 = sphi 0, %s138
    %s156 = sphi 0, %s156
    %s158 = sphi 0, %s156
    %s159 = sphi 0, %s158
    %s173 = sphi 0, %s159
    %s177 = sphi 0, %s177
    %s179 = sphi 0, %s177
    %s180 = sphi 0, %s179
    %s194 = sphi 0, %s180
    %s202 = sphi 0, %s204
    %s205 = sphi 0, %s202
    %s206 = sphi 0, %s205
    %s222 = sphi 0, %s206
    %s230 = sphi 0, %s232
    %s233 = sphi 0, %s230
    %s234 = sphi 0, %s233
    %s250 = sphi 0, %s234
    %s258 = sphi 0, %s260
    %s261 = sphi 0, %s258
    %s262 = sphi 0, %s261
    %s278 = sphi 0, %s262
  $region4: #{down_block_forward.4} parent=0 // loop_header_branch
    %18 = sbr.rel (%p16) target = $region8
  $region5: #{down_block_forward.4} parent=0 // loop_body
    %s20 = ssub.s32 %s15, 1
    %s21 = ssub.s32 %s15, 2
    %s28 = sadd.s32 1, %s23
    %p29 = scmp.ge.s32.totalorder %s28, 1
    %s30 = scalar_select %p29, 0, %s28
    %s31 = sadd.s32 1, %s22
    %s32 = scalar_select %p29, %s31, %s22
    %p33 = scmp.ge.s32.totalorder %s32, 2
    %s34 = scalar_select %p33, 0, %s32
    %s35 = smul.u32 %s23, 8
    %s36 = ssub.s32 %s35, 1
    %p37 = scmp.gt.s32.totalorder %s36, 0
    %s38 = scalar_select %p37, %s36, 0
    %s39 = smul.u32 %s30, 8
    %s40 = ssub.s32 %s39, 1
    %p41 = scmp.gt.s32.totalorder %s40, 0
    %s42 = scalar_select %p41, %s40, 0
    %s43 = ssub.s32 %s22, %s34
    %s44 = ssub.s32 %s38, %s42
    %s45 = sor.u32 %s43, %s44
    %p46 = scmp.eq.s32.totalorder %s45, 0
    %s48 = sadd.s32 %s47, 1
    %s49 = scalar_select %p46, %s47, %s48
    %p52 = pneg %p46
    %p53 = scmp.eq.s32.totalorder %s15, 1
    %p54 = por %p52, %p53
    %p55 = scmp.ne.s32.totalorder %s47, %s50
    %p56 = scmp.eq.s32.totalorder %s15, 0
    %p57 = por %p55, %p56
    %p58 = scmp.ne.s32.totalorder %s47, %s50
    %p59 = scmp.eq.s32.totalorder %s20, 1
    %p60 = por %p58, %p59
    %p61 = scmp.ne.s32.totalorder %s50, %s51
    %p62 = scmp.eq.s32.totalorder %s20, 0
    %p63 = por %p61, %p62
    %p64 = scmp.ne.s32.totalorder %s50, %s51
    %p65 = scmp.eq.s32.totalorder %s21, 1
    %p66 = por %p64, %p65
    %p68 = scmp.ne.s32.totalorder %s51, %s67
    %p69 = scmp.eq.s32.totalorder %s21, 0
    %p70 = por %p68, %p69
    %s71 = ssub.s32 %s22, %s34
    %s72 = ssub.s32 %s23, %s30
    %s73 = sor.u32 %s71, %s72
    %p74 = scmp.eq.s32.totalorder %s73, 0
    %s76 = sadd.s32 %s75, 1
    %s77 = scalar_select %p74, %s75, %s76
    %p80 = pneg %p74
    %p81 = scmp.eq.s32.totalorder %s15, 1
    %p82 = por %p80, %p81
    %p83 = scmp.ne.s32.totalorder %s75, %s78
    %p84 = scmp.eq.s32.totalorder %s15, 0
    %p85 = por %p83, %p84
    %p86 = scmp.ne.s32.totalorder %s75, %s78
    %p87 = scmp.eq.s32.totalorder %s20, 1
    %p88 = por %p86, %p87
    %p89 = scmp.ne.s32.totalorder %s78, %s79
    %p90 = scmp.eq.s32.totalorder %s20, 0
    %p91 = por %p89, %p90
    %p92 = scmp.ne.s32.totalorder %s78, %s79
    %p93 = scmp.eq.s32.totalorder %s21, 1
    %p94 = por %p92, %p93
    %p96 = scmp.ne.s32.totalorder %s79, %s95
    %p97 = scmp.eq.s32.totalorder %s21, 0
    %p98 = por %p96, %p97
    %s99 = sadd.s32 %s23, 1
    %s100 = smul.u32 %s99, 8
    %p101 = scmp.lt.s32.totalorder %s100, 7
    %s102 = scalar_select %p101, %s100, 7
    %s103 = sadd.s32 %s30, 1
    %s104 = smul.u32 %s103, 8
    %p105 = scmp.lt.s32.totalorder %s104, 7
    %s106 = scalar_select %p105, %s104, 7
    %s107 = ssub.s32 %s22, %s34
    %s108 = ssub.s32 %s102, %s106
    %s109 = sor.u32 %s107, %s108
    %p110 = scmp.eq.s32.totalorder %s109, 0
    %s112 = sadd.s32 %s111, 1
    %s113 = scalar_select %p110, %s111, %s112
    %p116 = pneg %p110
    %p117 = scmp.eq.s32.totalorder %s15, 1
    %p118 = por %p116, %p117
    %p119 = scmp.ne.s32.totalorder %s111, %s114
    %p120 = scmp.eq.s32.totalorder %s15, 0
    %p121 = por %p119, %p120
    %p122 = scmp.ne.s32.totalorder %s111, %s114
    %p123 = scmp.eq.s32.totalorder %s20, 1
    %p124 = por %p122, %p123
    %p125 = scmp.ne.s32.totalorder %s114, %s115
    %p126 = scmp.eq.s32.totalorder %s20, 0
    %p127 = por %p125, %p126
    %p128 = scmp.ne.s32.totalorder %s114, %s115
    %p129 = scmp.eq.s32.totalorder %s21, 1
    %p130 = por %p128, %p129
    %p132 = scmp.ne.s32.totalorder %s115, %s131
    %p133 = scmp.eq.s32.totalorder %s21, 0
    %p134 = por %p132, %p133
    %s136 = sadd.s32 %s135, 1
    %p139 = scmp.eq.s32.totalorder %s15, 1
    %p140 = scmp.ne.s32.totalorder %s135, %s137
    %p141 = scmp.eq.s32.totalorder %s15, 0
    %p142 = por %p140, %p141
    %p143 = scmp.ne.s32.totalorder %s135, %s137
    %p144 = scmp.eq.s32.totalorder %s20, 1
    %p145 = por %p143, %p144
    %p146 = scmp.ne.s32.totalorder %s137, %s138
    %p147 = scmp.eq.s32.totalorder %s20, 0
    %p148 = por %p146, %p147
    %p149 = scmp.ne.s32.totalorder %s137, %s138
    %p150 = scmp.eq.s32.totalorder %s21, 1
    %p151 = por %p149, %p150
    %p153 = scmp.ne.s32.totalorder %s138, %s152
    %p154 = scmp.eq.s32.totalorder %s21, 0
    %p155 = por %p153, %p154
    %s157 = sadd.s32 %s156, 1
    %p160 = scmp.eq.s32.totalorder %s15, 1
    %p161 = scmp.ne.s32.totalorder %s156, %s158
    %p162 = scmp.eq.s32.totalorder %s15, 0
    %p163 = por %p161, %p162
    %p164 = scmp.ne.s32.totalorder %s156, %s158
    %p165 = scmp.eq.s32.totalorder %s20, 1
    %p166 = por %p164, %p165
    %p167 = scmp.ne.s32.totalorder %s158, %s159
    %p168 = scmp.eq.s32.totalorder %s20, 0
    %p169 = por %p167, %p168
    %p170 = scmp.ne.s32.totalorder %s158, %s159
    %p171 = scmp.eq.s32.totalorder %s21, 1
    %p172 = por %p170, %p171
    %p174 = scmp.ne.s32.totalorder %s159, %s173
    %p175 = scmp.eq.s32.totalorder %s21, 0
    %p176 = por %p174, %p175
    %s178 = sadd.s32 %s177, 1
    %p181 = scmp.eq.s32.totalorder %s15, 1
    %p182 = scmp.ne.s32.totalorder %s177, %s179
    %p183 = scmp.eq.s32.totalorder %s15, 0
    %p184 = por %p182, %p183
    %p185 = scmp.ne.s32.totalorder %s177, %s179
    %p186 = scmp.eq.s32.totalorder %s20, 1
    %p187 = por %p185, %p186
    %p188 = scmp.ne.s32.totalorder %s179, %s180
    %p189 = scmp.eq.s32.totalorder %s20, 0
    %p190 = por %p188, %p189
    %p191 = scmp.ne.s32.totalorder %s179, %s180
    %p192 = scmp.eq.s32.totalorder %s21, 1
    %p193 = por %p191, %p192
    %p195 = scmp.ne.s32.totalorder %s180, %s194
    %p196 = scmp.eq.s32.totalorder %s21, 0
    %p197 = por %p195, %p196
    %s198 = sadd.s32 %s22, %s23
    %s199 = sadd.s32 %s34, %s30
    %s200 = ssub.s32 %s198, %s199
    %p201 = scmp.eq.s32.totalorder %s200, 0
    %s203 = sadd.s32 %s202, 1
    %s204 = scalar_select %p201, %s202, %s203
    %p207 = pneg %p201
    %p208 = scmp.eq.s32.totalorder %s15, 1
    %p209 = por %p207, %p208
    %p210 = scmp.ne.s32.totalorder %s202, %s205
    %p211 = scmp.eq.s32.totalorder %s15, 0
    %p212 = por %p210, %p211
    %p213 = scmp.ne.s32.totalorder %s202, %s205
    %p214 = scmp.eq.s32.totalorder %s20, 1
    %p215 = por %p213, %p214
    %p216 = scmp.ne.s32.totalorder %s205, %s206
    %p217 = scmp.eq.s32.totalorder %s20, 0
    %p218 = por %p216, %p217
    %p219 = scmp.ne.s32.totalorder %s205, %s206
    %p220 = scmp.eq.s32.totalorder %s21, 1
    %p221 = por %p219, %p220
    %p223 = scmp.ne.s32.totalorder %s206, %s222
    %p224 = scmp.eq.s32.totalorder %s21, 0
    %p225 = por %p223, %p224
    %s226 = sadd.s32 %s22, %s23
    %s227 = sadd.s32 %s34, %s30
    %s228 = ssub.s32 %s226, %s227
    %p229 = scmp.eq.s32.totalorder %s228, 0
    %s231 = sadd.s32 %s230, 1
    %s232 = scalar_select %p229, %s230, %s231
    %p235 = pneg %p229
    %p236 = scmp.eq.s32.totalorder %s15, 1
    %p237 = por %p235, %p236
    %p238 = scmp.ne.s32.totalorder %s230, %s233
    %p239 = scmp.eq.s32.totalorder %s15, 0
    %p240 = por %p238, %p239
    %p241 = scmp.ne.s32.totalorder %s230, %s233
    %p242 = scmp.eq.s32.totalorder %s20, 1
    %p243 = por %p241, %p242
    %p244 = scmp.ne.s32.totalorder %s233, %s234
    %p245 = scmp.eq.s32.totalorder %s20, 0
    %p246 = por %p244, %p245
    %p247 = scmp.ne.s32.totalorder %s233, %s234
    %p248 = scmp.eq.s32.totalorder %s21, 1
    %p249 = por %p247, %p248
    %p251 = scmp.ne.s32.totalorder %s234, %s250
    %p252 = scmp.eq.s32.totalorder %s21, 0
    %p253 = por %p251, %p252
    %s254 = sadd.s32 %s22, %s23
    %s255 = sadd.s32 %s34, %s30
    %s256 = ssub.s32 %s254, %s255
    %p257 = scmp.eq.s32.totalorder %s256, 0
    %s259 = sadd.s32 %s258, 1
    %s260 = scalar_select %p257, %s258, %s259
    %p263 = pneg %p257
    %p264 = scmp.eq.s32.totalorder %s15, 1
    %p265 = por %p263, %p264
    %p266 = scmp.ne.s32.totalorder %s258, %s261
    %p267 = scmp.eq.s32.totalorder %s15, 0
    %p268 = por %p266, %p267
    %p269 = scmp.ne.s32.totalorder %s258, %s261
    %p270 = scmp.eq.s32.totalorder %s20, 1
    %p271 = por %p269, %p270
    %p272 = scmp.ne.s32.totalorder %s261, %s262
    %p273 = scmp.eq.s32.totalorder %s20, 0
    %p274 = por %p272, %p273
    %p275 = scmp.ne.s32.totalorder %s261, %s262
    %p276 = scmp.eq.s32.totalorder %s21, 1
    %p277 = por %p275, %p276
    %p279 = scmp.ne.s32.totalorder %s262, %s278
    %p280 = scmp.eq.s32.totalorder %s21, 0
    %p281 = por %p279, %p280
    %p282 = scmp.le.s32.totalorder 1, %s15
    %p283 = scmp.lt.s32.totalorder %s15, 3
    %p284 = pnand %p282, %p283
    %p285 = pneg %p284
    // Predicated region
    $region9: #{down_block_forward.4} parent=5 // pred_check
      _
    $region10: #{down_block_forward.4} parent=5 // pred_check_branch
      %287 = sbr.rel (%p284) target = $region12
    $region11: #{down_block_forward.4} parent=5 // pred_region
      %s288 = ssub.s32 %s15, 1
      // Predicated region
      $region13: #{down_block_forward.4} parent=11 // pred_check
        %p289 = pneg %p148
      $region14: #{down_block_forward.4} parent=11 // pred_check_branch
        %291 = sbr.rel (%p289) target = $region16
      $region15: #{down_block_forward.4} parent=11 // pred_region
        _
      $region16: #{down_block_forward.4} parent=11 // pred_fallthru
        _
      // Predicated region
      $region17: #{down_block_forward.4} parent=11 // pred_check
        %p292 = pneg %p169
      $region18: #{down_block_forward.4} parent=11 // pred_check_branch
        %294 = sbr.rel (%p292) target = $region20
      $region19: #{down_block_forward.4} parent=11 // pred_region
        _
      $region20: #{down_block_forward.4} parent=11 // pred_fallthru
        _
      // Predicated region
      $region21: #{down_block_forward.4} parent=11 // pred_check
        %p295 = pneg %p190
      $region22: #{down_block_forward.4} parent=11 // pred_check_branch
        %297 = sbr.rel (%p295) target = $region24
      $region23: #{down_block_forward.4} parent=11 // pred_region
        _
      $region24: #{down_block_forward.4} parent=11 // pred_fallthru
        _
    $region12: #{down_block_forward.4} parent=5 // pred_fallthru
      _
    %p298 = scmp.lt.s32.totalorder %s15, 2
    // Predicated region
    $region25: #{down_block_forward.4} parent=5 // pred_check
      %p299 = pneg %p298
    $region26: #{down_block_forward.4} parent=5 // pred_check_branch
      %301 = sbr.rel (%p299) target = $region28
    $region27: #{down_block_forward.4} parent=5 // pred_region
      // Predicated region
      $region29: #{down_block_forward.4} parent=27 // pred_check
        %p302 = pneg %p57
      $region30: #{down_block_forward.4} parent=27 // pred_check_branch
        %304 = sbr.rel (%p302) target = $region32
      $region31: #{down_block_forward.4} parent=27 // pred_region
        %s305 = smul.u32 %s23, 8
        %s306 = ssub.s32 %s305, 1
        %p307 = scmp.gt.s32.totalorder %s306, 0
        %s308 = scalar_select %p307, %s306, 0
        %p309 = scmp.lt.s32.totalorder %s22, 1
        %s310 = scalar_select %p309, %s22, 1
        %p311 = scmp.lt.s32.totalorder %s308, 7
        %s312 = scalar_select %p311, %s308, 7
        %s313 = smul.addr %s310, 8
        %s314 = sadd.s32 %s312, %s313
        %s315 = smul.addr %s314, 4
        %s316 = scalar_lea.vmem %s0, %s315
        %s317 = smul.u32 %s23, 8
        %s318 = ssub.s32 %s317, 1
        %p319 = scmp.gt.s32.totalorder %s318, 0
        %s320 = scalar_select %p319, %s318, 0
      $region32: #{down_block_forward.4} parent=27 // pred_fallthru
        _
      // Predicated region
      $region33: #{down_block_forward.4} parent=27 // pred_check
        %p321 = pneg %p85
      $region34: #{down_block_forward.4} parent=27 // pred_check_branch
        %323 = sbr.rel (%p321) target = $region36
      $region35: #{down_block_forward.4} parent=27 // pred_region
        %s324 = smul.u32 8, %s23
        %p325 = scmp.lt.s32.totalorder %s22, 1
        %s326 = scalar_select %p325, %s22, 1
        %p327 = scmp.lt.s32.totalorder %s324, 7
        %s328 = scalar_select %p327, %s324, 7
        %s329 = smul.addr %s326, 8
        %s330 = sadd.s32 %s328, %s329
        %s331 = smul.addr %s330, 4
        %s332 = scalar_lea.vmem %s1, %s331
        %s333 = smul.u32 8, %s23
      $region36: #{down_block_forward.4} parent=27 // pred_fallthru
        _
      // Predicated region
      $region37: #{down_block_forward.4} parent=27 // pred_check
        %p334 = pneg %p121
      $region38: #{down_block_forward.4} parent=27 // pred_check_branch
        %336 = sbr.rel (%p334) target = $region40
      $region39: #{down_block_forward.4} parent=27 // pred_region
        %s337 = sadd.s32 %s23, 1
        %s338 = smul.u32 %s337, 8
        %p339 = scmp.lt.s32.totalorder %s338, 7
        %s340 = scalar_select %p339, %s338, 7
        %p341 = scmp.lt.s32.totalorder %s22, 1
        %s342 = scalar_select %p341, %s22, 1
        %p343 = scmp.lt.s32.totalorder %s340, 7
        %s344 = scalar_select %p343, %s340, 7
        %s345 = smul.addr %s342, 8
        %s346 = sadd.s32 %s344, %s345
        %s347 = smul.addr %s346, 4
        %s348 = scalar_lea.vmem %s2, %s347
        %s349 = sadd.s32 %s23, 1
        %s350 = smul.u32 %s349, 8
        %p351 = scmp.lt.s32.totalorder %s350, 7
        %s352 = scalar_select %p351, %s350, 7
      $region40: #{down_block_forward.4} parent=27 // pred_fallthru
        _
    $region28: #{down_block_forward.4} parent=5 // pred_fallthru
      _
    %p353 = scmp.le.s32.totalorder 1, %s15
    %p354 = scmp.lt.s32.totalorder %s15, 3
    %p355 = pnand %p353, %p354
    %p356 = pneg %p355
    // Predicated region
    $region41: #{down_block_forward.4} parent=5 // pred_check
      _
    $region42: #{down_block_forward.4} parent=5 // pred_check_branch
      %358 = sbr.rel (%p355) target = $region44
    $region43: #{down_block_forward.4} parent=5 // pred_region
      %s359 = ssub.s32 %s15, 1
      %s360 = smul.u32 %s25, 8
      %s361 = ssub.s32 %s360, 1
      %p362 = scmp.gt.s32.totalorder %s361, 0
      %s363 = scalar_select %p362, %s361, 0
      %p364 = scmp.lt.s32.totalorder %s24, 1
      %s365 = scalar_select %p364, %s24, 1
      %p366 = scmp.lt.s32.totalorder %s363, 7
      %s367 = scalar_select %p366, %s363, 7
      %s368 = smul.addr %s365, 8
      %s369 = sadd.s32 %s367, %s368
      %s370 = smul.addr %s369, 4
      %s371 = scalar_lea.vmem %s0, %s370
      %p372 = pneg %p63
      %p373 = pneg %p60
      %s374 = smul.u32 8, %s25
      %p375 = scmp.lt.s32.totalorder %s24, 1
      %s376 = scalar_select %p375, %s24, 1
      %p377 = scmp.lt.s32.totalorder %s374, 7
      %s378 = scalar_select %p377, %s374, 7
      %s379 = smul.addr %s376, 8
      %s380 = sadd.s32 %s378, %s379
      %s381 = smul.addr %s380, 4
      %s382 = scalar_lea.vmem %s1, %s381
      %p383 = pneg %p91
      %p384 = pneg %p88
      %s385 = sadd.s32 %s25, 1
      %s386 = smul.u32 %s385, 8
      %p387 = scmp.lt.s32.totalorder %s386, 7
      %s388 = scalar_select %p387, %s386, 7
      %p389 = scmp.lt.s32.totalorder %s24, 1
      %s390 = scalar_select %p389, %s24, 1
      %p391 = scmp.lt.s32.totalorder %s388, 7
      %s392 = scalar_select %p391, %s388, 7
      %s393 = smul.addr %s390, 8
      %s394 = sadd.s32 %s392, %s393
      %s395 = smul.addr %s394, 4
      %s396 = scalar_lea.vmem %s2, %s395
      %p397 = pneg %p127
      %p398 = pneg %p124
      %p399 = pneg %p148
      %p400 = pneg %p145
      %p401 = pneg %p169
      %p402 = pneg %p166
      %p403 = pneg %p190
      %p404 = pneg %p187
      %p405 = pneg %p218
      %p406 = pneg %p215
      %s407 = sadd.s32 %s24, %s25
      %p408 = scmp.lt.s32.totalorder %s407, 1
      %s409 = scalar_select %p408, %s407, 1
      %s410 = smul.addr %s409, 8
      %s411 = smul.addr %s410, 4
      %s412 = scalar_lea.vmem %s6, %s411
      %p413 = pneg %p246
      %p414 = pneg %p243
      %s415 = sadd.s32 %s24, %s25
      %p416 = scmp.lt.s32.totalorder %s415, 1
      %s417 = scalar_select %p416, %s415, 1
      %s418 = scalar_lea.vmem %s7, %s417
      %p419 = pneg %p274
      %p420 = pneg %p271
      %s421 = sadd.s32 %s24, %s25
      %p422 = scmp.lt.s32.totalorder %s421, 1
      %s423 = scalar_select %p422, %s421, 1
      %s424 = scalar_lea.vmem %s8, %s423
      %s425 = smul.u32 %s25, 8
      %s426 = ssub.s32 %s425, 1
      %p427 = scmp.gt.s32.totalorder %s426, 0
      %s428 = scalar_select %p427, %s426, 0
      %p429 = scmp.lt.s32.totalorder %s24, 1
      %s430 = scalar_select %p429, %s24, 1
      %p431 = scmp.lt.s32.totalorder %s428, 7
      %s432 = scalar_select %p431, %s428, 7
      %s433 = smul.addr %s430, 8
      %s434 = sadd.s32 %s432, %s433
      %s435 = smul.addr %s434, 4
      %s436 = scalar_lea.vmem %s0, %s435
      %s437 = smul.u32 %s25, 8
      %s438 = ssub.s32 %s437, 1
      %p439 = scmp.gt.s32.totalorder %s438, 0
      %s440 = scalar_select %p439, %s438, 0
      %s441 = smul.u32 8, %s25
      %p442 = scmp.lt.s32.totalorder %s24, 1
      %s443 = scalar_select %p442, %s24, 1
      %p444 = scmp.lt.s32.totalorder %s441, 7
      %s445 = scalar_select %p444, %s441, 7
      %s446 = smul.addr %s443, 8
      %s447 = sadd.s32 %s445, %s446
      %s448 = smul.addr %s447, 4
      %s449 = scalar_lea.vmem %s1, %s448
      %s450 = smul.u32 8, %s25
      %s451 = sadd.s32 %s25, 1
      %s452 = smul.u32 %s451, 8
      %p453 = scmp.lt.s32.totalorder %s452, 7
      %s454 = scalar_select %p453, %s452, 7
      %p455 = scmp.lt.s32.totalorder %s24, 1
      %s456 = scalar_select %p455, %s24, 1
      %p457 = scmp.lt.s32.totalorder %s454, 7
      %s458 = scalar_select %p457, %s454, 7
      %s459 = smul.addr %s456, 8
      %s460 = sadd.s32 %s458, %s459
      %s461 = smul.addr %s460, 4
      %s462 = scalar_lea.vmem %s2, %s461
      %s463 = sadd.s32 %s25, 1
      %s464 = smul.u32 %s463, 8
      %p465 = scmp.lt.s32.totalorder %s464, 7
      %s466 = scalar_select %p465, %s464, 7
      %s467 = sadd.s32 %s24, %s25
      %p468 = scmp.lt.s32.totalorder %s467, 1
      %s469 = scalar_select %p468, %s467, 1
      %s470 = smul.addr %s469, 8
      %s471 = smul.addr %s470, 4
      %s472 = scalar_lea.vmem %s6, %s471
      %s473 = sadd.s32 %s24, %s25
      %s474 = sadd.s32 %s24, %s25
      %p475 = scmp.lt.s32.totalorder %s474, 1
      %s476 = scalar_select %p475, %s474, 1
      %s477 = scalar_lea.vmem %s7, %s476
      %s478 = sadd.s32 %s24, %s25
      %s479 = sadd.s32 %s24, %s25
      %p480 = scmp.lt.s32.totalorder %s479, 1
      %s481 = scalar_select %p480, %s479, 1
      %s482 = scalar_lea.vmem %s8, %s481
      %s483 = sadd.s32 %s24, %s25
      %v485 = vld [vmem:[%s436] sm:$0xf]
      %v486 = vunpack.c.l.bf16 %v485
      %v487 = vld [vmem:[%s3] sm:$0x1]
      %v489 = vlaneseq
      %v490 = vshrl.u32 %v489, 7
      %v491 = vsub.s32 0, %v490
      %v492 = vrot.slane %v487, %v491
      %v494 = vmul.f32 %v486, %v492
      %v495 = vld [vmem:[%s4] sm:$0x1]
      %v497 = vlaneseq
      %v498 = vshrl.u32 %v497, 7
      %v499 = vsub.s32 0, %v498
      %v500 = vrot.slane %v495, %v499
      %v502 = vadd.f32 %v494, %v500
      %v503 = vmax.f32 %v502, 0.0
      %v504 = vpack.c.bf16 %v503, %v503
      %v505 = vld [vmem:[%s449] sm:$0xf]
      %v506 = vld [vmem:[%s449 + $0x4] sm:$0xf]
      %v507 = vld [vmem:[%s449 + $0x8] sm:$0xf]
      %v508 = vld [vmem:[%s449 + $0xc] sm:$0xf]
      %v509 = vld [vmem:[%s449 + $0x10] sm:$0xf]
      %v510 = vld [vmem:[%s449 + $0x14] sm:$0xf]
      %v511 = vld [vmem:[%s449 + $0x18] sm:$0xf]
      %v512 = vld [vmem:[%s449 + $0x1c] sm:$0xf]
      %v513 = vunpack.c.l.bf16 %v505
      %v514 = vunpack.c.l.bf16 %v506
      %v515 = vunpack.c.l.bf16 %v507
      %v516 = vunpack.c.l.bf16 %v508
      %v517 = vunpack.c.l.bf16 %v509
      %v518 = vunpack.c.l.bf16 %v510
      %v519 = vunpack.c.l.bf16 %v511
      %v520 = vunpack.c.l.bf16 %v512
      %v521 = vmul.f32 %v513, %v492
      %v522 = vmul.f32 %v514, %v492
      %v523 = vmul.f32 %v515, %v492
      %v524 = vmul.f32 %v516, %v492
      %v525 = vmul.f32 %v517, %v492
      %v526 = vmul.f32 %v518, %v492
      %v527 = vmul.f32 %v519, %v492
      %v528 = vmul.f32 %v520, %v492
      %v529 = vadd.f32 %v521, %v500
      %v530 = vadd.f32 %v522, %v500
      %v531 = vadd.f32 %v523, %v500
      %v532 = vadd.f32 %v524, %v500
      %v533 = vadd.f32 %v525, %v500
      %v534 = vadd.f32 %v526, %v500
      %v535 = vadd.f32 %v527, %v500
      %v536 = vadd.f32 %v528, %v500
      %v537 = vmax.f32 %v529, 0.0
      %v538 = vmax.f32 %v530, 0.0
      %v539 = vmax.f32 %v531, 0.0
      %v540 = vmax.f32 %v532, 0.0
      %v541 = vmax.f32 %v533, 0.0
      %v542 = vmax.f32 %v534, 0.0
      %v543 = vmax.f32 %v535, 0.0
      %v544 = vmax.f32 %v536, 0.0
      %v545 = vpack.c.bf16 %v537, %v537
      %v546 = vpack.c.bf16 %v538, %v538
      %v547 = vpack.c.bf16 %v539, %v539
      %v548 = vpack.c.bf16 %v540, %v540
      %v549 = vpack.c.bf16 %v541, %v541
      %v550 = vpack.c.bf16 %v542, %v542
      %v551 = vpack.c.bf16 %v543, %v543
      %v552 = vpack.c.bf16 %v544, %v544
      %v553 = vld [vmem:[%s462] sm:$0xf]
      %v554 = vunpack.c.l.bf16 %v553
      %v555 = vmul.f32 %v554, %v492
      %v556 = vadd.f32 %v555, %v500
      %v557 = vmax.f32 %v556, 0.0
      %v558 = vpack.c.bf16 %v557, %v557
      %p559 = scmp.gt.s32.totalorder %s25, 0
      %s560 = scalar_select %p559, 1, 0
      %v561 = vstv %s560
      %vm562 = vcmp.eq.s32.totalorder %v561, 1
      %v563 = vsel %vm562, %v504, 0
      %p564 = scmp.lt.s32.totalorder %s25, 0
      %s565 = scalar_select %p564, 1, 0
      %v566 = vstv %s565
      %vm567 = vcmp.eq.s32.totalorder %v566, 1
      %v568 = vsel %vm567, %v558, 0
      %v570 = vshrl.u32 %v563, 16
      %v572 = vrot.slane %v570, 7
      %v573 = vshll.u32 %v563, 16
      %v575 = vor.u32 %v572, %v573
      %v577 = vshrl.u32 %v545, 16
      %v579 = vrot.slane %v577, 7
      %v580 = vshll.u32 %v545, 16
      %v582 = vor.u32 %v579, %v580
      %v584 = vshrl.u32 %v546, 16
      %v586 = vrot.slane %v584, 7
      %v587 = vshll.u32 %v546, 16
      %v589 = vor.u32 %v586, %v587
      %v591 = vshrl.u32 %v547, 16
      %v593 = vrot.slane %v591, 7
      %v594 = vshll.u32 %v547, 16
      %v596 = vor.u32 %v593, %v594
      %v598 = vshrl.u32 %v548, 16
      %v600 = vrot.slane %v598, 7
      %v601 = vshll.u32 %v548, 16
      %v603 = vor.u32 %v600, %v601
      %v605 = vshrl.u32 %v549, 16
      %v607 = vrot.slane %v605, 7
      %v608 = vshll.u32 %v549, 16
      %v610 = vor.u32 %v607, %v608
      %v612 = vshrl.u32 %v550, 16
      %v614 = vrot.slane %v612, 7
      %v615 = vshll.u32 %v550, 16
      %v617 = vor.u32 %v614, %v615
      %v619 = vshrl.u32 %v551, 16
      %v621 = vrot.slane %v619, 7
      %v622 = vshll.u32 %v551, 16
      %v624 = vor.u32 %v621, %v622
      %v626 = vshrl.u32 %v552, 16
      %v628 = vrot.slane %v626, 7
      %v629 = vshll.u32 %v552, 16
      %v631 = vor.u32 %v628, %v629
      %v633 = vshrl.u32 %v568, 16
      %v635 = vrot.slane %v633, 7
      %v636 = vshll.u32 %v568, 16
      %v638 = vor.u32 %v635, %v636
      %vm649 = vcmask 1040384
      %vm650 = vsmask.f32 256
      %vm651 = vmand %vm649, %vm650
      %v652 = vsel %vm651, 0, %v575
      %v653 = vsel %vm651, 0, %v582
      %v654 = vsel %vm651, 0, %v589
      %v655 = vsel %vm651, 0, %v596
      %v656 = vsel %vm651, 0, %v603
      %v657 = vsel %vm651, 0, %v610
      %v658 = vsel %vm651, 0, %v617
      %v659 = vsel %vm651, 0, %v624
      %v660 = vsel %vm651, 0, %v631
      %v661 = vsel %vm651, 0, %v638
      %vm662 = vcmask 1044480
      %vm663 = vsmask.f32 4352
      %vm664 = vmand %vm662, %vm663
      %v665 = vsel %vm664, %v652, 0
      %v666 = vsel %vm664, %v653, 0
      %v667 = vsel %vm664, %v654, 0
      %v668 = vsel %vm664, %v655, 0
      %v669 = vsel %vm664, %v656, 0
      %v670 = vsel %vm664, %v657, 0
      %v671 = vsel %vm664, %v658, 0
      %v672 = vsel %vm664, %v659, 0
      %v673 = vsel %vm664, %v660, 0
      %v674 = vsel %vm664, %v661, 0
      %v676 = vshrl.u32 %v665, 16
      %v678 = vshll.u32 %v665, 16
      %v680 = vrot.slane %v678, 1
      %v681 = vor.u32 %v676, %v680
      %v683 = vshrl.u32 %v666, 16
      %v685 = vshll.u32 %v666, 16
      %v687 = vrot.slane %v685, 1
      %v688 = vor.u32 %v683, %v687
      %v690 = vshrl.u32 %v667, 16
      %v692 = vshll.u32 %v667, 16
      %v694 = vrot.slane %v692, 1
      %v695 = vor.u32 %v690, %v694
      %v697 = vshrl.u32 %v668, 16
      %v699 = vshll.u32 %v668, 16
      %v701 = vrot.slane %v699, 1
      %v702 = vor.u32 %v697, %v701
      %v704 = vshrl.u32 %v669, 16
      %v706 = vshll.u32 %v669, 16
      %v708 = vrot.slane %v706, 1
      %v709 = vor.u32 %v704, %v708
      %v711 = vshrl.u32 %v670, 16
      %v713 = vshll.u32 %v670, 16
      %v715 = vrot.slane %v713, 1
      %v716 = vor.u32 %v711, %v715
      %v718 = vshrl.u32 %v671, 16
      %v720 = vshll.u32 %v671, 16
      %v722 = vrot.slane %v720, 1
      %v723 = vor.u32 %v718, %v722
      %v725 = vshrl.u32 %v672, 16
      %v727 = vshll.u32 %v672, 16
      %v729 = vrot.slane %v727, 1
      %v730 = vor.u32 %v725, %v729
      %v739 = vrot.slane %v665, 1
      %v740 = vrot.slane %v666, 1
      %v741 = vrot.slane %v667, 1
      %v742 = vrot.slane %v668, 1
      %v743 = vrot.slane %v669, 1
      %v744 = vrot.slane %v670, 1
      %v745 = vrot.slane %v671, 1
      %v746 = vrot.slane %v672, 1
      %v748 = vshrl.u32 %v673, 16
      %v750 = vshll.u32 %v673, 16
      %v752 = vrot.slane %v750, 1
      %v753 = vor.u32 %v748, %v752
      %v755 = vrot.slane %v673, 1
      %v757 = vshrl.u32 %v674, 16
      %v759 = vshll.u32 %v674, 16
      %v761 = vrot.slane %v759, 1
      %v762 = vor.u32 %v757, %v761
      %v764 = vrot.slane %v674, 1
      %v765 = vunpack.c.l.b16 %v665
      %v766 = vunpack.c.l.b16 %v681
      %v767 = vunpack.c.l.b16 %v739
      %v768 = vunpack.c.l.b16 %v666
      %v769 = vunpack.c.l.b16 %v688
      %v770 = vunpack.c.l.b16 %v740
      %v771 = vunpack.c.l.b16 %v667
      %v772 = vunpack.c.l.b16 %v695
      %v773 = vunpack.c.l.b16 %v741
      %v774 = vunpack.c.l.b16 %v668
      %v775 = vunpack.c.l.b16 %v702
      %v776 = vunpack.c.l.b16 %v742
      %v777 = vunpack.c.l.b16 %v669
      %v778 = vunpack.c.l.b16 %v709
      %v779 = vunpack.c.l.b16 %v743
      %v780 = vunpack.c.l.b16 %v670
      %v781 = vunpack.c.l.b16 %v716
      %v782 = vunpack.c.l.b16 %v744
      %v783 = vunpack.c.l.b16 %v671
      %v784 = vunpack.c.l.b16 %v723
      %v785 = vunpack.c.l.b16 %v745
      %v786 = vunpack.c.l.b16 %v672
      %v787 = vunpack.c.l.b16 %v730
      %v788 = vunpack.c.l.b16 %v746
      %v789 = vunpack.c.l.b16 %v673
      %v790 = vunpack.c.l.b16 %v753
      %v791 = vunpack.c.l.b16 %v755
      %v792 = vunpack.c.l.b16 %v674
      %v793 = vunpack.c.l.b16 %v762
      %v794 = vunpack.c.l.b16 %v764
      %v795 = vld [vmem:[%s5] sm:$0xf]
      %v796 = vld [vmem:[%s5 + $0x4] sm:$0xf]
      %v797 = vld [vmem:[%s5 + $0x8] sm:$0xf]
      %v798 = vld [vmem:[%s5 + $0xc] sm:$0xf]
      %v799 = vld [vmem:[%s5 + $0x10] sm:$0xf]
      %v800 = vld [vmem:[%s5 + $0x14] sm:$0xf]
      %v801 = vld [vmem:[%s5 + $0x18] sm:$0xf]
      %v802 = vld [vmem:[%s5 + $0x1c] sm:$0xf]
      %v803 = vld [vmem:[%s5 + $0x20] sm:$0xf]
      %v804 = vld [vmem:[%s5 + $0x24] sm:$0xf]
      %v805 = vld [vmem:[%s5 + $0x28] sm:$0xf]
      %v806 = vld [vmem:[%s5 + $0x2c] sm:$0xf]
      %v807 = vld [vmem:[%s5 + $0x30] sm:$0xf]
      %v808 = vld [vmem:[%s5 + $0x34] sm:$0xf]
      %v809 = vld [vmem:[%s5 + $0x38] sm:$0xf]
      %v810 = vld [vmem:[%s5 + $0x3c] sm:$0xf]
      %v811 = vld [vmem:[%s5 + $0x40] sm:$0xf]
      %v812 = vld [vmem:[%s5 + $0x44] sm:$0xf]
      %v813 = vld [vmem:[%s5 + $0x48] sm:$0xf]
      %v814 = vld [vmem:[%s5 + $0x4c] sm:$0xf]
      %v815 = vld [vmem:[%s5 + $0x50] sm:$0xf]
      %v816 = vld [vmem:[%s5 + $0x54] sm:$0xf]
      %v817 = vld [vmem:[%s5 + $0x58] sm:$0xf]
      %v818 = vld [vmem:[%s5 + $0x5c] sm:$0xf]
      %v819 = vld [vmem:[%s5 + $0x60] sm:$0xf]
      %v820 = vld [vmem:[%s5 + $0x64] sm:$0xf]
      %v821 = vld [vmem:[%s5 + $0x68] sm:$0xf]
      %v822 = vld [vmem:[%s5 + $0x6c] sm:$0xf]
      %v823 = vld [vmem:[%s5 + $0x70] sm:$0xf]
      %v824 = vld [vmem:[%s5 + $0x74] sm:$0xf]
      %v825 = vld [vmem:[%s5 + $0x78] sm:$0xf]
      %v826 = vld [vmem:[%s5 + $0x7c] sm:$0xf]
      %v827 = vld [vmem:[%s5 + $0x80] sm:$0xf]
      %v828 = vld [vmem:[%s5 + $0x84] sm:$0xf]
      %v829 = vld [vmem:[%s5 + $0x88] sm:$0xf]
      %v830 = vld [vmem:[%s5 + $0x8c] sm:$0xf]
      %v831 = vld [vmem:[%s5 + $0x90] sm:$0xf]
      %v832 = vld [vmem:[%s5 + $0x94] sm:$0xf]
      %v833 = vld [vmem:[%s5 + $0x98] sm:$0xf]
      %v834 = vld [vmem:[%s5 + $0x9c] sm:$0xf]
      %v835 = vld [vmem:[%s5 + $0xa0] sm:$0xf]
      %v836 = vld [vmem:[%s5 + $0xa4] sm:$0xf]
      %v837 = vld [vmem:[%s5 + $0xa8] sm:$0xf]
      %v838 = vld [vmem:[%s5 + $0xac] sm:$0xf]
      %v839 = vld [vmem:[%s5 + $0xb0] sm:$0xf]
      %v840 = vld [vmem:[%s5 + $0xb4] sm:$0xf]
      %v841 = vld [vmem:[%s5 + $0xb8] sm:$0xf]
      %v842 = vld [vmem:[%s5 + $0xbc] sm:$0xf]
      %v843 = vld [vmem:[%s5 + $0xc0] sm:$0xf]
      %v844 = vld [vmem:[%s5 + $0xc4] sm:$0xf]
      %v845 = vld [vmem:[%s5 + $0xc8] sm:$0xf]
      %v846 = vld [vmem:[%s5 + $0xcc] sm:$0xf]
      %v847 = vld [vmem:[%s5 + $0xd0] sm:$0xf]
      %v848 = vld [vmem:[%s5 + $0xd4] sm:$0xf]
      %v849 = vld [vmem:[%s5 + $0xd8] sm:$0xf]
      %v850 = vld [vmem:[%s5 + $0xdc] sm:$0xf]
      %v851 = vld [vmem:[%s5 + $0xe0] sm:$0xf]
      %v852 = vld [vmem:[%s5 + $0xe4] sm:$0xf]
      %v853 = vld [vmem:[%s5 + $0xe8] sm:$0xf]
      %v854 = vld [vmem:[%s5 + $0xec] sm:$0xf]
      %v855 = vld [vmem:[%s5 + $0xf0] sm:$0xf]
      %v856 = vld [vmem:[%s5 + $0xf4] sm:$0xf]
      %v857 = vld [vmem:[%s5 + $0xf8] sm:$0xf]
      %v858 = vld [vmem:[%s5 + $0xfc] sm:$0xf]
      %v859 = vld [vmem:[%s5 + $0x100] sm:$0xf]
      %v860 = vld [vmem:[%s5 + $0x104] sm:$0xf]
      %v861 = vld [vmem:[%s5 + $0x108] sm:$0xf]
      %v862 = vld [vmem:[%s5 + $0x10c] sm:$0xf]
      %v863 = vld [vmem:[%s5 + $0x110] sm:$0xf]
      %v864 = vld [vmem:[%s5 + $0x114] sm:$0xf]
      %v865 = vld [vmem:[%s5 + $0x118] sm:$0xf]
      %v866 = vld [vmem:[%s5 + $0x11c] sm:$0xf]
      %v867 = vld [vmem:[%s5 + $0x120] sm:$0xf]
      %v868 = vld [vmem:[%s5 + $0x124] sm:$0xf]
      %v869 = vld [vmem:[%s5 + $0x128] sm:$0xf]
      %v870 = vld [vmem:[%s5 + $0x12c] sm:$0xf]
      %v871 = vld [vmem:[%s5 + $0x130] sm:$0xf]
      %v872 = vld [vmem:[%s5 + $0x134] sm:$0xf]
      %v873 = vld [vmem:[%s5 + $0x138] sm:$0xf]
      %v874 = vld [vmem:[%s5 + $0x13c] sm:$0xf]
      %v875 = vld [vmem:[%s5 + $0x140] sm:$0xf]
      %v876 = vld [vmem:[%s5 + $0x144] sm:$0xf]
      %v877 = vld [vmem:[%s5 + $0x148] sm:$0xf]
      %v878 = vld [vmem:[%s5 + $0x14c] sm:$0xf]
      %v879 = vld [vmem:[%s5 + $0x150] sm:$0xf]
      %v880 = vld [vmem:[%s5 + $0x154] sm:$0xf]
      %v881 = vld [vmem:[%s5 + $0x158] sm:$0xf]
      %v882 = vld [vmem:[%s5 + $0x15c] sm:$0xf]
      %v883 = vld [vmem:[%s5 + $0x160] sm:$0xf]
      %v884 = vld [vmem:[%s5 + $0x164] sm:$0xf]
      %v885 = vld [vmem:[%s5 + $0x168] sm:$0xf]
      %v886 = vld [vmem:[%s5 + $0x16c] sm:$0xf]
      %v887 = vld [vmem:[%s5 + $0x170] sm:$0xf]
      %v888 = vld [vmem:[%s5 + $0x174] sm:$0xf]
      %v889 = vld [vmem:[%s5 + $0x178] sm:$0xf]
      %v890 = vld [vmem:[%s5 + $0x17c] sm:$0xf]
      %v891 = vld [vmem:[%s5 + $0x180] sm:$0xf]
      %v892 = vld [vmem:[%s5 + $0x184] sm:$0xf]
      %v893 = vld [vmem:[%s5 + $0x188] sm:$0xf]
      %v894 = vld [vmem:[%s5 + $0x18c] sm:$0xf]
      %v895 = vld [vmem:[%s5 + $0x190] sm:$0xf]
      %v896 = vld [vmem:[%s5 + $0x194] sm:$0xf]
      %v897 = vld [vmem:[%s5 + $0x198] sm:$0xf]
      %v898 = vld [vmem:[%s5 + $0x19c] sm:$0xf]
      %v899 = vld [vmem:[%s5 + $0x1a0] sm:$0xf]
      %v900 = vld [vmem:[%s5 + $0x1a4] sm:$0xf]
      %v901 = vld [vmem:[%s5 + $0x1a8] sm:$0xf]
      %v902 = vld [vmem:[%s5 + $0x1ac] sm:$0xf]
      %v903 = vld [vmem:[%s5 + $0x1b0] sm:$0xf]
      %v904 = vld [vmem:[%s5 + $0x1b4] sm:$0xf]
      %v905 = vld [vmem:[%s5 + $0x1b8] sm:$0xf]
      %v906 = vld [vmem:[%s5 + $0x1bc] sm:$0xf]
      %v907 = vld [vmem:[%s5 + $0x1c0] sm:$0xf]
      %v908 = vld [vmem:[%s5 + $0x1c4] sm:$0xf]
      %v909 = vld [vmem:[%s5 + $0x1c8] sm:$0xf]
      %v910 = vld [vmem:[%s5 + $0x1cc] sm:$0xf]
      %v911 = vld [vmem:[%s5 + $0x1d0] sm:$0xf]
      %v912 = vld [vmem:[%s5 + $0x1d4] sm:$0xf]
      %v913 = vld [vmem:[%s5 + $0x1d8] sm:$0xf]
      %v914 = vld [vmem:[%s5 + $0x1dc] sm:$0xf]
      %v915 = vld [vmem:[%s5 + $0x1e0] sm:$0xf]
      %v916 = vld [vmem:[%s5 + $0x1e4] sm:$0xf]
      %v917 = vld [vmem:[%s5 + $0x1e8] sm:$0xf]
      %v918 = vld [vmem:[%s5 + $0x1ec] sm:$0xf]
      %v919 = vld [vmem:[%s5 + $0x1f0] sm:$0xf]
      %v920 = vld [vmem:[%s5 + $0x1f4] sm:$0xf]
      %v921 = vld [vmem:[%s5 + $0x1f8] sm:$0xf]
      %v922 = vld [vmem:[%s5 + $0x1fc] sm:$0xf]
      %v923 = vld [vmem:[%s5 + $0x200] sm:$0xf]
      %v924 = vld [vmem:[%s5 + $0x204] sm:$0xf]
      %v925 = vld [vmem:[%s5 + $0x208] sm:$0xf]
      %v926 = vld [vmem:[%s5 + $0x20c] sm:$0xf]
      %v927 = vld [vmem:[%s5 + $0x210] sm:$0xf]
      %v928 = vld [vmem:[%s5 + $0x214] sm:$0xf]
      %v929 = vld [vmem:[%s5 + $0x218] sm:$0xf]
      %v930 = vld [vmem:[%s5 + $0x21c] sm:$0xf]
      %v931 = vld [vmem:[%s5 + $0x220] sm:$0xf]
      %v932 = vld [vmem:[%s5 + $0x224] sm:$0xf]
      %v933 = vld [vmem:[%s5 + $0x228] sm:$0xf]
      %v934 = vld [vmem:[%s5 + $0x22c] sm:$0xf]
      %v935 = vld [vmem:[%s5 + $0x230] sm:$0xf]
      %v936 = vld [vmem:[%s5 + $0x234] sm:$0xf]
      %v937 = vld [vmem:[%s5 + $0x238] sm:$0xf]
      %v938 = vld [vmem:[%s5 + $0x23c] sm:$0xf]
      %v939 = vpack.c.b16 %v768, %v765
      %v940 = vpack.c.b16 %v769, %v766
      %v941 = vpack.c.b16 %v770, %v767
      %v942 = vpack.c.b16 %v771, %v768
      %v943 = vpack.c.b16 %v772, %v769
      %v944 = vpack.c.b16 %v773, %v770
      %v945 = vpack.c.b16 %v774, %v771
      %v946 = vpack.c.b16 %v775, %v772
      %v947 = vpack.c.b16 %v776, %v773
      %v948 = vpack.c.b16 %v777, %v774
      %v949 = vpack.c.b16 %v778, %v775
      %v950 = vpack.c.b16 %v779, %v776
      %v951 = vpack.c.b16 %v780, %v777
      %v952 = vpack.c.b16 %v781, %v778
      %v953 = vpack.c.b16 %v782, %v779
      %v954 = vpack.c.b16 %v783, %v780
      %v955 = vpack.c.b16 %v784, %v781
      %v956 = vpack.c.b16 %v785, %v782
      %v957 = vpack.c.b16 %v786, %v783
      %v958 = vpack.c.b16 %v787, %v784
      %v959 = vpack.c.b16 %v788, %v785
      %v960 = vpack.c.b16 %v789, %v786
      %v961 = vpack.c.b16 %v790, %v787
      %v962 = vpack.c.b16 %v791, %v788
      %v963 = vpack.c.b16 %v792, %v789
      %v964 = vpack.c.b16 %v793, %v790
      %v965 = vpack.c.b16 %v794, %v791
      %v1137 = vunpack.c.l.b16 %v795
      %v1138 = vunpack.c.l.b16 %v796
      %v1139 = vunpack.c.l.b16 %v797
      %v1140 = vunpack.c.l.b16 %v798
      %v1141 = vunpack.c.l.b16 %v799
      %v1142 = vunpack.c.l.b16 %v800
      %v1143 = vunpack.c.l.b16 %v801
      %v1144 = vunpack.c.l.b16 %v802
      %v1145 = vunpack.c.l.b16 %v803
      %v1146 = vunpack.c.l.b16 %v804
      %v1147 = vunpack.c.l.b16 %v805
      %v1148 = vunpack.c.l.b16 %v806
      %v1149 = vunpack.c.l.b16 %v807
      %v1150 = vunpack.c.l.b16 %v808
      %v1151 = vunpack.c.l.b16 %v809
      %v1152 = vunpack.c.l.b16 %v810
      %v1153 = vunpack.c.l.b16 %v811
      %v1154 = vunpack.c.l.b16 %v812
      %v1155 = vunpack.c.l.b16 %v813
      %v1156 = vunpack.c.l.b16 %v814
      %v1157 = vunpack.c.l.b16 %v815
      %v1158 = vunpack.c.l.b16 %v816
      %v1159 = vunpack.c.l.b16 %v817
      %v1160 = vunpack.c.l.b16 %v818
      %v1161 = vunpack.c.l.b16 %v819
      %v1162 = vunpack.c.l.b16 %v820
      %v1163 = vunpack.c.l.b16 %v821
      %v1164 = vunpack.c.l.b16 %v822
      %v1165 = vunpack.c.l.b16 %v823
      %v1166 = vunpack.c.l.b16 %v824
      %v1167 = vunpack.c.l.b16 %v825
      %v1168 = vunpack.c.l.b16 %v826
      %v1169 = vunpack.c.l.b16 %v827
      %v1170 = vunpack.c.l.b16 %v828
      %v1171 = vunpack.c.l.b16 %v829
      %v1172 = vunpack.c.l.b16 %v830
      %v1173 = vunpack.c.l.b16 %v831
      %v1174 = vunpack.c.l.b16 %v832
      %v1175 = vunpack.c.l.b16 %v833
      %v1176 = vunpack.c.l.b16 %v834
      %v1177 = vunpack.c.l.b16 %v835
      %v1178 = vunpack.c.l.b16 %v836
      %v1179 = vunpack.c.l.b16 %v837
      %v1180 = vunpack.c.l.b16 %v838
      %v1181 = vunpack.c.l.b16 %v839
      %v1182 = vunpack.c.l.b16 %v840
      %v1183 = vunpack.c.l.b16 %v841
      %v1184 = vunpack.c.l.b16 %v842
      %v1185 = vunpack.c.l.b16 %v843
      %v1186 = vunpack.c.l.b16 %v844
      %v1187 = vunpack.c.l.b16 %v845
      %v1188 = vunpack.c.l.b16 %v846
      %v1189 = vunpack.c.l.b16 %v847
      %v1190 = vunpack.c.l.b16 %v848
      %v1191 = vunpack.c.l.b16 %v849
      %v1192 = vunpack.c.l.b16 %v850
      %v1193 = vunpack.c.l.b16 %v851
      %v1194 = vunpack.c.l.b16 %v852
      %v1195 = vunpack.c.l.b16 %v853
      %v1196 = vunpack.c.l.b16 %v854
      %v1197 = vunpack.c.l.b16 %v855
      %v1198 = vunpack.c.l.b16 %v856
      %v1199 = vunpack.c.l.b16 %v857
      %v1200 = vunpack.c.l.b16 %v858
      %v1201 = vunpack.c.l.b16 %v859
      %v1202 = vunpack.c.l.b16 %v860
      %v1203 = vunpack.c.l.b16 %v861
      %v1204 = vunpack.c.l.b16 %v862
      %v1205 = vunpack.c.l.b16 %v863
      %v1206 = vunpack.c.l.b16 %v864
      %v1207 = vunpack.c.l.b16 %v865
      %v1208 = vunpack.c.l.b16 %v866
      %v1209 = vunpack.c.l.b16 %v867
      %v1210 = vunpack.c.l.b16 %v868
      %v1211 = vunpack.c.l.b16 %v869
      %v1212 = vunpack.c.l.b16 %v870
      %v1213 = vunpack.c.l.b16 %v871
      %v1214 = vunpack.c.l.b16 %v872
      %v1215 = vunpack.c.l.b16 %v873
      %v1216 = vunpack.c.l.b16 %v874
      %v1217 = vunpack.c.l.b16 %v875
      %v1218 = vunpack.c.l.b16 %v876
      %v1219 = vunpack.c.l.b16 %v877
      %v1220 = vunpack.c.l.b16 %v878
      %v1221 = vunpack.c.l.b16 %v879
      %v1222 = vunpack.c.l.b16 %v880
      %v1223 = vunpack.c.l.b16 %v881
      %v1224 = vunpack.c.l.b16 %v882
      %v1225 = vunpack.c.l.b16 %v883
      %v1226 = vunpack.c.l.b16 %v884
      %v1227 = vunpack.c.l.b16 %v885
      %v1228 = vunpack.c.l.b16 %v886
      %v1229 = vunpack.c.l.b16 %v887
      %v1230 = vunpack.c.l.b16 %v888
      %v1231 = vunpack.c.l.b16 %v889
      %v1232 = vunpack.c.l.b16 %v890
      %v1233 = vunpack.c.l.b16 %v891
      %v1234 = vunpack.c.l.b16 %v892
      %v1235 = vunpack.c.l.b16 %v893
      %v1236 = vunpack.c.l.b16 %v894
      %v1237 = vunpack.c.l.b16 %v895
      %v1238 = vunpack.c.l.b16 %v896
      %v1239 = vunpack.c.l.b16 %v897
      %v1240 = vunpack.c.l.b16 %v898
      %v1241 = vunpack.c.l.b16 %v899
      %v1242 = vunpack.c.l.b16 %v900
      %v1243 = vunpack.c.l.b16 %v901
      %v1244 = vunpack.c.l.b16 %v902
      %v1245 = vunpack.c.l.b16 %v903
      %v1246 = vunpack.c.l.b16 %v904
      %v1247 = vunpack.c.l.b16 %v905
      %v1248 = vunpack.c.l.b16 %v906
      %v1249 = vunpack.c.l.b16 %v907
      %v1250 = vunpack.c.l.b16 %v908
      %v1251 = vunpack.c.l.b16 %v909
      %v1252 = vunpack.c.l.b16 %v910
      %v1253 = vunpack.c.l.b16 %v911
      %v1254 = vunpack.c.l.b16 %v912
      %v1255 = vunpack.c.l.b16 %v913
      %v1256 = vunpack.c.l.b16 %v914
      %v1257 = vunpack.c.l.b16 %v915
      %v1258 = vunpack.c.l.b16 %v916
      %v1259 = vunpack.c.l.b16 %v917
      %v1260 = vunpack.c.l.b16 %v918
      %v1261 = vunpack.c.l.b16 %v919
      %v1262 = vunpack.c.l.b16 %v920
      %v1263 = vunpack.c.l.b16 %v921
      %v1264 = vunpack.c.l.b16 %v922
      %v1265 = vunpack.c.l.b16 %v923
      %v1266 = vunpack.c.l.b16 %v924
      %v1267 = vunpack.c.l.b16 %v925
      %v1268 = vunpack.c.l.b16 %v926
      %v1269 = vunpack.c.l.b16 %v927
      %v1270 = vunpack.c.l.b16 %v928
      %v1271 = vunpack.c.l.b16 %v929
      %v1272 = vunpack.c.l.b16 %v930
      %v1273 = vunpack.c.l.b16 %v931
      %v1274 = vunpack.c.l.b16 %v932
      %v1275 = vunpack.c.l.b16 %v933
      %v1276 = vunpack.c.l.b16 %v934
      %v1277 = vunpack.c.l.b16 %v935
      %v1278 = vunpack.c.l.b16 %v936
      %v1279 = vunpack.c.l.b16 %v937
      %v1280 = vunpack.c.l.b16 %v938
      %v1281 = vpack.c.b16 %v1138, %v1137
      %v1282 = vpack.c.b16 %v1140, %v1139
      %v1283 = vpack.c.b16 %v1142, %v1141
      %v1284 = vpack.c.b16 %v1144, %v1143
      %v1285 = vpack.c.b16 %v1146, %v1145
      %v1286 = vpack.c.b16 %v1148, %v1147
      %v1287 = vpack.c.b16 %v1150, %v1149
      %v1288 = vpack.c.b16 %v1152, %v1151
      %v1289 = vpack.c.b16 %v1154, %v1153
      %v1290 = vpack.c.b16 %v1156, %v1155
      %v1291 = vpack.c.b16 %v1158, %v1157
      %v1292 = vpack.c.b16 %v1160, %v1159
      %v1293 = vpack.c.b16 %v1162, %v1161
      %v1294 = vpack.c.b16 %v1164, %v1163
      %v1295 = vpack.c.b16 %v1166, %v1165
      %v1296 = vpack.c.b16 %v1168, %v1167
      %v1297 = vpack.c.b16 %v1170, %v1169
      %v1298 = vpack.c.b16 %v1172, %v1171
      %v1299 = vpack.c.b16 %v1174, %v1173
      %v1300 = vpack.c.b16 %v1176, %v1175
      %v1301 = vpack.c.b16 %v1178, %v1177
      %v1302 = vpack.c.b16 %v1180, %v1179
      %v1303 = vpack.c.b16 %v1182, %v1181
      %v1304 = vpack.c.b16 %v1184, %v1183
      %v1305 = vpack.c.b16 %v1186, %v1185
      %v1306 = vpack.c.b16 %v1188, %v1187
      %v1307 = vpack.c.b16 %v1190, %v1189
      %v1308 = vpack.c.b16 %v1192, %v1191
      %v1309 = vpack.c.b16 %v1194, %v1193
      %v1310 = vpack.c.b16 %v1196, %v1195
      %v1311 = vpack.c.b16 %v1198, %v1197
      %v1312 = vpack.c.b16 %v1200, %v1199
      %v1313 = vpack.c.b16 %v1202, %v1201
      %v1314 = vpack.c.b16 %v1204, %v1203
      %v1315 = vpack.c.b16 %v1206, %v1205
      %v1316 = vpack.c.b16 %v1208, %v1207
      %v1317 = vpack.c.b16 %v1210, %v1209
      %v1318 = vpack.c.b16 %v1212, %v1211
      %v1319 = vpack.c.b16 %v1214, %v1213
      %v1320 = vpack.c.b16 %v1216, %v1215
      %v1321 = vpack.c.b16 %v1218, %v1217
      %v1322 = vpack.c.b16 %v1220, %v1219
      %v1323 = vpack.c.b16 %v1222, %v1221
      %v1324 = vpack.c.b16 %v1224, %v1223
      %v1325 = vpack.c.b16 %v1226, %v1225
      %v1326 = vpack.c.b16 %v1228, %v1227
      %v1327 = vpack.c.b16 %v1230, %v1229
      %v1328 = vpack.c.b16 %v1232, %v1231
      %v1329 = vpack.c.b16 %v1234, %v1233
      %v1330 = vpack.c.b16 %v1236, %v1235
      %v1331 = vpack.c.b16 %v1238, %v1237
      %v1332 = vpack.c.b16 %v1240, %v1239
      %v1333 = vpack.c.b16 %v1242, %v1241
      %v1334 = vpack.c.b16 %v1244, %v1243
      %v1335 = vpack.c.b16 %v1246, %v1245
      %v1336 = vpack.c.b16 %v1248, %v1247
      %v1337 = vpack.c.b16 %v1250, %v1249
      %v1338 = vpack.c.b16 %v1252, %v1251
      %v1339 = vpack.c.b16 %v1254, %v1253
      %v1340 = vpack.c.b16 %v1256, %v1255
      %v1341 = vpack.c.b16 %v1258, %v1257
      %v1342 = vpack.c.b16 %v1260, %v1259
      %v1343 = vpack.c.b16 %v1262, %v1261
      %v1344 = vpack.c.b16 %v1264, %v1263
      %v1345 = vpack.c.b16 %v1266, %v1265
      %v1346 = vpack.c.b16 %v1268, %v1267
      %v1347 = vpack.c.b16 %v1270, %v1269
      %v1348 = vpack.c.b16 %v1272, %v1271
      %v1349 = vpack.c.b16 %v1274, %v1273
      %v1350 = vpack.c.b16 %v1276, %v1275
      %v1351 = vpack.c.b16 %v1278, %v1277
      %v1352 = vpack.c.b16 %v1280, %v1279
      %1425 = vmatprep.subr.bf16.mxu0 0
      %1426 = vmatpush1.bf16.msra.mxu0 %v1288
      %1427 = vmatprep.subr.bf16.mxu0 0
      %1428 = vmatpush1.bf16.msra.mxu0 %v1287
      %1429 = vmatprep.subr.bf16.mxu0 0
      %1430 = vmatpush1.bf16.msra.mxu0 %v1286
      %1431 = vmatprep.subr.bf16.mxu0 0
      %1432 = vmatpush1.bf16.msra.mxu0 %v1285
      %1433 = vmatprep.subr.bf16.mxu0 0
      %1434 = vmatpush1.bf16.msra.mxu0 %v1284
      %1435 = vmatprep.subr.bf16.mxu0 0
      %1436 = vmatpush1.bf16.msra.mxu0 %v1283
      %1437 = vmatprep.subr.bf16.mxu0 0
      %1438 = vmatpush1.bf16.msra.mxu0 %v1282
      %1439 = vmatprep.subr.bf16.mxu0 0
      %1440 = vmatpush1.bf16.msra.mxu0 %v1281
      %1441 = vmatprep.subr.bf16.mxu0 0
      %1442 = vmatpush2.bf16.msra.mxu0 %v1296
      %1443 = vmatprep.subr.bf16.mxu0 0
      %1444 = vmatpush2.bf16.msra.mxu0 %v1295
      %1445 = vmatprep.subr.bf16.mxu0 0
      %1446 = vmatpush2.bf16.msra.mxu0 %v1294
      %1447 = vmatprep.subr.bf16.mxu0 0
      %1448 = vmatpush2.bf16.msra.mxu0 %v1293
      %1449 = vmatprep.subr.bf16.mxu0 0
      %1450 = vmatpush2.bf16.msra.mxu0 %v1292
      %1451 = vmatprep.subr.bf16.mxu0 0
      %1452 = vmatpush2.bf16.msra.mxu0 %v1291
      %1453 = vmatprep.subr.bf16.mxu0 0
      %1454 = vmatpush2.bf16.msra.mxu0 %v1290
      %1455 = vmatprep.subr.bf16.mxu0 0
      %1456 = vmatpush2.bf16.msra.mxu0 %v1289
      %1457 = vmatprep.mubr.bf16.mxu0 %v940
      %1458 = vmatmul.mubr.bf16.gmra.mxu0 %v939
      %v1459 = vpop.f32.mrf.mxu0
      %v1460 = vadd.f32 0.0, %v1459
      %v1461 = vpop.f32.mrf.mxu0
      %v1462 = vpop.f32.mrf.mxu0
      %v1463 = vadd.f32 0.0, %v1462
      %v1464 = vpop.f32.mrf.mxu0
      %1465 = vmatprep.mubr.bf16.mxu0 %v946
      %1466 = vmatmul.mubr.bf16.gmra.mxu0 %v945
      %v1467 = vpop.f32.mrf.mxu0
      %v1468 = vadd.f32 0.0, %v1467
      %v1469 = vpop.f32.mrf.mxu0
      %v1470 = vpop.f32.mrf.mxu0
      %v1471 = vadd.f32 0.0, %v1470
      %v1472 = vpop.f32.mrf.mxu0
      %1473 = vmatprep.mubr.bf16.mxu0 %v952
      %1474 = vmatmul.mubr.bf16.gmra.mxu0 %v951
      %v1475 = vpop.f32.mrf.mxu0
      %v1476 = vadd.f32 0.0, %v1475
      %v1477 = vpop.f32.mrf.mxu0
      %v1478 = vpop.f32.mrf.mxu0
      %v1479 = vadd.f32 0.0, %v1478
      %v1480 = vpop.f32.mrf.mxu0
      %1481 = vmatprep.mubr.bf16.mxu0 %v958
      %1482 = vmatmul.mubr.bf16.gmra.mxu0 %v957
      %v1483 = vpop.f32.mrf.mxu0
      %v1484 = vadd.f32 0.0, %v1483
      %v1485 = vpop.f32.mrf.mxu0
      %v1486 = vpop.f32.mrf.mxu0
      %v1487 = vadd.f32 0.0, %v1486
      %v1488 = vpop.f32.mrf.mxu0
      %1489 = vdwg.mxu0
      %1490 = vmatprep.subr.bf16.mxu0 0
      %1491 = vmatpush1.bf16.msra.mxu0 %v1304
      %1492 = vmatprep.subr.bf16.mxu0 0
      %1493 = vmatpush1.bf16.msra.mxu0 %v1303
      %1494 = vmatprep.subr.bf16.mxu0 0
      %1495 = vmatpush1.bf16.msra.mxu0 %v1302
      %1496 = vmatprep.subr.bf16.mxu0 0
      %1497 = vmatpush1.bf16.msra.mxu0 %v1301
      %1498 = vmatprep.subr.bf16.mxu0 0
      %1499 = vmatpush1.bf16.msra.mxu0 %v1300
      %1500 = vmatprep.subr.bf16.mxu0 0
      %1501 = vmatpush1.bf16.msra.mxu0 %v1299
      %1502 = vmatprep.subr.bf16.mxu0 0
      %1503 = vmatpush1.bf16.msra.mxu0 %v1298
      %1504 = vmatprep.subr.bf16.mxu0 0
      %1505 = vmatpush1.bf16.msra.mxu0 %v1297
      %1506 = vmatprep.subr.bf16.mxu0 0
      %1507 = vmatpush2.bf16.msra.mxu0 %v1312
      %1508 = vmatprep.subr.bf16.mxu0 0
      %1509 = vmatpush2.bf16.msra.mxu0 %v1311
      %1510 = vmatprep.subr.bf16.mxu0 0
      %1511 = vmatpush2.bf16.msra.mxu0 %v1310
      %1512 = vmatprep.subr.bf16.mxu0 0
      %1513 = vmatpush2.bf16.msra.mxu0 %v1309
      %1514 = vmatprep.subr.bf16.mxu0 0
      %1515 = vmatpush2.bf16.msra.mxu0 %v1308
      %1516 = vmatprep.subr.bf16.mxu0 0
      %1517 = vmatpush2.bf16.msra.mxu0 %v1307
      %1518 = vmatprep.subr.bf16.mxu0 0
      %1519 = vmatpush2.bf16.msra.mxu0 %v1306
      %1520 = vmatprep.subr.bf16.mxu0 0
      %1521 = vmatpush2.bf16.msra.mxu0 %v1305
      %1522 = vmatprep.mubr.bf16.mxu0 %v942
      %1523 = vmatmul.mubr.bf16.gmra.mxu0 %v941
      %v1524 = vpop.f32.mrf.mxu0
      %v1525 = vadd.f32 %v1460, %v1524
      %v1526 = vpop.f32.mrf.mxu0
      %v1527 = vpop.f32.mrf.mxu0
      %v1528 = vadd.f32 %v1463, %v1527
      %v1529 = vpop.f32.mrf.mxu0
      %1530 = vmatprep.mubr.bf16.mxu0 %v948
      %1531 = vmatmul.mubr.bf16.gmra.mxu0 %v947
      %v1532 = vpop.f32.mrf.mxu0
      %v1533 = vadd.f32 %v1468, %v1532
      %v1534 = vpop.f32.mrf.mxu0
      %v1535 = vpop.f32.mrf.mxu0
      %v1536 = vadd.f32 %v1471, %v1535
      %v1537 = vpop.f32.mrf.mxu0
      %1538 = vmatprep.mubr.bf16.mxu0 %v954
      %1539 = vmatmul.mubr.bf16.gmra.mxu0 %v953
      %v1540 = vpop.f32.mrf.mxu0
      %v1541 = vadd.f32 %v1476, %v1540
      %v1542 = vpop.f32.mrf.mxu0
      %v1543 = vpop.f32.mrf.mxu0
      %v1544 = vadd.f32 %v1479, %v1543
      %v1545 = vpop.f32.mrf.mxu0
      %1546 = vmatprep.mubr.bf16.mxu0 %v960
      %1547 = vmatmul.mubr.bf16.gmra.mxu0 %v959
      %v1548 = vpop.f32.mrf.mxu0
      %v1549 = vadd.f32 %v1484, %v1548
      %v1550 = vpop.f32.mrf.mxu0
      %v1551 = vpop.f32.mrf.mxu0
      %v1552 = vadd.f32 %v1487, %v1551
      %v1553 = vpop.f32.mrf.mxu0
      %1554 = vdwg.mxu0
      %1555 = vmatprep.subr.bf16.mxu0 0
      %1556 = vmatpush1.bf16.msra.mxu0 %v1320
      %1557 = vmatprep.subr.bf16.mxu0 0
      %1558 = vmatpush1.bf16.msra.mxu0 %v1319
      %1559 = vmatprep.subr.bf16.mxu0 0
      %1560 = vmatpush1.bf16.msra.mxu0 %v1318
      %1561 = vmatprep.subr.bf16.mxu0 0
      %1562 = vmatpush1.bf16.msra.mxu0 %v1317
      %1563 = vmatprep.subr.bf16.mxu0 0
      %1564 = vmatpush1.bf16.msra.mxu0 %v1316
      %1565 = vmatprep.subr.bf16.mxu0 0
      %1566 = vmatpush1.bf16.msra.mxu0 %v1315
      %1567 = vmatprep.subr.bf16.mxu0 0
      %1568 = vmatpush1.bf16.msra.mxu0 %v1314
      %1569 = vmatprep.subr.bf16.mxu0 0
      %1570 = vmatpush1.bf16.msra.mxu0 %v1313
      %1571 = vmatprep.subr.bf16.mxu0 0
      %1572 = vmatpush2.bf16.msra.mxu0 %v1328
      %1573 = vmatprep.subr.bf16.mxu0 0
      %1574 = vmatpush2.bf16.msra.mxu0 %v1327
      %1575 = vmatprep.subr.bf16.mxu0 0
      %1576 = vmatpush2.bf16.msra.mxu0 %v1326
      %1577 = vmatprep.subr.bf16.mxu0 0
      %1578 = vmatpush2.bf16.msra.mxu0 %v1325
      %1579 = vmatprep.subr.bf16.mxu0 0
      %1580 = vmatpush2.bf16.msra.mxu0 %v1324
      %1581 = vmatprep.subr.bf16.mxu0 0
      %1582 = vmatpush2.bf16.msra.mxu0 %v1323
      %1583 = vmatprep.subr.bf16.mxu0 0
      %1584 = vmatpush2.bf16.msra.mxu0 %v1322
      %1585 = vmatprep.subr.bf16.mxu0 0
      %1586 = vmatpush2.bf16.msra.mxu0 %v1321
      %1587 = vmatprep.mubr.bf16.mxu0 %v944
      %1588 = vmatmul.mubr.bf16.gmra.mxu0 %v943
      %v1589 = vpop.f32.mrf.mxu0
      %v1590 = vadd.f32 %v1525, %v1589
      %v1591 = vpop.f32.mrf.mxu0
      %v1592 = vpop.f32.mrf.mxu0
      %v1593 = vadd.f32 %v1528, %v1592
      %v1594 = vpop.f32.mrf.mxu0
      %1595 = vmatprep.mubr.bf16.mxu0 %v950
      %1596 = vmatmul.mubr.bf16.gmra.mxu0 %v949
      %v1597 = vpop.f32.mrf.mxu0
      %v1598 = vadd.f32 %v1533, %v1597
      %v1599 = vpop.f32.mrf.mxu0
      %v1600 = vpop.f32.mrf.mxu0
      %v1601 = vadd.f32 %v1536, %v1600
      %v1602 = vpop.f32.mrf.mxu0
      %1603 = vmatprep.mubr.bf16.mxu0 %v956
      %1604 = vmatmul.mubr.bf16.gmra.mxu0 %v955
      %v1605 = vpop.f32.mrf.mxu0
      %v1606 = vadd.f32 %v1541, %v1605
      %v1607 = vpop.f32.mrf.mxu0
      %v1608 = vpop.f32.mrf.mxu0
      %v1609 = vadd.f32 %v1544, %v1608
      %v1610 = vpop.f32.mrf.mxu0
      %1611 = vmatprep.mubr.bf16.mxu0 %v962
      %1612 = vmatmul.mubr.bf16.gmra.mxu0 %v961
      %v1613 = vpop.f32.mrf.mxu0
      %v1614 = vadd.f32 %v1549, %v1613
      %v1615 = vpop.f32.mrf.mxu0
      %v1616 = vpop.f32.mrf.mxu0
      %v1617 = vadd.f32 %v1552, %v1616
      %v1618 = vpop.f32.mrf.mxu0
      %1619 = vdwg.mxu0
      %1620 = vmatprep.subr.bf16.mxu0 0
      %1621 = vmatpush1.bf16.msra.mxu0 %v1336
      %1622 = vmatprep.subr.bf16.mxu0 0
      %1623 = vmatpush1.bf16.msra.mxu0 %v1335
      %1624 = vmatprep.subr.bf16.mxu0 0
      %1625 = vmatpush1.bf16.msra.mxu0 %v1334
      %1626 = vmatprep.subr.bf16.mxu0 0
      %1627 = vmatpush1.bf16.msra.mxu0 %v1333
      %1628 = vmatprep.subr.bf16.mxu0 0
      %1629 = vmatpush1.bf16.msra.mxu0 %v1332
      %1630 = vmatprep.subr.bf16.mxu0 0
      %1631 = vmatpush1.bf16.msra.mxu0 %v1331
      %1632 = vmatprep.subr.bf16.mxu0 0
      %1633 = vmatpush1.bf16.msra.mxu0 %v1330
      %1634 = vmatprep.subr.bf16.mxu0 0
      %1635 = vmatpush1.bf16.msra.mxu0 %v1329
      %1636 = vmatprep.subr.bf16.mxu0 0
      %1637 = vmatpush2.bf16.msra.mxu0 %v1344
      %1638 = vmatprep.subr.bf16.mxu0 0
      %1639 = vmatpush2.bf16.msra.mxu0 %v1343
      %1640 = vmatprep.subr.bf16.mxu0 0
      %1641 = vmatpush2.bf16.msra.mxu0 %v1342
      %1642 = vmatprep.subr.bf16.mxu0 0
      %1643 = vmatpush2.bf16.msra.mxu0 %v1341
      %1644 = vmatprep.subr.bf16.mxu0 0
      %1645 = vmatpush2.bf16.msra.mxu0 %v1340
      %1646 = vmatprep.subr.bf16.mxu0 0
      %1647 = vmatpush2.bf16.msra.mxu0 %v1339
      %1648 = vmatprep.subr.bf16.mxu0 0
      %1649 = vmatpush2.bf16.msra.mxu0 %v1338
      %1650 = vmatprep.subr.bf16.mxu0 0
      %1651 = vmatpush2.bf16.msra.mxu0 %v1337
      %1652 = vmatprep.mubr.bf16.mxu0 %v946
      %1653 = vmatmul.mubr.bf16.gmra.mxu0 %v945
      %v1654 = vpop.f32.mrf.mxu0
      %v1655 = vadd.f32 %v1590, %v1654
      %v1656 = vpop.f32.mrf.mxu0
      %v1657 = vpop.f32.mrf.mxu0
      %v1658 = vadd.f32 %v1593, %v1657
      %v1659 = vpop.f32.mrf.mxu0
      %1660 = vmatprep.mubr.bf16.mxu0 %v952
      %1661 = vmatmul.mubr.bf16.gmra.mxu0 %v951
      %v1662 = vpop.f32.mrf.mxu0
      %v1663 = vadd.f32 %v1598, %v1662
      %v1664 = vpop.f32.mrf.mxu0
      %v1665 = vpop.f32.mrf.mxu0
      %v1666 = vadd.f32 %v1601, %v1665
      %v1667 = vpop.f32.mrf.mxu0
      %1668 = vmatprep.mubr.bf16.mxu0 %v958
      %1669 = vmatmul.mubr.bf16.gmra.mxu0 %v957
      %v1670 = vpop.f32.mrf.mxu0
      %v1671 = vadd.f32 %v1606, %v1670
      %v1672 = vpop.f32.mrf.mxu0
      %v1673 = vpop.f32.mrf.mxu0
      %v1674 = vadd.f32 %v1609, %v1673
      %v1675 = vpop.f32.mrf.mxu0
      %1676 = vmatprep.mubr.bf16.mxu0 %v964
      %1677 = vmatmul.mubr.bf16.gmra.mxu0 %v963
      %v1678 = vpop.f32.mrf.mxu0
      %v1679 = vadd.f32 %v1614, %v1678
      %v1680 = vpop.f32.mrf.mxu0
      %v1681 = vpop.f32.mrf.mxu0
      %v1682 = vadd.f32 %v1617, %v1681
      %v1683 = vpop.f32.mrf.mxu0
      %1684 = vdwg.mxu0
      %1685 = vmatprep.subr.bf16.mxu0 0
      %1686 = vmatpush1.bf16.msra.mxu0 %v1352
      %1687 = vmatprep.subr.bf16.mxu0 0
      %1688 = vmatpush1.bf16.msra.mxu0 %v1351
      %1689 = vmatprep.subr.bf16.mxu0 0
      %1690 = vmatpush1.bf16.msra.mxu0 %v1350
      %1691 = vmatprep.subr.bf16.mxu0 0
      %1692 = vmatpush1.bf16.msra.mxu0 %v1349
      %1693 = vmatprep.subr.bf16.mxu0 0
      %1694 = vmatpush1.bf16.msra.mxu0 %v1348
      %1695 = vmatprep.subr.bf16.mxu0 0
      %1696 = vmatpush1.bf16.msra.mxu0 %v1347
      %1697 = vmatprep.subr.bf16.mxu0 0
      %1698 = vmatpush1.bf16.msra.mxu0 %v1346
      %1699 = vmatprep.subr.bf16.mxu0 0
      %1700 = vmatpush1.bf16.msra.mxu0 %v1345
      %1701 = vmatprep.subr.bf16.mxu0 0
      %1702 = vmatpush2.bf16.msra.mxu0 0
      %1703 = vmatprep.subr.bf16.mxu0 0
      %1704 = vmatpush2.bf16.msra.mxu0 0
      %1705 = vmatprep.subr.bf16.mxu0 0
      %1706 = vmatpush2.bf16.msra.mxu0 0
      %1707 = vmatprep.subr.bf16.mxu0 0
      %1708 = vmatpush2.bf16.msra.mxu0 0
      %1709 = vmatprep.subr.bf16.mxu0 0
      %1710 = vmatpush2.bf16.msra.mxu0 0
      %1711 = vmatprep.subr.bf16.mxu0 0
      %1712 = vmatpush2.bf16.msra.mxu0 0
      %1713 = vmatprep.subr.bf16.mxu0 0
      %1714 = vmatpush2.bf16.msra.mxu0 0
      %1715 = vmatprep.subr.bf16.mxu0 0
      %1716 = vmatpush2.bf16.msra.mxu0 0
      %1717 = vmatprep.mubr.bf16.mxu0 0
      %1718 = vmatmul.mubr.bf16.gmra.mxu0 %v947
      %v1719 = vpop.f32.mrf.mxu0
      %v1720 = vadd.f32 %v1655, %v1719
      %v1721 = vpop.f32.mrf.mxu0
      %v1722 = vpop.f32.mrf.mxu0
      %v1723 = vadd.f32 %v1658, %v1722
      %v1724 = vpop.f32.mrf.mxu0
      %1725 = vmatprep.mubr.bf16.mxu0 0
      %1726 = vmatmul.mubr.bf16.gmra.mxu0 %v953
      %v1727 = vpop.f32.mrf.mxu0
      %v1728 = vadd.f32 %v1663, %v1727
      %v1729 = vpop.f32.mrf.mxu0
      %v1730 = vpop.f32.mrf.mxu0
      %v1731 = vadd.f32 %v1666, %v1730
      %v1732 = vpop.f32.mrf.mxu0
      %1733 = vmatprep.mubr.bf16.mxu0 0
      %1734 = vmatmul.mubr.bf16.gmra.mxu0 %v959
      %v1735 = vpop.f32.mrf.mxu0
      %v1736 = vadd.f32 %v1671, %v1735
      %v1737 = vpop.f32.mrf.mxu0
      %v1738 = vpop.f32.mrf.mxu0
      %v1739 = vadd.f32 %v1674, %v1738
      %v1740 = vpop.f32.mrf.mxu0
      %1741 = vmatprep.mubr.bf16.mxu0 0
      %1742 = vmatmul.mubr.bf16.gmra.mxu0 %v965
      %v1743 = vpop.f32.mrf.mxu0
      %v1744 = vadd.f32 %v1679, %v1743
      %v1745 = vpop.f32.mrf.mxu0
      %v1746 = vpop.f32.mrf.mxu0
      %v1747 = vadd.f32 %v1682, %v1746
      %v1748 = vpop.f32.mrf.mxu0
      %1749 = vdwg.mxu0
      %v1750 = vpack.c.bf16 %v1723, %v1720
      %v1751 = vpack.c.bf16 %v1731, %v1728
      %v1752 = vpack.c.bf16 %v1739, %v1736
      %v1753 = vpack.c.bf16 %v1747, %v1744
      %v1758 = vunpack.c.l.b16 %v1750
      %v1759 = vunpack.c.h.b16 %v1750
      %v1760 = vunpack.c.l.b16 %v1751
      %v1761 = vunpack.c.h.b16 %v1751
      %v1762 = vunpack.c.l.b16 %v1752
      %v1763 = vunpack.c.h.b16 %v1752
      %v1764 = vunpack.c.l.b16 %v1753
      %v1765 = vunpack.c.h.b16 %v1753
      %v1766 = vpack.c.b16 %v1758, %v1758
      %v1767 = vpack.c.b16 %v1759, %v1759
      %v1768 = vpack.c.b16 %v1760, %v1760
      %v1769 = vpack.c.b16 %v1761, %v1761
      %v1770 = vpack.c.b16 %v1762, %v1762
      %v1771 = vpack.c.b16 %v1763, %v1763
      %v1772 = vpack.c.b16 %v1764, %v1764
      %v1773 = vpack.c.b16 %v1765, %v1765
      %1782 = vst [vmem:[%s472] sm:$0xf] %v1766
      %1783 = vst [vmem:[%s472 + $0x4] sm:$0xf] %v1767
      %1784 = vst [vmem:[%s472 + $0x8] sm:$0xf] %v1768
      %1785 = vst [vmem:[%s472 + $0xc] sm:$0xf] %v1769
      %1786 = vst [vmem:[%s472 + $0x10] sm:$0xf] %v1770
      %1787 = vst [vmem:[%s472 + $0x14] sm:$0xf] %v1771
      %1788 = vst [vmem:[%s472 + $0x18] sm:$0xf] %v1772
      %1789 = vst [vmem:[%s472 + $0x1c] sm:$0xf] %v1773
      %v1790 = vadd.f32 %v1720, %v1723
      %v1791 = vadd.f32 %v1790, %v1728
      %v1792 = vadd.f32 %v1791, %v1731
      %v1793 = vadd.f32 %v1792, %v1736
      %v1794 = vadd.f32 %v1793, %v1739
      %v1795 = vadd.f32 %v1794, %v1744
      %v1796 = vadd.f32 %v1795, %v1747
      %v1797 = vrot.slane %v1796, 4
      %v1798 = vadd.f32 %v1796, %v1797
      %v1799 = vrot.slane %v1798, 2
      %v1800 = vadd.f32 %v1798, %v1799
      %v1801 = vrot.slane %v1800, 1
      %v1802 = vadd.f32 %v1800, %v1801
      %v1803 = vmul.f32 %v1802, 0.015625
      %v1804 = vsub.f32 %v1720, %v1803
      %v1805 = vsub.f32 %v1723, %v1803
      %v1806 = vsub.f32 %v1728, %v1803
      %v1807 = vsub.f32 %v1731, %v1803
      %v1808 = vsub.f32 %v1736, %v1803
      %v1809 = vsub.f32 %v1739, %v1803
      %v1810 = vsub.f32 %v1744, %v1803
      %v1811 = vsub.f32 %v1747, %v1803
      %v1812 = vmul.f32 %v1804, %v1804
      %v1813 = vmul.f32 %v1805, %v1805
      %v1814 = vmul.f32 %v1806, %v1806
      %v1815 = vmul.f32 %v1807, %v1807
      %v1816 = vmul.f32 %v1808, %v1808
      %v1817 = vmul.f32 %v1809, %v1809
      %v1818 = vmul.f32 %v1810, %v1810
      %v1819 = vmul.f32 %v1811, %v1811
      %v1820 = vadd.f32 %v1812, %v1813
      %v1821 = vadd.f32 %v1820, %v1814
      %v1822 = vadd.f32 %v1821, %v1815
      %v1823 = vadd.f32 %v1822, %v1816
      %v1824 = vadd.f32 %v1823, %v1817
      %v1825 = vadd.f32 %v1824, %v1818
      %v1826 = vadd.f32 %v1825, %v1819
      %v1827 = vrot.slane %v1826, 4
      %v1828 = vadd.f32 %v1826, %v1827
      %v1829 = vrot.slane %v1828, 2
      %v1830 = vadd.f32 %v1828, %v1829
      %v1831 = vrot.slane %v1830, 1
      %v1832 = vadd.f32 %v1830, %v1831
      %1833 = vst [vmem:[%s477] sm:$0x1] %v1802
      %1834 = vst [vmem:[%s482] sm:$0x1] %v1832
      %s1835 = sadd.s32 %s24, %s25
      %p1836 = scmp.lt.s32.totalorder %s1835, 1
      %s1837 = scalar_select %p1836, %s1835, 1
      %s1838 = smul.addr %s1837, 8
      %s1839 = smul.addr %s1838, 4
      %s1840 = scalar_lea.vmem %s6, %s1839
      %s1841 = sadd.s32 %s24, %s25
      %p1842 = scmp.lt.s32.totalorder %s1841, 1
      %s1843 = scalar_select %p1842, %s1841, 1
      %s1844 = scalar_lea.vmem %s7, %s1843
      %s1845 = sadd.s32 %s24, %s25
      %p1846 = scmp.lt.s32.totalorder %s1845, 1
      %s1847 = scalar_select %p1846, %s1845, 1
      %s1848 = scalar_lea.vmem %s8, %s1847
      // Predicated region
      $region45: #{down_block_forward.4} parent=43 // pred_check
        %p1849 = pneg %p215
      $region46: #{down_block_forward.4} parent=43 // pred_check_branch
        %1851 = sbr.rel (%p1849) target = $region48
      $region47: #{down_block_forward.4} parent=43 // pred_region
        %s1852 = sadd.s32 %s24, %s25
      $region48: #{down_block_forward.4} parent=43 // pred_fallthru
        _
      // Predicated region
      $region49: #{down_block_forward.4} parent=43 // pred_check
        %p1853 = pneg %p243
      $region50: #{down_block_forward.4} parent=43 // pred_check_branch
        %1855 = sbr.rel (%p1853) target = $region52
      $region51: #{down_block_forward.4} parent=43 // pred_region
        %s1856 = sadd.s32 %s24, %s25
      $region52: #{down_block_forward.4} parent=43 // pred_fallthru
        _
      // Predicated region
      $region53: #{down_block_forward.4} parent=43 // pred_check
        %p1857 = pneg %p271
      $region54: #{down_block_forward.4} parent=43 // pred_check_branch
        %1859 = sbr.rel (%p1857) target = $region56
      $region55: #{down_block_forward.4} parent=43 // pred_region
        %s1860 = sadd.s32 %s24, %s25
      $region56: #{down_block_forward.4} parent=43 // pred_fallthru
        _
    $region44: #{down_block_forward.4} parent=5 // pred_fallthru
      _
    %p1861 = scmp.le.s32.totalorder 2, %s15
    // Predicated region
    $region57: #{down_block_forward.4} parent=5 // pred_check
      %p1862 = pneg %p1861
    $region58: #{down_block_forward.4} parent=5 // pred_check_branch
      %1864 = sbr.rel (%p1862) target = $region60
    $region59: #{down_block_forward.4} parent=5 // pred_region
      %s1865 = ssub.s32 %s15, 2
      // Predicated region
      $region61: #{down_block_forward.4} parent=59 // pred_check
        %p1866 = pneg %p221
      $region62: #{down_block_forward.4} parent=59 // pred_check_branch
        %1868 = sbr.rel (%p1866) target = $region64
      $region63: #{down_block_forward.4} parent=59 // pred_region
        %s1869 = sadd.s32 %s26, %s27
        %p1870 = scmp.lt.s32.totalorder %s1869, 1
        %s1871 = scalar_select %p1870, %s1869, 1
        %s1872 = smul.addr %s1871, 8
        %s1873 = smul.addr %s1872, 4
        %s1874 = scalar_lea.vmem %s6, %s1873
      $region64: #{down_block_forward.4} parent=59 // pred_fallthru
        _
      // Predicated region
      $region65: #{down_block_forward.4} parent=59 // pred_check
        %p1875 = pneg %p249
      $region66: #{down_block_forward.4} parent=59 // pred_check_branch
        %1877 = sbr.rel (%p1875) target = $region68
      $region67: #{down_block_forward.4} parent=59 // pred_region
        %s1878 = sadd.s32 %s26, %s27
        %p1879 = scmp.lt.s32.totalorder %s1878, 1
        %s1880 = scalar_select %p1879, %s1878, 1
        %s1881 = scalar_lea.vmem %s7, %s1880
      $region68: #{down_block_forward.4} parent=59 // pred_fallthru
        _
      // Predicated region
      $region69: #{down_block_forward.4} parent=59 // pred_check
        %p1882 = pneg %p277
      $region70: #{down_block_forward.4} parent=59 // pred_check_branch
        %1884 = sbr.rel (%p1882) target = $region72
      $region71: #{down_block_forward.4} parent=59 // pred_region
        %s1885 = sadd.s32 %s26, %s27
        %p1886 = scmp.lt.s32.totalorder %s1885, 1
        %s1887 = scalar_select %p1886, %s1885, 1
        %s1888 = scalar_lea.vmem %s8, %s1887
      $region72: #{down_block_forward.4} parent=59 // pred_fallthru
        _
    $region60: #{down_block_forward.4} parent=5 // pred_fallthru
      _
  $region6: #{down_block_forward.4} parent=0 // loop_footer
    %s19 = sadd.s32 1, %s15
  $region7: #{down_block_forward.4} parent=0 // loop_footer_branch
    %14 = sbr.rel target = $region3
  $region8: #{down_block_forward.4} parent=0 // loop_exit
    _

</llo_original>
